<compile_context>
chip_gen: v7x
topology: tpu7x:2x2x1
jax: 0.10.0
libtpu: 0.0.40
codegen_flags: <defaults>
</compile_context>

<pallas_src>
import numpy as np
import jax
import jax.numpy as jnp
from jax.experimental import pallas as pl
from jax.experimental.pallas import tpu as pltpu

EMBED_DIM = 32          # embedding_dim
NUM_HEADS = 2           # num_heads
NUM_LAYERS = 2          # num_layers
NUM_CLASSES = 4         # must equal len(np.unique(y_indices)) for the real task; 4 for this demo
SEQ_LEN = 8             # sequence_length
FFN_DIM = 2048          # nn.TransformerEncoderLayer default dim_feedforward
FFN_CHUNK = 1024        # FFN hidden-dim tile (live f32 hidden = 16 vregs)
LN_EPS = 1e-5           # nn.LayerNorm default eps

# rows of the packed per-layer vector slab (L, VEC_ROWS, E)
(VEC_QB, VEC_KB, VEC_VB, VEC_OB,
 VEC_LN1W, VEC_LN1B, VEC_LN2W, VEC_LN2B, VEC_FFB2) = range(9)
VEC_ROWS = 9


def _layer_norm(v, w, b):
    # v: (BS, E), w/b: (1, E) — all f32
    mu = jnp.mean(v, axis=-1, keepdims=True)
    var = jnp.mean((v - mu) ** 2, axis=-1, keepdims=True)
    return (v - mu) * jax.lax.rsqrt(var + LN_EPS) * w + b


def transformer_kernel(x_ref, pe_ref, inw_ref, outw_ref, vec_ref,
                       w1_ref, b1_ref, w2_ref, fcw_ref, fcb_ref, o_ref):
    B, S, E = x_ref.shape
    BS = B * S
    H = NUM_HEADS
    Dh = E // H
    L = inw_ref.shape[0]
    F = w1_ref.shape[2]
    scale = 1.0 / np.sqrt(Dh)

    # positional encoding, then keep activations as a 2-D (BS, E) slab
    x2 = (x_ref[...] + pe_ref[...][None, :, :]).reshape(BS, E)        # f32

    for l in range(L):                       # static unroll; weights VMEM-resident
        vec = vec_ref[l]                     # (VEC_ROWS, E) packed per-layer vectors
        qb = vec[VEC_QB:VEC_QB + 1, :]
        kb = vec[VEC_KB:VEC_KB + 1, :]
        vb = vec[VEC_VB:VEC_VB + 1, :]
        ob = vec[VEC_OB:VEC_OB + 1, :]

        # ---- multi-head self attention (heads fused via batch-axis stacking) ----
        qkv = jnp.dot(x2, inw_ref[l],
                      preferred_element_type=jnp.float32).reshape(B, S, 3 * E)
        q3 = qkv[:, :, 0 * E:1 * E] + qb                              # (B,S,E)
        k3 = qkv[:, :, 1 * E:2 * E] + kb
        v3 = qkv[:, :, 2 * E:3 * E] + vb

        # stack heads on the (leading) batch axis -> (H*B, S, Dh)
        qh = jnp.concatenate([q3[:, :, h * Dh:(h + 1) * Dh] for h in range(H)], axis=0)
        kh = jnp.concatenate([k3[:, :, h * Dh:(h + 1) * Dh] for h in range(H)], axis=0)
        vh = jnp.concatenate([v3[:, :, h * Dh:(h + 1) * Dh] for h in range(H)], axis=0)

        s = jnp.einsum('bsd,btd->bst', qh, kh,
                       preferred_element_type=jnp.float32) * scale     # (HB,S,S)
        s = s - jnp.max(s, axis=-1, keepdims=True)
        p = jnp.exp(s)
        # approx reciprocal rides the EUP slot; use approx=False for bit-level parity
        p = p * pl.reciprocal(jnp.sum(p, axis=-1, keepdims=True), approx=True)
        ctx = jnp.einsum('bst,btd->bsd', p, vh,
                         preferred_element_type=jnp.float32)            # (HB,S,Dh)

        # merge heads back onto the lane axis, single output projection
        ctx_e = jnp.concatenate([ctx[h * B:(h + 1) * B] for h in range(H)], axis=-1)
        attn = jnp.dot(ctx_e.reshape(BS, E), outw_ref[l],
                       preferred_element_type=jnp.float32) + ob
        x2 = _layer_norm(x2 + attn,
                         vec[VEC_LN1W:VEC_LN1W + 1, :], vec[VEC_LN1B:VEC_LN1B + 1, :])

        # ---- feed-forward (ReLU): bf16 weights, f32 accumulation, F-chunked ----
        x_bf = x2.astype(jnp.bfloat16)
        ff = jnp.zeros((BS, E), jnp.float32)
        for c in range(F // FFN_CHUNK):                                 # static, 2 chunks
            cs = c * FFN_CHUNK
            hdn = jnp.dot(x_bf, w1_ref[l, :, cs:cs + FFN_CHUNK],
                          preferred_element_type=jnp.float32)           # (BS, CH) f32
            hdn = jnp.maximum(hdn + b1_ref[l, :, cs:cs + FFN_CHUNK], 0.0)
            ff = ff + jnp.dot(hdn.astype(jnp.bfloat16), w2_ref[l, cs:cs + FFN_CHUNK, :],
                              preferred_element_type=jnp.float32)
        ff = ff + vec[VEC_FFB2:VEC_FFB2 + 1, :]
        x2 = _layer_norm(x2 + ff,
                         vec[VEC_LN2W:VEC_LN2W + 1, :], vec[VEC_LN2B:VEC_LN2B + 1, :])

    # ---- mean-pool over sequence + linear classification head ----
    pooled = jnp.mean(x2.reshape(B, S, E), axis=1)                      # (B, E)
    o_ref[...] = jnp.dot(pooled, fcw_ref[...],
                         preferred_element_type=jnp.float32) + fcb_ref[...]


def transformer_classifier(x, params):
    B, S, E = x.shape
    args = (x, params['pe'],
            params['in_proj_wt'], params['out_proj_wt'], params['vec'],
            params['ffn_w1t'], params['ffn_b1'], params['ffn_w2t'],
            params['fc_wt'], params['fc_b'])
    vmem = pl.BlockSpec(memory_space=pltpu.MemorySpace.VMEM)   # whole array in VMEM
    return pl.pallas_call(
        transformer_kernel,
        out_shape=jax.ShapeDtypeStruct((B, NUM_CLASSES), jnp.float32),
        in_specs=[vmem] * len(args),
        out_specs=vmem,
    )(*args)


def make_positional_encoding(seq_len, embed_dim):
    # matches PositionalEncoding: pe[:, 0::2]=sin(pos*div), pe[:, 1::2]=cos(pos*div)
    position = np.arange(seq_len)[:, None].astype(np.float32)
    div_term = np.exp(np.arange(0, embed_dim, 2).astype(np.float32)
                      * (-np.log(10000.0) / embed_dim))
    pe = np.zeros((seq_len, embed_dim), dtype=np.float32)
    pe[:, 0::2] = np.sin(position * div_term)
    pe[:, 1::2] = np.cos(position * div_term)
    return jnp.asarray(pe)


def init_params(key):
    ks = jax.random.split(key, 10)

    def nrm(k, shape, scale=0.05):
        return (scale * jax.random.normal(k, shape)).astype(jnp.float32)

    L, E, F, C = NUM_LAYERS, EMBED_DIM, FFN_DIM, NUM_CLASSES

    # All matrices are stored pre-transposed relative to PyTorch (W -> W.T) so the
    # contraction axis is first and the MXU RHS is lane-dense.
    in_proj_b = nrm(ks[1], (L, 3, E))        # in_proj_bias as [q; k; v] rows
    out_proj_b = nrm(ks[3], (L, 1, E))
    ffn_b2 = nrm(ks[7], (L, 1, E))
    # packed per-layer vector slab: one DMA instead of eight
    vec = jnp.concatenate([
        in_proj_b,                                # rows 0..2  (q/k/v bias)
        out_proj_b,                               # row 3      (out_proj bias)
        jnp.ones((L, 1, E), jnp.float32),         # row 4      (ln1 weight)
        jnp.zeros((L, 1, E), jnp.float32),        # row 5      (ln1 bias)
        jnp.ones((L, 1, E), jnp.float32),         # row 6      (ln2 weight)
        jnp.zeros((L, 1, E), jnp.float32),        # row 7      (ln2 bias)
        ffn_b2,                                   # row 8      (ffn linear2 bias)
    ], axis=1)                                    # (L, VEC_ROWS, E)

    return dict(
        pe=make_positional_encoding(SEQ_LEN, E),
        in_proj_wt=nrm(ks[0], (L, E, 3 * E)),     # MHA in_proj_weight.T (packed q/k/v)
        out_proj_wt=nrm(ks[2], (L, E, E)),        # out_proj.weight.T
        vec=vec,
        ffn_w1t=nrm(ks[4], (L, E, F)).astype(jnp.bfloat16),   # linear1.weight.T, bf16
        ffn_b1=nrm(ks[5], (L, 1, F)),
        ffn_w2t=nrm(ks[6], (L, F, E)).astype(jnp.bfloat16),   # linear2.weight.T, bf16
        fc_wt=nrm(ks[8], (E, C)),                 # fc.weight.T
        fc_b=nrm(ks[9], (1, C)),
    )


if __name__ == "__main__":
    key = jax.random.PRNGKey(0)
    pkey, xkey = jax.random.split(key)
    params = init_params(pkey)
    batch = 2
    x = jax.random.normal(xkey, (batch, SEQ_LEN, EMBED_DIM), dtype=jnp.float32)
    out = transformer_classifier(x, params)
    jax.block_until_ready(out)
    assert out.shape == (batch, NUM_CLASSES), out.shape
    assert bool(jnp.all(jnp.isfinite(out)))
    print("KERNEL_OK")
</pallas_src>

<mosaic_0001>
module attributes {stable_mosaic.version = 11 : i64} {
  func.func @transformer_kernel(%arg0: memref<2x8x32xf32, #tpu.memory_space<vmem>>, %arg1: memref<8x32xf32, #tpu.memory_space<vmem>>, %arg2: memref<2x32x96xf32, #tpu.memory_space<vmem>>, %arg3: memref<2x32x32xf32, #tpu.memory_space<vmem>>, %arg4: memref<2x9x32xf32, #tpu.memory_space<vmem>>, %arg5: memref<2x32x2048xbf16, #tpu.memory_space<vmem>>, %arg6: memref<2x1x2048xf32, #tpu.memory_space<vmem>>, %arg7: memref<2x2048x32xbf16, #tpu.memory_space<vmem>>, %arg8: memref<32x4xf32, #tpu.memory_space<vmem>>, %arg9: memref<1x4xf32, #tpu.memory_space<vmem>>, %arg10: memref<2x4xf32, #tpu.memory_space<vmem>>) attributes {dimension_semantics = [], scalar_prefetch = 0 : i64, scratch_operands = 0 : i64, tpu.core_type = #tpu.core_type<tc>} {
    %c0 = arith.constant 0 : index
    %c0_0 = arith.constant 0 : index
    %c0_1 = arith.constant 0 : index
    %0 = vector.load %arg0[%c0, %c0_0, %c0_1] : memref<2x8x32xf32, #tpu.memory_space<vmem>>, vector<2x8x32xf32>
    %c0_2 = arith.constant 0 : index
    %c0_3 = arith.constant 0 : index
    %1 = vector.load %arg1[%c0_2, %c0_3] : memref<8x32xf32, #tpu.memory_space<vmem>>, vector<8x32xf32>
    %2 = vector.shape_cast %1 : vector<8x32xf32> to vector<1x8x32xf32>
    %3 = vector.broadcast %2 : vector<1x8x32xf32> to vector<2x8x32xf32>
    %4 = arith.addf %0, %3 : vector<2x8x32xf32>
    %5 = vector.shape_cast %4 : vector<2x8x32xf32> to vector<16x32xf32>
    %c0_4 = arith.constant 0 : index
    %c0_5 = arith.constant 0 : index
    %c0_6 = arith.constant 0 : index
    %6 = vector.load %arg4[%c0_4, %c0_5, %c0_6] : memref<2x9x32xf32, #tpu.memory_space<vmem>>, vector<1x9x32xf32>
    %7 = vector.shape_cast %6 : vector<1x9x32xf32> to vector<9x32xf32>
    %8 = vector.extract_strided_slice %7 {offsets = [0, 0], sizes = [1, 32], strides = [1, 1]} : vector<9x32xf32> to vector<1x32xf32>
    %9 = vector.extract_strided_slice %7 {offsets = [1, 0], sizes = [1, 32], strides = [1, 1]} : vector<9x32xf32> to vector<1x32xf32>
    %10 = vector.extract_strided_slice %7 {offsets = [2, 0], sizes = [1, 32], strides = [1, 1]} : vector<9x32xf32> to vector<1x32xf32>
    %11 = vector.extract_strided_slice %7 {offsets = [3, 0], sizes = [1, 32], strides = [1, 1]} : vector<9x32xf32> to vector<1x32xf32>
    %c0_7 = arith.constant 0 : index
    %c0_8 = arith.constant 0 : index
    %c0_9 = arith.constant 0 : index
    %12 = vector.load %arg2[%c0_7, %c0_8, %c0_9] : memref<2x32x96xf32, #tpu.memory_space<vmem>>, vector<1x32x96xf32>
    %13 = vector.shape_cast %12 : vector<1x32x96xf32> to vector<32x96xf32>
    %cst = arith.constant dense<0.000000e+00> : vector<16x96xf32>
    %14 = tpu.matmul %5, %13, %cst {dimension_numbers = #tpu.dot_dimension_numbers<[1], [0], [0], [1], [0, 0, 1, 1], [], []>} : vector<16x32xf32>, vector<32x96xf32>, vector<16x96xf32> -> vector<16x96xf32>
    %15 = vector.shape_cast %14 : vector<16x96xf32> to vector<2x8x96xf32>
    %16 = vector.extract_strided_slice %15 {offsets = [0, 0, 0], sizes = [2, 8, 32], strides = [1, 1, 1]} : vector<2x8x96xf32> to vector<2x8x32xf32>
    %17 = vector.shape_cast %8 : vector<1x32xf32> to vector<1x1x32xf32>
    %18 = vector.broadcast %17 : vector<1x1x32xf32> to vector<2x8x32xf32>
    %19 = arith.addf %16, %18 : vector<2x8x32xf32>
    %20 = vector.extract_strided_slice %15 {offsets = [0, 0, 32], sizes = [2, 8, 32], strides = [1, 1, 1]} : vector<2x8x96xf32> to vector<2x8x32xf32>
    %21 = vector.shape_cast %9 : vector<1x32xf32> to vector<1x1x32xf32>
    %22 = vector.broadcast %21 : vector<1x1x32xf32> to vector<2x8x32xf32>
    %23 = arith.addf %20, %22 : vector<2x8x32xf32>
    %24 = vector.extract_strided_slice %15 {offsets = [0, 0, 64], sizes = [2, 8, 32], strides = [1, 1, 1]} : vector<2x8x96xf32> to vector<2x8x32xf32>
    %25 = vector.shape_cast %10 : vector<1x32xf32> to vector<1x1x32xf32>
    %26 = vector.broadcast %25 : vector<1x1x32xf32> to vector<2x8x32xf32>
    %27 = arith.addf %24, %26 : vector<2x8x32xf32>
    %28 = vector.extract_strided_slice %19 {offsets = [0, 0, 0], sizes = [2, 8, 16], strides = [1, 1, 1]} : vector<2x8x32xf32> to vector<2x8x16xf32>
    %29 = vector.extract_strided_slice %19 {offsets = [0, 0, 16], sizes = [2, 8, 16], strides = [1, 1, 1]} : vector<2x8x32xf32> to vector<2x8x16xf32>
    %30 = tpu.concatenate %28, %29 in 0 : vector<2x8x16xf32>, vector<2x8x16xf32> -> vector<4x8x16xf32>
    %31 = vector.extract_strided_slice %23 {offsets = [0, 0, 0], sizes = [2, 8, 16], strides = [1, 1, 1]} : vector<2x8x32xf32> to vector<2x8x16xf32>
    %32 = vector.extract_strided_slice %23 {offsets = [0, 0, 16], sizes = [2, 8, 16], strides = [1, 1, 1]} : vector<2x8x32xf32> to vector<2x8x16xf32>
    %33 = tpu.concatenate %31, %32 in 0 : vector<2x8x16xf32>, vector<2x8x16xf32> -> vector<4x8x16xf32>
    %34 = vector.extract_strided_slice %27 {offsets = [0, 0, 0], sizes = [2, 8, 16], strides = [1, 1, 1]} : vector<2x8x32xf32> to vector<2x8x16xf32>
    %35 = vector.extract_strided_slice %27 {offsets = [0, 0, 16], sizes = [2, 8, 16], strides = [1, 1, 1]} : vector<2x8x32xf32> to vector<2x8x16xf32>
    %36 = tpu.concatenate %34, %35 in 0 : vector<2x8x16xf32>, vector<2x8x16xf32> -> vector<4x8x16xf32>
    "tpu.trace_start"() <{level = 10 : i32, message = "bsd,btd->bst"}> : () -> ()
    %cst_10 = arith.constant dense<0.000000e+00> : vector<4x8x8xf32>
    %37 = tpu.matmul %30, %33, %cst_10 {dimension_numbers = #tpu.dot_dimension_numbers<[2], [2], [1], [1], [0, 0, 0, 1, 1, 1], [0], [0]>} : vector<4x8x16xf32>, vector<4x8x16xf32>, vector<4x8x8xf32> -> vector<4x8x8xf32>
    "tpu.trace_stop"() : () -> ()
    %cst_11 = arith.constant 2.500000e-01 : f32
    %38 = vector.broadcast %cst_11 : f32 to vector<4x8x8xf32>
    %39 = arith.mulf %37, %38 : vector<4x8x8xf32>
    %cst_12 = arith.constant dense<0xFF800000> : vector<4x8xf32>
    %40 = vector.multi_reduction <maximumf>, %39, %cst_12 [2] : vector<4x8x8xf32> to vector<4x8xf32>
    %41 = vector.shape_cast %40 : vector<4x8xf32> to vector<4x8x1xf32>
    %42 = vector.broadcast %41 : vector<4x8x1xf32> to vector<4x8x8xf32>
    %43 = arith.subf %39, %42 : vector<4x8x8xf32>
    %44 = math.exp %43 : vector<4x8x8xf32>
    %cst_13 = arith.constant dense<0.000000e+00> : vector<4x8xf32>
    %45 = vector.multi_reduction <add>, %44, %cst_13 [2] : vector<4x8x8xf32> to vector<4x8xf32>
    %46 = vector.shape_cast %45 : vector<4x8xf32> to vector<4x8x1xf32>
    %47 = tpu.reciprocal %46 {approx = true} : vector<4x8x1xf32> -> vector<4x8x1xf32>
    %48 = vector.broadcast %47 : vector<4x8x1xf32> to vector<4x8x8xf32>
    %49 = arith.mulf %44, %48 : vector<4x8x8xf32>
    "tpu.trace_start"() <{level = 10 : i32, message = "bst,btd->bsd"}> : () -> ()
    %cst_14 = arith.constant dense<0.000000e+00> : vector<4x8x16xf32>
    %50 = tpu.matmul %49, %36, %cst_14 {dimension_numbers = #tpu.dot_dimension_numbers<[2], [1], [1], [2], [0, 0, 0, 1, 1, 2], [0], [0]>} : vector<4x8x8xf32>, vector<4x8x16xf32>, vector<4x8x16xf32> -> vector<4x8x16xf32>
    "tpu.trace_stop"() : () -> ()
    %51 = vector.extract_strided_slice %50 {offsets = [0, 0, 0], sizes = [2, 8, 16], strides = [1, 1, 1]} : vector<4x8x16xf32> to vector<2x8x16xf32>
    %52 = vector.extract_strided_slice %50 {offsets = [2, 0, 0], sizes = [2, 8, 16], strides = [1, 1, 1]} : vector<4x8x16xf32> to vector<2x8x16xf32>
    %53 = tpu.concatenate %51, %52 in 2 : vector<2x8x16xf32>, vector<2x8x16xf32> -> vector<2x8x32xf32>
    %54 = vector.shape_cast %53 : vector<2x8x32xf32> to vector<16x32xf32>
    %c0_15 = arith.constant 0 : index
    %c0_16 = arith.constant 0 : index
    %c0_17 = arith.constant 0 : index
    %55 = vector.load %arg3[%c0_15, %c0_16, %c0_17] : memref<2x32x32xf32, #tpu.memory_space<vmem>>, vector<1x32x32xf32>
    %56 = vector.shape_cast %55 : vector<1x32x32xf32> to vector<32x32xf32>
    %cst_18 = arith.constant dense<0.000000e+00> : vector<16x32xf32>
    %57 = tpu.matmul %54, %56, %cst_18 {dimension_numbers = #tpu.dot_dimension_numbers<[1], [0], [0], [1], [0, 0, 1, 1], [], []>} : vector<16x32xf32>, vector<32x32xf32>, vector<16x32xf32> -> vector<16x32xf32>
    %58 = vector.broadcast %11 : vector<1x32xf32> to vector<16x32xf32>
    %59 = arith.addf %57, %58 : vector<16x32xf32>
    %60 = arith.addf %5, %59 : vector<16x32xf32>
    %61 = vector.extract_strided_slice %7 {offsets = [4, 0], sizes = [1, 32], strides = [1, 1]} : vector<9x32xf32> to vector<1x32xf32>
    %62 = vector.extract_strided_slice %7 {offsets = [5, 0], sizes = [1, 32], strides = [1, 1]} : vector<9x32xf32> to vector<1x32xf32>
    %cst_19 = arith.constant dense<0.000000e+00> : vector<16xf32>
    %63 = vector.multi_reduction <add>, %60, %cst_19 [1] : vector<16x32xf32> to vector<16xf32>
    %64 = vector.shape_cast %63 : vector<16xf32> to vector<16x1xf32>
    %cst_20 = arith.constant 3.200000e+01 : f32
    %65 = vector.broadcast %cst_20 : f32 to vector<16x1xf32>
    %66 = arith.divf %64, %65 : vector<16x1xf32>
    %67 = vector.broadcast %66 : vector<16x1xf32> to vector<16x32xf32>
    %68 = arith.subf %60, %67 : vector<16x32xf32>
    %69 = arith.mulf %68, %68 : vector<16x32xf32>
    %cst_21 = arith.constant dense<0.000000e+00> : vector<16xf32>
    %70 = vector.multi_reduction <add>, %69, %cst_21 [1] : vector<16x32xf32> to vector<16xf32>
    %71 = vector.shape_cast %70 : vector<16xf32> to vector<16x1xf32>
    %cst_22 = arith.constant 3.200000e+01 : f32
    %72 = vector.broadcast %cst_22 : f32 to vector<16x1xf32>
    %73 = arith.divf %71, %72 : vector<16x1xf32>
    %74 = vector.broadcast %66 : vector<16x1xf32> to vector<16x32xf32>
    %75 = arith.subf %60, %74 : vector<16x32xf32>
    %cst_23 = arith.constant 9.99999974E-6 : f32
    %76 = vector.broadcast %cst_23 : f32 to vector<16x1xf32>
    %77 = arith.addf %73, %76 : vector<16x1xf32>
    %78 = math.rsqrt %77 : vector<16x1xf32>
    %79 = vector.broadcast %78 : vector<16x1xf32> to vector<16x32xf32>
    %80 = arith.mulf %75, %79 : vector<16x32xf32>
    %81 = vector.broadcast %61 : vector<1x32xf32> to vector<16x32xf32>
    %82 = arith.mulf %80, %81 : vector<16x32xf32>
    %83 = vector.broadcast %62 : vector<1x32xf32> to vector<16x32xf32>
    %84 = arith.addf %82, %83 : vector<16x32xf32>
    %85 = arith.truncf %84 : vector<16x32xf32> to vector<16x32xbf16>
    %cst_24 = arith.constant 0.000000e+00 : f32
    %86 = vector.broadcast %cst_24 : f32 to vector<16x32xf32>
    %c0_25 = arith.constant 0 : index
    %c0_26 = arith.constant 0 : index
    %c0_27 = arith.constant 0 : index
    %87 = vector.load %arg5[%c0_25, %c0_26, %c0_27] : memref<2x32x2048xbf16, #tpu.memory_space<vmem>>, vector<1x32x1024xbf16>
    %88 = vector.shape_cast %87 : vector<1x32x1024xbf16> to vector<32x1024xbf16>
    %cst_28 = arith.constant dense<0.000000e+00> : vector<16x1024xf32>
    %89 = tpu.matmul %85, %88, %cst_28 {dimension_numbers = #tpu.dot_dimension_numbers<[1], [0], [0], [1], [0, 0, 1, 1], [], []>} : vector<16x32xbf16>, vector<32x1024xbf16>, vector<16x1024xf32> -> vector<16x1024xf32>
    %c0_29 = arith.constant 0 : index
    %c0_30 = arith.constant 0 : index
    %c0_31 = arith.constant 0 : index
    %90 = vector.load %arg6[%c0_29, %c0_30, %c0_31] : memref<2x1x2048xf32, #tpu.memory_space<vmem>>, vector<1x1x1024xf32>
    %91 = vector.shape_cast %90 : vector<1x1x1024xf32> to vector<1x1024xf32>
    %92 = vector.broadcast %91 : vector<1x1024xf32> to vector<16x1024xf32>
    %93 = arith.addf %89, %92 : vector<16x1024xf32>
    %cst_32 = arith.constant 0.000000e+00 : f32
    %94 = vector.broadcast %cst_32 : f32 to vector<16x1024xf32>
    %95 = arith.maximumf %93, %94 : vector<16x1024xf32>
    %96 = arith.truncf %95 : vector<16x1024xf32> to vector<16x1024xbf16>
    %c0_33 = arith.constant 0 : index
    %c0_34 = arith.constant 0 : index
    %c0_35 = arith.constant 0 : index
    %97 = vector.load %arg7[%c0_33, %c0_34, %c0_35] : memref<2x2048x32xbf16, #tpu.memory_space<vmem>>, vector<1x1024x32xbf16>
    %98 = vector.shape_cast %97 : vector<1x1024x32xbf16> to vector<1024x32xbf16>
    %cst_36 = arith.constant dense<0.000000e+00> : vector<16x32xf32>
    %99 = tpu.matmul %96, %98, %cst_36 {dimension_numbers = #tpu.dot_dimension_numbers<[1], [0], [0], [1], [0, 0, 1, 1], [], []>} : vector<16x1024xbf16>, vector<1024x32xbf16>, vector<16x32xf32> -> vector<16x32xf32>
    %100 = arith.addf %86, %99 : vector<16x32xf32>
    %c0_37 = arith.constant 0 : index
    %c0_38 = arith.constant 0 : index
    %c1024 = arith.constant 1024 : index
    %101 = vector.load %arg5[%c0_37, %c0_38, %c1024] : memref<2x32x2048xbf16, #tpu.memory_space<vmem>>, vector<1x32x1024xbf16>
    %102 = vector.shape_cast %101 : vector<1x32x1024xbf16> to vector<32x1024xbf16>
    %cst_39 = arith.constant dense<0.000000e+00> : vector<16x1024xf32>
    %103 = tpu.matmul %85, %102, %cst_39 {dimension_numbers = #tpu.dot_dimension_numbers<[1], [0], [0], [1], [0, 0, 1, 1], [], []>} : vector<16x32xbf16>, vector<32x1024xbf16>, vector<16x1024xf32> -> vector<16x1024xf32>
    %c0_40 = arith.constant 0 : index
    %c0_41 = arith.constant 0 : index
    %c1024_42 = arith.constant 1024 : index
    %104 = vector.load %arg6[%c0_40, %c0_41, %c1024_42] : memref<2x1x2048xf32, #tpu.memory_space<vmem>>, vector<1x1x1024xf32>
    %105 = vector.shape_cast %104 : vector<1x1x1024xf32> to vector<1x1024xf32>
    %106 = vector.broadcast %105 : vector<1x1024xf32> to vector<16x1024xf32>
    %107 = arith.addf %103, %106 : vector<16x1024xf32>
    %cst_43 = arith.constant 0.000000e+00 : f32
    %108 = vector.broadcast %cst_43 : f32 to vector<16x1024xf32>
    %109 = arith.maximumf %107, %108 : vector<16x1024xf32>
    %110 = arith.truncf %109 : vector<16x1024xf32> to vector<16x1024xbf16>
    %c0_44 = arith.constant 0 : index
    %c1024_45 = arith.constant 1024 : index
    %c0_46 = arith.constant 0 : index
    %111 = vector.load %arg7[%c0_44, %c1024_45, %c0_46] : memref<2x2048x32xbf16, #tpu.memory_space<vmem>>, vector<1x1024x32xbf16>
    %112 = vector.shape_cast %111 : vector<1x1024x32xbf16> to vector<1024x32xbf16>
    %cst_47 = arith.constant dense<0.000000e+00> : vector<16x32xf32>
    %113 = tpu.matmul %110, %112, %cst_47 {dimension_numbers = #tpu.dot_dimension_numbers<[1], [0], [0], [1], [0, 0, 1, 1], [], []>} : vector<16x1024xbf16>, vector<1024x32xbf16>, vector<16x32xf32> -> vector<16x32xf32>
    %114 = arith.addf %100, %113 : vector<16x32xf32>
    %115 = vector.extract_strided_slice %7 {offsets = [8, 0], sizes = [1, 32], strides = [1, 1]} : vector<9x32xf32> to vector<1x32xf32>
    %116 = vector.broadcast %115 : vector<1x32xf32> to vector<16x32xf32>
    %117 = arith.addf %114, %116 : vector<16x32xf32>
    %118 = arith.addf %84, %117 : vector<16x32xf32>
    %119 = vector.extract_strided_slice %7 {offsets = [6, 0], sizes = [1, 32], strides = [1, 1]} : vector<9x32xf32> to vector<1x32xf32>
    %120 = vector.extract_strided_slice %7 {offsets = [7, 0], sizes = [1, 32], strides = [1, 1]} : vector<9x32xf32> to vector<1x32xf32>
    %cst_48 = arith.constant dense<0.000000e+00> : vector<16xf32>
    %121 = vector.multi_reduction <add>, %118, %cst_48 [1] : vector<16x32xf32> to vector<16xf32>
    %122 = vector.shape_cast %121 : vector<16xf32> to vector<16x1xf32>
    %cst_49 = arith.constant 3.200000e+01 : f32
    %123 = vector.broadcast %cst_49 : f32 to vector<16x1xf32>
    %124 = arith.divf %122, %123 : vector<16x1xf32>
    %125 = vector.broadcast %124 : vector<16x1xf32> to vector<16x32xf32>
    %126 = arith.subf %118, %125 : vector<16x32xf32>
    %127 = arith.mulf %126, %126 : vector<16x32xf32>
    %cst_50 = arith.constant dense<0.000000e+00> : vector<16xf32>
    %128 = vector.multi_reduction <add>, %127, %cst_50 [1] : vector<16x32xf32> to vector<16xf32>
    %129 = vector.shape_cast %128 : vector<16xf32> to vector<16x1xf32>
    %cst_51 = arith.constant 3.200000e+01 : f32
    %130 = vector.broadcast %cst_51 : f32 to vector<16x1xf32>
    %131 = arith.divf %129, %130 : vector<16x1xf32>
    %132 = vector.broadcast %124 : vector<16x1xf32> to vector<16x32xf32>
    %133 = arith.subf %118, %132 : vector<16x32xf32>
    %cst_52 = arith.constant 9.99999974E-6 : f32
    %134 = vector.broadcast %cst_52 : f32 to vector<16x1xf32>
    %135 = arith.addf %131, %134 : vector<16x1xf32>
    %136 = math.rsqrt %135 : vector<16x1xf32>
    %137 = vector.broadcast %136 : vector<16x1xf32> to vector<16x32xf32>
    %138 = arith.mulf %133, %137 : vector<16x32xf32>
    %139 = vector.broadcast %119 : vector<1x32xf32> to vector<16x32xf32>
    %140 = arith.mulf %138, %139 : vector<16x32xf32>
    %141 = vector.broadcast %120 : vector<1x32xf32> to vector<16x32xf32>
    %142 = arith.addf %140, %141 : vector<16x32xf32>
    %c1 = arith.constant 1 : index
    %c0_53 = arith.constant 0 : index
    %c0_54 = arith.constant 0 : index
    %143 = vector.load %arg4[%c1, %c0_53, %c0_54] : memref<2x9x32xf32, #tpu.memory_space<vmem>>, vector<1x9x32xf32>
    %144 = vector.shape_cast %143 : vector<1x9x32xf32> to vector<9x32xf32>
    %145 = vector.extract_strided_slice %144 {offsets = [0, 0], sizes = [1, 32], strides = [1, 1]} : vector<9x32xf32> to vector<1x32xf32>
    %146 = vector.extract_strided_slice %144 {offsets = [1, 0], sizes = [1, 32], strides = [1, 1]} : vector<9x32xf32> to vector<1x32xf32>
    %147 = vector.extract_strided_slice %144 {offsets = [2, 0], sizes = [1, 32], strides = [1, 1]} : vector<9x32xf32> to vector<1x32xf32>
    %148 = vector.extract_strided_slice %144 {offsets = [3, 0], sizes = [1, 32], strides = [1, 1]} : vector<9x32xf32> to vector<1x32xf32>
    %c1_55 = arith.constant 1 : index
    %c0_56 = arith.constant 0 : index
    %c0_57 = arith.constant 0 : index
    %149 = vector.load %arg2[%c1_55, %c0_56, %c0_57] : memref<2x32x96xf32, #tpu.memory_space<vmem>>, vector<1x32x96xf32>
    %150 = vector.shape_cast %149 : vector<1x32x96xf32> to vector<32x96xf32>
    %cst_58 = arith.constant dense<0.000000e+00> : vector<16x96xf32>
    %151 = tpu.matmul %142, %150, %cst_58 {dimension_numbers = #tpu.dot_dimension_numbers<[1], [0], [0], [1], [0, 0, 1, 1], [], []>} : vector<16x32xf32>, vector<32x96xf32>, vector<16x96xf32> -> vector<16x96xf32>
    %152 = vector.shape_cast %151 : vector<16x96xf32> to vector<2x8x96xf32>
    %153 = vector.extract_strided_slice %152 {offsets = [0, 0, 0], sizes = [2, 8, 32], strides = [1, 1, 1]} : vector<2x8x96xf32> to vector<2x8x32xf32>
    %154 = vector.shape_cast %145 : vector<1x32xf32> to vector<1x1x32xf32>
    %155 = vector.broadcast %154 : vector<1x1x32xf32> to vector<2x8x32xf32>
    %156 = arith.addf %153, %155 : vector<2x8x32xf32>
    %157 = vector.extract_strided_slice %152 {offsets = [0, 0, 32], sizes = [2, 8, 32], strides = [1, 1, 1]} : vector<2x8x96xf32> to vector<2x8x32xf32>
    %158 = vector.shape_cast %146 : vector<1x32xf32> to vector<1x1x32xf32>
    %159 = vector.broadcast %158 : vector<1x1x32xf32> to vector<2x8x32xf32>
    %160 = arith.addf %157, %159 : vector<2x8x32xf32>
    %161 = vector.extract_strided_slice %152 {offsets = [0, 0, 64], sizes = [2, 8, 32], strides = [1, 1, 1]} : vector<2x8x96xf32> to vector<2x8x32xf32>
    %162 = vector.shape_cast %147 : vector<1x32xf32> to vector<1x1x32xf32>
    %163 = vector.broadcast %162 : vector<1x1x32xf32> to vector<2x8x32xf32>
    %164 = arith.addf %161, %163 : vector<2x8x32xf32>
    %165 = vector.extract_strided_slice %156 {offsets = [0, 0, 0], sizes = [2, 8, 16], strides = [1, 1, 1]} : vector<2x8x32xf32> to vector<2x8x16xf32>
    %166 = vector.extract_strided_slice %156 {offsets = [0, 0, 16], sizes = [2, 8, 16], strides = [1, 1, 1]} : vector<2x8x32xf32> to vector<2x8x16xf32>
    %167 = tpu.concatenate %165, %166 in 0 : vector<2x8x16xf32>, vector<2x8x16xf32> -> vector<4x8x16xf32>
    %168 = vector.extract_strided_slice %160 {offsets = [0, 0, 0], sizes = [2, 8, 16], strides = [1, 1, 1]} : vector<2x8x32xf32> to vector<2x8x16xf32>
    %169 = vector.extract_strided_slice %160 {offsets = [0, 0, 16], sizes = [2, 8, 16], strides = [1, 1, 1]} : vector<2x8x32xf32> to vector<2x8x16xf32>
    %170 = tpu.concatenate %168, %169 in 0 : vector<2x8x16xf32>, vector<2x8x16xf32> -> vector<4x8x16xf32>
    %171 = vector.extract_strided_slice %164 {offsets = [0, 0, 0], sizes = [2, 8, 16], strides = [1, 1, 1]} : vector<2x8x32xf32> to vector<2x8x16xf32>
    %172 = vector.extract_strided_slice %164 {offsets = [0, 0, 16], sizes = [2, 8, 16], strides = [1, 1, 1]} : vector<2x8x32xf32> to vector<2x8x16xf32>
    %173 = tpu.concatenate %171, %172 in 0 : vector<2x8x16xf32>, vector<2x8x16xf32> -> vector<4x8x16xf32>
    "tpu.trace_start"() <{level = 10 : i32, message = "bsd,btd->bst"}> : () -> ()
    %cst_59 = arith.constant dense<0.000000e+00> : vector<4x8x8xf32>
    %174 = tpu.matmul %167, %170, %cst_59 {dimension_numbers = #tpu.dot_dimension_numbers<[2], [2], [1], [1], [0, 0, 0, 1, 1, 1], [0], [0]>} : vector<4x8x16xf32>, vector<4x8x16xf32>, vector<4x8x8xf32> -> vector<4x8x8xf32>
    "tpu.trace_stop"() : () -> ()
    %cst_60 = arith.constant 2.500000e-01 : f32
    %175 = vector.broadcast %cst_60 : f32 to vector<4x8x8xf32>
    %176 = arith.mulf %174, %175 : vector<4x8x8xf32>
    %cst_61 = arith.constant dense<0xFF800000> : vector<4x8xf32>
    %177 = vector.multi_reduction <maximumf>, %176, %cst_61 [2] : vector<4x8x8xf32> to vector<4x8xf32>
    %178 = vector.shape_cast %177 : vector<4x8xf32> to vector<4x8x1xf32>
    %179 = vector.broadcast %178 : vector<4x8x1xf32> to vector<4x8x8xf32>
    %180 = arith.subf %176, %179 : vector<4x8x8xf32>
    %181 = math.exp %180 : vector<4x8x8xf32>
    %cst_62 = arith.constant dense<0.000000e+00> : vector<4x8xf32>
    %182 = vector.multi_reduction <add>, %181, %cst_62 [2] : vector<4x8x8xf32> to vector<4x8xf32>
    %183 = vector.shape_cast %182 : vector<4x8xf32> to vector<4x8x1xf32>
    %184 = tpu.reciprocal %183 {approx = true} : vector<4x8x1xf32> -> vector<4x8x1xf32>
    %185 = vector.broadcast %184 : vector<4x8x1xf32> to vector<4x8x8xf32>
    %186 = arith.mulf %181, %185 : vector<4x8x8xf32>
    "tpu.trace_start"() <{level = 10 : i32, message = "bst,btd->bsd"}> : () -> ()
    %cst_63 = arith.constant dense<0.000000e+00> : vector<4x8x16xf32>
    %187 = tpu.matmul %186, %173, %cst_63 {dimension_numbers = #tpu.dot_dimension_numbers<[2], [1], [1], [2], [0, 0, 0, 1, 1, 2], [0], [0]>} : vector<4x8x8xf32>, vector<4x8x16xf32>, vector<4x8x16xf32> -> vector<4x8x16xf32>
    "tpu.trace_stop"() : () -> ()
    %188 = vector.extract_strided_slice %187 {offsets = [0, 0, 0], sizes = [2, 8, 16], strides = [1, 1, 1]} : vector<4x8x16xf32> to vector<2x8x16xf32>
    %189 = vector.extract_strided_slice %187 {offsets = [2, 0, 0], sizes = [2, 8, 16], strides = [1, 1, 1]} : vector<4x8x16xf32> to vector<2x8x16xf32>
    %190 = tpu.concatenate %188, %189 in 2 : vector<2x8x16xf32>, vector<2x8x16xf32> -> vector<2x8x32xf32>
    %191 = vector.shape_cast %190 : vector<2x8x32xf32> to vector<16x32xf32>
    %c1_64 = arith.constant 1 : index
    %c0_65 = arith.constant 0 : index
    %c0_66 = arith.constant 0 : index
    %192 = vector.load %arg3[%c1_64, %c0_65, %c0_66] : memref<2x32x32xf32, #tpu.memory_space<vmem>>, vector<1x32x32xf32>
    %193 = vector.shape_cast %192 : vector<1x32x32xf32> to vector<32x32xf32>
    %cst_67 = arith.constant dense<0.000000e+00> : vector<16x32xf32>
    %194 = tpu.matmul %191, %193, %cst_67 {dimension_numbers = #tpu.dot_dimension_numbers<[1], [0], [0], [1], [0, 0, 1, 1], [], []>} : vector<16x32xf32>, vector<32x32xf32>, vector<16x32xf32> -> vector<16x32xf32>
    %195 = vector.broadcast %148 : vector<1x32xf32> to vector<16x32xf32>
    %196 = arith.addf %194, %195 : vector<16x32xf32>
    %197 = arith.addf %142, %196 : vector<16x32xf32>
    %198 = vector.extract_strided_slice %144 {offsets = [4, 0], sizes = [1, 32], strides = [1, 1]} : vector<9x32xf32> to vector<1x32xf32>
    %199 = vector.extract_strided_slice %144 {offsets = [5, 0], sizes = [1, 32], strides = [1, 1]} : vector<9x32xf32> to vector<1x32xf32>
    %cst_68 = arith.constant dense<0.000000e+00> : vector<16xf32>
    %200 = vector.multi_reduction <add>, %197, %cst_68 [1] : vector<16x32xf32> to vector<16xf32>
    %201 = vector.shape_cast %200 : vector<16xf32> to vector<16x1xf32>
    %cst_69 = arith.constant 3.200000e+01 : f32
    %202 = vector.broadcast %cst_69 : f32 to vector<16x1xf32>
    %203 = arith.divf %201, %202 : vector<16x1xf32>
    %204 = vector.broadcast %203 : vector<16x1xf32> to vector<16x32xf32>
    %205 = arith.subf %197, %204 : vector<16x32xf32>
    %206 = arith.mulf %205, %205 : vector<16x32xf32>
    %cst_70 = arith.constant dense<0.000000e+00> : vector<16xf32>
    %207 = vector.multi_reduction <add>, %206, %cst_70 [1] : vector<16x32xf32> to vector<16xf32>
    %208 = vector.shape_cast %207 : vector<16xf32> to vector<16x1xf32>
    %cst_71 = arith.constant 3.200000e+01 : f32
    %209 = vector.broadcast %cst_71 : f32 to vector<16x1xf32>
    %210 = arith.divf %208, %209 : vector<16x1xf32>
    %211 = vector.broadcast %203 : vector<16x1xf32> to vector<16x32xf32>
    %212 = arith.subf %197, %211 : vector<16x32xf32>
    %cst_72 = arith.constant 9.99999974E-6 : f32
    %213 = vector.broadcast %cst_72 : f32 to vector<16x1xf32>
    %214 = arith.addf %210, %213 : vector<16x1xf32>
    %215 = math.rsqrt %214 : vector<16x1xf32>
    %216 = vector.broadcast %215 : vector<16x1xf32> to vector<16x32xf32>
    %217 = arith.mulf %212, %216 : vector<16x32xf32>
    %218 = vector.broadcast %198 : vector<1x32xf32> to vector<16x32xf32>
    %219 = arith.mulf %217, %218 : vector<16x32xf32>
    %220 = vector.broadcast %199 : vector<1x32xf32> to vector<16x32xf32>
    %221 = arith.addf %219, %220 : vector<16x32xf32>
    %222 = arith.truncf %221 : vector<16x32xf32> to vector<16x32xbf16>
    %cst_73 = arith.constant 0.000000e+00 : f32
    %223 = vector.broadcast %cst_73 : f32 to vector<16x32xf32>
    %c1_74 = arith.constant 1 : index
    %c0_75 = arith.constant 0 : index
    %c0_76 = arith.constant 0 : index
    %224 = vector.load %arg5[%c1_74, %c0_75, %c0_76] : memref<2x32x2048xbf16, #tpu.memory_space<vmem>>, vector<1x32x1024xbf16>
    %225 = vector.shape_cast %224 : vector<1x32x1024xbf16> to vector<32x1024xbf16>
    %cst_77 = arith.constant dense<0.000000e+00> : vector<16x1024xf32>
    %226 = tpu.matmul %222, %225, %cst_77 {dimension_numbers = #tpu.dot_dimension_numbers<[1], [0], [0], [1], [0, 0, 1, 1], [], []>} : vector<16x32xbf16>, vector<32x1024xbf16>, vector<16x1024xf32> -> vector<16x1024xf32>
    %c1_78 = arith.constant 1 : index
    %c0_79 = arith.constant 0 : index
    %c0_80 = arith.constant 0 : index
    %227 = vector.load %arg6[%c1_78, %c0_79, %c0_80] : memref<2x1x2048xf32, #tpu.memory_space<vmem>>, vector<1x1x1024xf32>
    %228 = vector.shape_cast %227 : vector<1x1x1024xf32> to vector<1x1024xf32>
    %229 = vector.broadcast %228 : vector<1x1024xf32> to vector<16x1024xf32>
    %230 = arith.addf %226, %229 : vector<16x1024xf32>
    %cst_81 = arith.constant 0.000000e+00 : f32
    %231 = vector.broadcast %cst_81 : f32 to vector<16x1024xf32>
    %232 = arith.maximumf %230, %231 : vector<16x1024xf32>
    %233 = arith.truncf %232 : vector<16x1024xf32> to vector<16x1024xbf16>
    %c1_82 = arith.constant 1 : index
    %c0_83 = arith.constant 0 : index
    %c0_84 = arith.constant 0 : index
    %234 = vector.load %arg7[%c1_82, %c0_83, %c0_84] : memref<2x2048x32xbf16, #tpu.memory_space<vmem>>, vector<1x1024x32xbf16>
    %235 = vector.shape_cast %234 : vector<1x1024x32xbf16> to vector<1024x32xbf16>
    %cst_85 = arith.constant dense<0.000000e+00> : vector<16x32xf32>
    %236 = tpu.matmul %233, %235, %cst_85 {dimension_numbers = #tpu.dot_dimension_numbers<[1], [0], [0], [1], [0, 0, 1, 1], [], []>} : vector<16x1024xbf16>, vector<1024x32xbf16>, vector<16x32xf32> -> vector<16x32xf32>
    %237 = arith.addf %223, %236 : vector<16x32xf32>
    %c1_86 = arith.constant 1 : index
    %c0_87 = arith.constant 0 : index
    %c1024_88 = arith.constant 1024 : index
    %238 = vector.load %arg5[%c1_86, %c0_87, %c1024_88] : memref<2x32x2048xbf16, #tpu.memory_space<vmem>>, vector<1x32x1024xbf16>
    %239 = vector.shape_cast %238 : vector<1x32x1024xbf16> to vector<32x1024xbf16>
    %cst_89 = arith.constant dense<0.000000e+00> : vector<16x1024xf32>
    %240 = tpu.matmul %222, %239, %cst_89 {dimension_numbers = #tpu.dot_dimension_numbers<[1], [0], [0], [1], [0, 0, 1, 1], [], []>} : vector<16x32xbf16>, vector<32x1024xbf16>, vector<16x1024xf32> -> vector<16x1024xf32>
    %c1_90 = arith.constant 1 : index
    %c0_91 = arith.constant 0 : index
    %c1024_92 = arith.constant 1024 : index
    %241 = vector.load %arg6[%c1_90, %c0_91, %c1024_92] : memref<2x1x2048xf32, #tpu.memory_space<vmem>>, vector<1x1x1024xf32>
    %242 = vector.shape_cast %241 : vector<1x1x1024xf32> to vector<1x1024xf32>
    %243 = vector.broadcast %242 : vector<1x1024xf32> to vector<16x1024xf32>
    %244 = arith.addf %240, %243 : vector<16x1024xf32>
    %cst_93 = arith.constant 0.000000e+00 : f32
    %245 = vector.broadcast %cst_93 : f32 to vector<16x1024xf32>
    %246 = arith.maximumf %244, %245 : vector<16x1024xf32>
    %247 = arith.truncf %246 : vector<16x1024xf32> to vector<16x1024xbf16>
    %c1_94 = arith.constant 1 : index
    %c1024_95 = arith.constant 1024 : index
    %c0_96 = arith.constant 0 : index
    %248 = vector.load %arg7[%c1_94, %c1024_95, %c0_96] : memref<2x2048x32xbf16, #tpu.memory_space<vmem>>, vector<1x1024x32xbf16>
    %249 = vector.shape_cast %248 : vector<1x1024x32xbf16> to vector<1024x32xbf16>
    %cst_97 = arith.constant dense<0.000000e+00> : vector<16x32xf32>
    %250 = tpu.matmul %247, %249, %cst_97 {dimension_numbers = #tpu.dot_dimension_numbers<[1], [0], [0], [1], [0, 0, 1, 1], [], []>} : vector<16x1024xbf16>, vector<1024x32xbf16>, vector<16x32xf32> -> vector<16x32xf32>
    %251 = arith.addf %237, %250 : vector<16x32xf32>
    %252 = vector.extract_strided_slice %144 {offsets = [8, 0], sizes = [1, 32], strides = [1, 1]} : vector<9x32xf32> to vector<1x32xf32>
    %253 = vector.broadcast %252 : vector<1x32xf32> to vector<16x32xf32>
    %254 = arith.addf %251, %253 : vector<16x32xf32>
    %255 = arith.addf %221, %254 : vector<16x32xf32>
    %256 = vector.extract_strided_slice %144 {offsets = [6, 0], sizes = [1, 32], strides = [1, 1]} : vector<9x32xf32> to vector<1x32xf32>
    %257 = vector.extract_strided_slice %144 {offsets = [7, 0], sizes = [1, 32], strides = [1, 1]} : vector<9x32xf32> to vector<1x32xf32>
    %cst_98 = arith.constant dense<0.000000e+00> : vector<16xf32>
    %258 = vector.multi_reduction <add>, %255, %cst_98 [1] : vector<16x32xf32> to vector<16xf32>
    %259 = vector.shape_cast %258 : vector<16xf32> to vector<16x1xf32>
    %cst_99 = arith.constant 3.200000e+01 : f32
    %260 = vector.broadcast %cst_99 : f32 to vector<16x1xf32>
    %261 = arith.divf %259, %260 : vector<16x1xf32>
    %262 = vector.broadcast %261 : vector<16x1xf32> to vector<16x32xf32>
    %263 = arith.subf %255, %262 : vector<16x32xf32>
    %264 = arith.mulf %263, %263 : vector<16x32xf32>
    %cst_100 = arith.constant dense<0.000000e+00> : vector<16xf32>
    %265 = vector.multi_reduction <add>, %264, %cst_100 [1] : vector<16x32xf32> to vector<16xf32>
    %266 = vector.shape_cast %265 : vector<16xf32> to vector<16x1xf32>
    %cst_101 = arith.constant 3.200000e+01 : f32
    %267 = vector.broadcast %cst_101 : f32 to vector<16x1xf32>
    %268 = arith.divf %266, %267 : vector<16x1xf32>
    %269 = vector.broadcast %261 : vector<16x1xf32> to vector<16x32xf32>
    %270 = arith.subf %255, %269 : vector<16x32xf32>
    %cst_102 = arith.constant 9.99999974E-6 : f32
    %271 = vector.broadcast %cst_102 : f32 to vector<16x1xf32>
    %272 = arith.addf %268, %271 : vector<16x1xf32>
    %273 = math.rsqrt %272 : vector<16x1xf32>
    %274 = vector.broadcast %273 : vector<16x1xf32> to vector<16x32xf32>
    %275 = arith.mulf %270, %274 : vector<16x32xf32>
    %276 = vector.broadcast %256 : vector<1x32xf32> to vector<16x32xf32>
    %277 = arith.mulf %275, %276 : vector<16x32xf32>
    %278 = vector.broadcast %257 : vector<1x32xf32> to vector<16x32xf32>
    %279 = arith.addf %277, %278 : vector<16x32xf32>
    %280 = vector.shape_cast %279 : vector<16x32xf32> to vector<2x8x32xf32>
    %cst_103 = arith.constant dense<0.000000e+00> : vector<2x32xf32>
    %281 = vector.multi_reduction <add>, %280, %cst_103 [1] : vector<2x8x32xf32> to vector<2x32xf32>
    %cst_104 = arith.constant 8.000000e+00 : f32
    %282 = vector.broadcast %cst_104 : f32 to vector<2x32xf32>
    %283 = arith.divf %281, %282 : vector<2x32xf32>
    %c0_105 = arith.constant 0 : index
    %c0_106 = arith.constant 0 : index
    %284 = vector.load %arg8[%c0_105, %c0_106] : memref<32x4xf32, #tpu.memory_space<vmem>>, vector<32x4xf32>
    %cst_107 = arith.constant dense<0.000000e+00> : vector<2x4xf32>
    %285 = tpu.matmul %283, %284, %cst_107 {dimension_numbers = #tpu.dot_dimension_numbers<[1], [0], [0], [1], [0, 0, 1, 1], [], []>} : vector<2x32xf32>, vector<32x4xf32>, vector<2x4xf32> -> vector<2x4xf32>
    %c0_108 = arith.constant 0 : index
    %c0_109 = arith.constant 0 : index
    %286 = vector.load %arg9[%c0_108, %c0_109] : memref<1x4xf32, #tpu.memory_space<vmem>>, vector<1x4xf32>
    %287 = vector.broadcast %286 : vector<1x4xf32> to vector<2x4xf32>
    %288 = arith.addf %285, %287 : vector<2x4xf32>
    %c0_110 = arith.constant 0 : index
    %c0_111 = arith.constant 0 : index
    %289 = vector.load %arg10[%c0_110, %c0_111] : memref<2x4xf32, #tpu.memory_space<vmem>>, vector<2x4xf32>
    tpu.vector_store %arg10[%c0_110, %c0_111], %288 {strides = array<i32>} : memref<2x4xf32, #tpu.memory_space<vmem>>, vector<2x4xf32>,
    return
  }
}

</mosaic_0001>

<llo_original>
// kernel: tpu_custom_call.1
$region0: #{tpu_custom_call.1}
  #allocation0 [shape = 'u32[]', space=smem, size = 0x4, offset = 0x4, fixed_abs, tag = 'smem constant byte address 0x4 - core index']
  #allocation1 [shape = 'u32[144,128]{1,0:T(1,128)}', space=vmem, size = 0x12000, scoped, tag = 'internal scratch']
  %s0 = inlined_call_operand.vmem [shape: f32[2,8,32], index: 0, kind: input, shape index: {}]
  %s1 = inlined_call_operand.vmem [shape: f32[8,32], index: 1, kind: input, shape index: {}]
  %s2 = inlined_call_operand.vmem [shape: f32[2,32,96], index: 2, kind: input, shape index: {}]
  %s3 = inlined_call_operand.vmem [shape: f32[2,32,32], index: 3, kind: input, shape index: {}]
  %s4 = inlined_call_operand.vmem [shape: f32[2,9,32], index: 4, kind: input, shape index: {}]
  %s5 = inlined_call_operand.vmem [shape: bf16[2,32,2048], index: 5, kind: input, shape index: {}]
  %s6 = inlined_call_operand.vmem [shape: f32[2,1,2048], index: 6, kind: input, shape index: {}]
  %s7 = inlined_call_operand.vmem [shape: bf16[2,2048,32], index: 7, kind: input, shape index: {}]
  %s8 = inlined_call_operand.vmem [shape: f32[32,4], index: 8, kind: input, shape index: {}]
  %s9 = inlined_call_operand.vmem [shape: f32[1,4], index: 9, kind: input, shape index: {}]
  %s10 = inlined_call_operand.hbm [shape: f32[2,4], index: 10, kind: output, shape index: {}]
  %s11 = sld [smem:[#allocation0]]
  $region50: #{tpu_custom_call.1} parent=0
    _
  %s13 = ssub.s32 1, %s11
  %s14 = scalar_select 0, %s13, %s11
  $region1: #{tpu_custom_call.1} parent=0
    #allocation2 [shape = 'u8[1024]{0}', space=vmem, size = 0x400, scoped, tag = 'output window, operand 0, single buffered']
    #allocation3 [shape = 's32[1]{0}', space=sflag, size = 0x4, scoped, tag = 'scoped memory for tpu_custom_call.1']
    %15 = vsyncpa [#allocation3], 0
    // Predicated region
    $region2: #{tpu_custom_call.1} parent=1 // pred_check
      _
    $region3: #{tpu_custom_call.1} parent=1 // pred_check_branch
      %17 = sbr.rel (0) target = $region5
    $region4: #{tpu_custom_call.1} parent=1 // pred_region
      _
    $region5: #{tpu_custom_call.1} parent=1 // pred_fallthru
      _
    // Predicated region
    $region6: #{tpu_custom_call.1} parent=1 // pred_check
      _
    $region7: #{tpu_custom_call.1} parent=1 // pred_check_branch
      %19 = sbr.rel (0) target = $region9
    $region8: #{tpu_custom_call.1} parent=1 // pred_region
      _
    $region9: #{tpu_custom_call.1} parent=1 // pred_fallthru
      _
    // Predicated region
    $region10: #{tpu_custom_call.1} parent=1 // pred_check
      _
    $region11: #{tpu_custom_call.1} parent=1 // pred_check_branch
      %21 = sbr.rel (0) target = $region13
    $region12: #{tpu_custom_call.1} parent=1 // pred_region
      _
    $region13: #{tpu_custom_call.1} parent=1 // pred_fallthru
      _
    // Predicated region
    $region14: #{tpu_custom_call.1} parent=1 // pred_check
      _
    $region15: #{tpu_custom_call.1} parent=1 // pred_check_branch
      %23 = sbr.rel (0) target = $region17
    $region16: #{tpu_custom_call.1} parent=1 // pred_region
      _
    $region17: #{tpu_custom_call.1} parent=1 // pred_fallthru
      _
    // Predicated region
    $region18: #{tpu_custom_call.1} parent=1 // pred_check
      _
    $region19: #{tpu_custom_call.1} parent=1 // pred_check_branch
      %25 = sbr.rel (0) target = $region21
    $region20: #{tpu_custom_call.1} parent=1 // pred_region
      _
    $region21: #{tpu_custom_call.1} parent=1 // pred_fallthru
      _
    // Predicated region
    $region22: #{tpu_custom_call.1} parent=1 // pred_check
      _
    $region23: #{tpu_custom_call.1} parent=1 // pred_check_branch
      %27 = sbr.rel (0) target = $region25
    $region24: #{tpu_custom_call.1} parent=1 // pred_region
      _
    $region25: #{tpu_custom_call.1} parent=1 // pred_fallthru
      _
    // Predicated region
    $region26: #{tpu_custom_call.1} parent=1 // pred_check
      _
    $region27: #{tpu_custom_call.1} parent=1 // pred_check_branch
      %29 = sbr.rel (0) target = $region29
    $region28: #{tpu_custom_call.1} parent=1 // pred_region
      _
    $region29: #{tpu_custom_call.1} parent=1 // pred_fallthru
      _
    // Predicated region
    $region30: #{tpu_custom_call.1} parent=1 // pred_check
      _
    $region31: #{tpu_custom_call.1} parent=1 // pred_check_branch
      %31 = sbr.rel (0) target = $region33
    $region32: #{tpu_custom_call.1} parent=1 // pred_region
      _
    $region33: #{tpu_custom_call.1} parent=1 // pred_fallthru
      _
    // Predicated region
    $region34: #{tpu_custom_call.1} parent=1 // pred_check
      _
    $region35: #{tpu_custom_call.1} parent=1 // pred_check_branch
      %33 = sbr.rel (0) target = $region37
    $region36: #{tpu_custom_call.1} parent=1 // pred_region
      _
    $region37: #{tpu_custom_call.1} parent=1 // pred_fallthru
      _
    // Predicated region
    $region38: #{tpu_custom_call.1} parent=1 // pred_check
      _
    $region39: #{tpu_custom_call.1} parent=1 // pred_check_branch
      %35 = sbr.rel (0) target = $region41
    $region40: #{tpu_custom_call.1} parent=1 // pred_region
      _
    $region41: #{tpu_custom_call.1} parent=1 // pred_fallthru
      _
    %v37 = vld [vmem:[%s0] sm:$0xff]
    %v38 = vld [vmem:[%s0 + $0x8] sm:$0xff]
    %v39 = vld [vmem:[%s1] sm:$0xff]
    %v40 = vadd.f32 %v37, %v39
    %v41 = vadd.f32 %v38, %v39
    %v42 = vld [vmem:[%s4] sm:$0xff]
    %v43 = vld [vmem:[%s4 + $0x8] sm:$0x1]
    %v44 = vld [vmem:[%s2] sm:$0xff]
    %v45 = vld [vmem:[%s2 + $0x8] sm:$0xff]
    %v46 = vld [vmem:[%s2 + $0x10] sm:$0xff]
    %v47 = vld [vmem:[%s2 + $0x18] sm:$0xff]
    %vm48 = vcmask 261120
    %v50 = vsel %vm48, %v40, 0
    %v53 = vsel %vm48, %v41, 0
    %55 = vmatprep.subr.mxu0 0.0
    %56 = vmatpush1.msra.mxu0 %v44
    %57 = vmatprep.subr.mxu0 0.0
    %58 = vmatpush1.msra.mxu0 %v45
    %59 = vmatprep.subr.mxu0 0.0
    %60 = vmatpush1.msra.mxu0 %v46
    %61 = vmatprep.subr.mxu0 0.0
    %62 = vmatpush1.msra.mxu0 %v47
    %63 = vmatprep.subr.mxu0 0.0
    %64 = vmatpush1.msra.mxu0 0.0
    %65 = vmatprep.subr.mxu0 0.0
    %66 = vmatpush1.msra.mxu0 0.0
    %67 = vmatprep.subr.mxu0 0.0
    %68 = vmatpush1.msra.mxu0 0.0
    %69 = vmatprep.subr.mxu0 0.0
    %70 = vmatpush1.msra.mxu0 0.0
    %71 = vmatprep.subr.mxu0 0.0
    %72 = vmatpush1.msra.mxu0 0.0
    %73 = vmatprep.subr.mxu0 0.0
    %74 = vmatpush1.msra.mxu0 0.0
    %75 = vmatprep.subr.mxu0 0.0
    %76 = vmatpush1.msra.mxu0 0.0
    %77 = vmatprep.subr.mxu0 0.0
    %78 = vmatpush1.msra.mxu0 0.0
    %79 = vmatprep.subr.mxu0 0.0
    %80 = vmatpush1.msra.mxu0 0.0
    %81 = vmatprep.subr.mxu0 0.0
    %82 = vmatpush1.msra.mxu0 0.0
    %83 = vmatprep.subr.mxu0 0.0
    %84 = vmatpush1.msra.mxu0 0.0
    %85 = vmatprep.subr.mxu0 0.0
    %86 = vmatpush1.msra.mxu0 0.0
    %87 = vmatprep.subr.mxu0 0.0
    %88 = vmatpush1.msra.mxu0 0.0
    %89 = vmatprep.subr.mxu0 0.0
    %90 = vmatpush1.msra.mxu0 0.0
    %91 = vmatprep.subr.mxu0 0.0
    %92 = vmatpush1.msra.mxu0 0.0
    %93 = vmatprep.subr.mxu0 0.0
    %94 = vmatpush1.msra.mxu0 0.0
    %95 = vmatprep.subr.mxu0 0.0
    %96 = vmatpush1.msra.mxu0 0.0
    %97 = vmatprep.subr.mxu0 0.0
    %98 = vmatpush1.msra.mxu0 0.0
    %99 = vmatprep.subr.mxu0 0.0
    %100 = vmatpush1.msra.mxu0 0.0
    %101 = vmatprep.subr.mxu0 0.0
    %102 = vmatpush1.msra.mxu0 0.0
    %103 = vmatprep.subr.mxu0 0.0
    %104 = vmatpush1.msra.mxu0 0.0
    %105 = vmatprep.subr.mxu0 0.0
    %106 = vmatpush1.msra.mxu0 0.0
    %107 = vmatprep.subr.mxu0 0.0
    %108 = vmatpush1.msra.mxu0 0.0
    %109 = vmatprep.subr.mxu0 0.0
    %110 = vmatpush1.msra.mxu0 0.0
    %111 = vmatprep.subr.mxu0 0.0
    %112 = vmatpush1.msra.mxu0 0.0
    %113 = vmatprep.subr.mxu0 0.0
    %114 = vmatpush1.msra.mxu0 0.0
    %115 = vmatprep.subr.mxu0 0.0
    %116 = vmatpush1.msra.mxu0 0.0
    %117 = vmatprep.subr.mxu0 0.0
    %118 = vmatpush1.msra.mxu0 0.0
    %119 = vmatprep.mubr.f32.mxu0 0.0
    %120 = vmatmul.mubr.f32.gmra.mrb[0].mxu0 %v50
    %v121 = vpop.f32.mrb[0].mxu0
    %v122 = vadd.f32 0.0, %v121
    %v123 = vpop.f32.mrb[0].mxu0
    %124 = vmatprep.mubr.f32.mxu0 0.0
    %125 = vmatmul.mubr.f32.gmra.mrb[0].mxu0 %v53
    %v126 = vpop.f32.mrb[0].mxu0
    %v127 = vadd.f32 0.0, %v126
    %v128 = vpop.f32.mrb[0].mxu0
    %129 = vdwg.mxu0
    %v130 = vlaneseq
    %v131 = vshrl.u32 %v130, 7
    %v132 = vsub.s32 0, %v131
    %v133 = vrot.slane %v42, %v132
    %v134 = vadd.f32 %v122, %v133
    %v135 = vadd.f32 %v127, %v133
    %v136 = vlaneseq
    %v137 = vshrl.u32 %v136, 7
    %v138 = vsub.s32 1, %v137
    %v139 = vrot.slane %v42, %v138
    %141 = vrot.lane.b32.xlu0 %v139, 32
    %v142 = vpop.permute.xlu0 %141
    %v144 = vadd.f32 %v122, %v142
    %v145 = vadd.f32 %v127, %v142
    %v146 = vlaneseq
    %v147 = vshrl.u32 %v146, 7
    %v148 = vsub.s32 2, %v147
    %v149 = vrot.slane %v42, %v148
    %151 = vrot.lane.b32.xlu0 %v149, 64
    %v152 = vpop.permute.xlu0 %151
    %v154 = vadd.f32 %v122, %v152
    %v155 = vadd.f32 %v127, %v152
    %158 = vrot.lane.b32.xlu0 %v134, 112
    %v159 = vpop.permute.xlu0 %158
    %160 = vrot.lane.b32.xlu0 %v135, 112
    %v161 = vpop.permute.xlu0 %160
    %164 = vrot.lane.b32.xlu0 %v144, 112
    %v165 = vpop.permute.xlu0 %164
    %166 = vrot.lane.b32.xlu0 %v145, 112
    %v167 = vpop.permute.xlu0 %166
    %170 = vrot.lane.b32.xlu0 %v154, 112
    %v171 = vpop.permute.xlu0 %170
    %172 = vrot.lane.b32.xlu0 %v155, 112
    %v173 = vpop.permute.xlu0 %172
    %174 = vrot.lane.b32.xlu0 %v144, 96
    %v175 = vpop.permute.xlu0 %174
    %vm176 = vcmask 130048
    %v177 = vsel %vm176, %v134, 0
    %v179 = vsel %vm176, %v175, 0
    %181 = vmatprep.subr.mxu0 0.0
    %182 = vmatpush1.xpose.msra.mxu0 %v179
    %183 = vmatprep.subr.mxu0 0.0
    %184 = vmatpush1.xpose.msra.mxu0 0.0
    %185 = vmatprep.subr.mxu0 0.0
    %186 = vmatpush1.xpose.msra.mxu0 0.0
    %187 = vmatprep.subr.mxu0 0.0
    %188 = vmatpush1.xpose.msra.mxu0 0.0
    %189 = vmatprep.subr.mxu0 0.0
    %190 = vmatpush1.xpose.msra.mxu0 0.0
    %191 = vmatprep.subr.mxu0 0.0
    %192 = vmatpush1.xpose.msra.mxu0 0.0
    %193 = vmatprep.subr.mxu0 0.0
    %194 = vmatpush1.xpose.msra.mxu0 0.0
    %195 = vmatprep.subr.mxu0 0.0
    %196 = vmatpush1.xpose.msra.mxu0 0.0
    %197 = vmatprep.subr.mxu0 0.0
    %198 = vmatpush1.xpose.msra.mxu0 0.0
    %199 = vmatprep.subr.mxu0 0.0
    %200 = vmatpush1.xpose.msra.mxu0 0.0
    %201 = vmatprep.subr.mxu0 0.0
    %202 = vmatpush1.xpose.msra.mxu0 0.0
    %203 = vmatprep.subr.mxu0 0.0
    %204 = vmatpush1.xpose.msra.mxu0 0.0
    %205 = vmatprep.subr.mxu0 0.0
    %206 = vmatpush1.xpose.msra.mxu0 0.0
    %207 = vmatprep.subr.mxu0 0.0
    %208 = vmatpush1.xpose.msra.mxu0 0.0
    %209 = vmatprep.subr.mxu0 0.0
    %210 = vmatpush1.xpose.msra.mxu0 0.0
    %211 = vmatprep.subr.mxu0 0.0
    %212 = vmatpush1.xpose.msra.mxu0 0.0
    %213 = vmatprep.subr.mxu0 0.0
    %214 = vmatpush1.xpose.msra.mxu0 0.0
    %215 = vmatprep.subr.mxu0 0.0
    %216 = vmatpush1.xpose.msra.mxu0 0.0
    %217 = vmatprep.subr.mxu0 0.0
    %218 = vmatpush1.xpose.msra.mxu0 0.0
    %219 = vmatprep.subr.mxu0 0.0
    %220 = vmatpush1.xpose.msra.mxu0 0.0
    %221 = vmatprep.subr.mxu0 0.0
    %222 = vmatpush1.xpose.msra.mxu0 0.0
    %223 = vmatprep.subr.mxu0 0.0
    %224 = vmatpush1.xpose.msra.mxu0 0.0
    %225 = vmatprep.subr.mxu0 0.0
    %226 = vmatpush1.xpose.msra.mxu0 0.0
    %227 = vmatprep.subr.mxu0 0.0
    %228 = vmatpush1.xpose.msra.mxu0 0.0
    %229 = vmatprep.subr.mxu0 0.0
    %230 = vmatpush1.xpose.msra.mxu0 0.0
    %231 = vmatprep.subr.mxu0 0.0
    %232 = vmatpush1.xpose.msra.mxu0 0.0
    %233 = vmatprep.subr.mxu0 0.0
    %234 = vmatpush1.xpose.msra.mxu0 0.0
    %235 = vmatprep.subr.mxu0 0.0
    %236 = vmatpush1.xpose.msra.mxu0 0.0
    %237 = vmatprep.subr.mxu0 0.0
    %238 = vmatpush1.xpose.msra.mxu0 0.0
    %239 = vmatprep.subr.mxu0 0.0
    %240 = vmatpush1.xpose.msra.mxu0 0.0
    %241 = vmatprep.subr.mxu0 0.0
    %242 = vmatpush1.xpose.msra.mxu0 0.0
    %243 = vmatprep.subr.mxu0 0.0
    %244 = vmatpush1.xpose.msra.mxu0 0.0
    %245 = vmatprep.mubr.f32.mxu0 0.0
    %246 = vmatmul.mubr.f32.gmra.mrb[0].mxu0 %v177
    %v247 = vpop.f32.mrb[0].mxu0
    %v248 = vadd.f32 0.0, %v247
    %v249 = vpop.f32.mrb[0].mxu0
    %250 = vdwg.mxu0
    %251 = vrot.lane.b32.xlu0 %v145, 96
    %v252 = vpop.permute.xlu0 %251
    %v253 = vsel %vm176, %v135, 0
    %v255 = vsel %vm176, %v252, 0
    %257 = vmatprep.subr.mxu0 0.0
    %258 = vmatpush1.xpose.msra.mxu0 %v255
    %259 = vmatprep.subr.mxu0 0.0
    %260 = vmatpush1.xpose.msra.mxu0 0.0
    %261 = vmatprep.subr.mxu0 0.0
    %262 = vmatpush1.xpose.msra.mxu0 0.0
    %263 = vmatprep.subr.mxu0 0.0
    %264 = vmatpush1.xpose.msra.mxu0 0.0
    %265 = vmatprep.subr.mxu0 0.0
    %266 = vmatpush1.xpose.msra.mxu0 0.0
    %267 = vmatprep.subr.mxu0 0.0
    %268 = vmatpush1.xpose.msra.mxu0 0.0
    %269 = vmatprep.subr.mxu0 0.0
    %270 = vmatpush1.xpose.msra.mxu0 0.0
    %271 = vmatprep.subr.mxu0 0.0
    %272 = vmatpush1.xpose.msra.mxu0 0.0
    %273 = vmatprep.subr.mxu0 0.0
    %274 = vmatpush1.xpose.msra.mxu0 0.0
    %275 = vmatprep.subr.mxu0 0.0
    %276 = vmatpush1.xpose.msra.mxu0 0.0
    %277 = vmatprep.subr.mxu0 0.0
    %278 = vmatpush1.xpose.msra.mxu0 0.0
    %279 = vmatprep.subr.mxu0 0.0
    %280 = vmatpush1.xpose.msra.mxu0 0.0
    %281 = vmatprep.subr.mxu0 0.0
    %282 = vmatpush1.xpose.msra.mxu0 0.0
    %283 = vmatprep.subr.mxu0 0.0
    %284 = vmatpush1.xpose.msra.mxu0 0.0
    %285 = vmatprep.subr.mxu0 0.0
    %286 = vmatpush1.xpose.msra.mxu0 0.0
    %287 = vmatprep.subr.mxu0 0.0
    %288 = vmatpush1.xpose.msra.mxu0 0.0
    %289 = vmatprep.subr.mxu0 0.0
    %290 = vmatpush1.xpose.msra.mxu0 0.0
    %291 = vmatprep.subr.mxu0 0.0
    %292 = vmatpush1.xpose.msra.mxu0 0.0
    %293 = vmatprep.subr.mxu0 0.0
    %294 = vmatpush1.xpose.msra.mxu0 0.0
    %295 = vmatprep.subr.mxu0 0.0
    %296 = vmatpush1.xpose.msra.mxu0 0.0
    %297 = vmatprep.subr.mxu0 0.0
    %298 = vmatpush1.xpose.msra.mxu0 0.0
    %299 = vmatprep.subr.mxu0 0.0
    %300 = vmatpush1.xpose.msra.mxu0 0.0
    %301 = vmatprep.subr.mxu0 0.0
    %302 = vmatpush1.xpose.msra.mxu0 0.0
    %303 = vmatprep.subr.mxu0 0.0
    %304 = vmatpush1.xpose.msra.mxu0 0.0
    %305 = vmatprep.subr.mxu0 0.0
    %306 = vmatpush1.xpose.msra.mxu0 0.0
    %307 = vmatprep.subr.mxu0 0.0
    %308 = vmatpush1.xpose.msra.mxu0 0.0
    %309 = vmatprep.subr.mxu0 0.0
    %310 = vmatpush1.xpose.msra.mxu0 0.0
    %311 = vmatprep.subr.mxu0 0.0
    %312 = vmatpush1.xpose.msra.mxu0 0.0
    %313 = vmatprep.subr.mxu0 0.0
    %314 = vmatpush1.xpose.msra.mxu0 0.0
    %315 = vmatprep.subr.mxu0 0.0
    %316 = vmatpush1.xpose.msra.mxu0 0.0
    %317 = vmatprep.subr.mxu0 0.0
    %318 = vmatpush1.xpose.msra.mxu0 0.0
    %319 = vmatprep.subr.mxu0 0.0
    %320 = vmatpush1.xpose.msra.mxu0 0.0
    %321 = vmatprep.mubr.f32.mxu0 0.0
    %322 = vmatmul.mubr.f32.gmra.mrb[0].mxu0 %v253
    %v323 = vpop.f32.mrb[0].mxu0
    %v324 = vadd.f32 0.0, %v323
    %v325 = vpop.f32.mrb[0].mxu0
    %326 = vdwg.mxu0
    %327 = vrot.lane.b32.xlu0 %v165, 96
    %v328 = vpop.permute.xlu0 %327
    %v329 = vsel %vm176, %v159, 0
    %v331 = vsel %vm176, %v328, 0
    %333 = vmatprep.subr.mxu0 0.0
    %334 = vmatpush1.xpose.msra.mxu0 %v331
    %335 = vmatprep.subr.mxu0 0.0
    %336 = vmatpush1.xpose.msra.mxu0 0.0
    %337 = vmatprep.subr.mxu0 0.0
    %338 = vmatpush1.xpose.msra.mxu0 0.0
    %339 = vmatprep.subr.mxu0 0.0
    %340 = vmatpush1.xpose.msra.mxu0 0.0
    %341 = vmatprep.subr.mxu0 0.0
    %342 = vmatpush1.xpose.msra.mxu0 0.0
    %343 = vmatprep.subr.mxu0 0.0
    %344 = vmatpush1.xpose.msra.mxu0 0.0
    %345 = vmatprep.subr.mxu0 0.0
    %346 = vmatpush1.xpose.msra.mxu0 0.0
    %347 = vmatprep.subr.mxu0 0.0
    %348 = vmatpush1.xpose.msra.mxu0 0.0
    %349 = vmatprep.subr.mxu0 0.0
    %350 = vmatpush1.xpose.msra.mxu0 0.0
    %351 = vmatprep.subr.mxu0 0.0
    %352 = vmatpush1.xpose.msra.mxu0 0.0
    %353 = vmatprep.subr.mxu0 0.0
    %354 = vmatpush1.xpose.msra.mxu0 0.0
    %355 = vmatprep.subr.mxu0 0.0
    %356 = vmatpush1.xpose.msra.mxu0 0.0
    %357 = vmatprep.subr.mxu0 0.0
    %358 = vmatpush1.xpose.msra.mxu0 0.0
    %359 = vmatprep.subr.mxu0 0.0
    %360 = vmatpush1.xpose.msra.mxu0 0.0
    %361 = vmatprep.subr.mxu0 0.0
    %362 = vmatpush1.xpose.msra.mxu0 0.0
    %363 = vmatprep.subr.mxu0 0.0
    %364 = vmatpush1.xpose.msra.mxu0 0.0
    %365 = vmatprep.subr.mxu0 0.0
    %366 = vmatpush1.xpose.msra.mxu0 0.0
    %367 = vmatprep.subr.mxu0 0.0
    %368 = vmatpush1.xpose.msra.mxu0 0.0
    %369 = vmatprep.subr.mxu0 0.0
    %370 = vmatpush1.xpose.msra.mxu0 0.0
    %371 = vmatprep.subr.mxu0 0.0
    %372 = vmatpush1.xpose.msra.mxu0 0.0
    %373 = vmatprep.subr.mxu0 0.0
    %374 = vmatpush1.xpose.msra.mxu0 0.0
    %375 = vmatprep.subr.mxu0 0.0
    %376 = vmatpush1.xpose.msra.mxu0 0.0
    %377 = vmatprep.subr.mxu0 0.0
    %378 = vmatpush1.xpose.msra.mxu0 0.0
    %379 = vmatprep.subr.mxu0 0.0
    %380 = vmatpush1.xpose.msra.mxu0 0.0
    %381 = vmatprep.subr.mxu0 0.0
    %382 = vmatpush1.xpose.msra.mxu0 0.0
    %383 = vmatprep.subr.mxu0 0.0
    %384 = vmatpush1.xpose.msra.mxu0 0.0
    %385 = vmatprep.subr.mxu0 0.0
    %386 = vmatpush1.xpose.msra.mxu0 0.0
    %387 = vmatprep.subr.mxu0 0.0
    %388 = vmatpush1.xpose.msra.mxu0 0.0
    %389 = vmatprep.subr.mxu0 0.0
    %390 = vmatpush1.xpose.msra.mxu0 0.0
    %391 = vmatprep.subr.mxu0 0.0
    %392 = vmatpush1.xpose.msra.mxu0 0.0
    %393 = vmatprep.subr.mxu0 0.0
    %394 = vmatpush1.xpose.msra.mxu0 0.0
    %395 = vmatprep.subr.mxu0 0.0
    %396 = vmatpush1.xpose.msra.mxu0 0.0
    %397 = vmatprep.mubr.f32.mxu0 0.0
    %398 = vmatmul.mubr.f32.gmra.mrb[0].mxu0 %v329
    %v399 = vpop.f32.mrb[0].mxu0
    %v400 = vadd.f32 0.0, %v399
    %v401 = vpop.f32.mrb[0].mxu0
    %402 = vdwg.mxu0
    %403 = vrot.lane.b32.xlu0 %v167, 96
    %v404 = vpop.permute.xlu0 %403
    %v405 = vsel %vm176, %v161, 0
    %v407 = vsel %vm176, %v404, 0
    %409 = vmatprep.subr.mxu0 0.0
    %410 = vmatpush1.xpose.msra.mxu0 %v407
    %411 = vmatprep.subr.mxu0 0.0
    %412 = vmatpush1.xpose.msra.mxu0 0.0
    %413 = vmatprep.subr.mxu0 0.0
    %414 = vmatpush1.xpose.msra.mxu0 0.0
    %415 = vmatprep.subr.mxu0 0.0
    %416 = vmatpush1.xpose.msra.mxu0 0.0
    %417 = vmatprep.subr.mxu0 0.0
    %418 = vmatpush1.xpose.msra.mxu0 0.0
    %419 = vmatprep.subr.mxu0 0.0
    %420 = vmatpush1.xpose.msra.mxu0 0.0
    %421 = vmatprep.subr.mxu0 0.0
    %422 = vmatpush1.xpose.msra.mxu0 0.0
    %423 = vmatprep.subr.mxu0 0.0
    %424 = vmatpush1.xpose.msra.mxu0 0.0
    %425 = vmatprep.subr.mxu0 0.0
    %426 = vmatpush1.xpose.msra.mxu0 0.0
    %427 = vmatprep.subr.mxu0 0.0
    %428 = vmatpush1.xpose.msra.mxu0 0.0
    %429 = vmatprep.subr.mxu0 0.0
    %430 = vmatpush1.xpose.msra.mxu0 0.0
    %431 = vmatprep.subr.mxu0 0.0
    %432 = vmatpush1.xpose.msra.mxu0 0.0
    %433 = vmatprep.subr.mxu0 0.0
    %434 = vmatpush1.xpose.msra.mxu0 0.0
    %435 = vmatprep.subr.mxu0 0.0
    %436 = vmatpush1.xpose.msra.mxu0 0.0
    %437 = vmatprep.subr.mxu0 0.0
    %438 = vmatpush1.xpose.msra.mxu0 0.0
    %439 = vmatprep.subr.mxu0 0.0
    %440 = vmatpush1.xpose.msra.mxu0 0.0
    %441 = vmatprep.subr.mxu0 0.0
    %442 = vmatpush1.xpose.msra.mxu0 0.0
    %443 = vmatprep.subr.mxu0 0.0
    %444 = vmatpush1.xpose.msra.mxu0 0.0
    %445 = vmatprep.subr.mxu0 0.0
    %446 = vmatpush1.xpose.msra.mxu0 0.0
    %447 = vmatprep.subr.mxu0 0.0
    %448 = vmatpush1.xpose.msra.mxu0 0.0
    %449 = vmatprep.subr.mxu0 0.0
    %450 = vmatpush1.xpose.msra.mxu0 0.0
    %451 = vmatprep.subr.mxu0 0.0
    %452 = vmatpush1.xpose.msra.mxu0 0.0
    %453 = vmatprep.subr.mxu0 0.0
    %454 = vmatpush1.xpose.msra.mxu0 0.0
    %455 = vmatprep.subr.mxu0 0.0
    %456 = vmatpush1.xpose.msra.mxu0 0.0
    %457 = vmatprep.subr.mxu0 0.0
    %458 = vmatpush1.xpose.msra.mxu0 0.0
    %459 = vmatprep.subr.mxu0 0.0
    %460 = vmatpush1.xpose.msra.mxu0 0.0
    %461 = vmatprep.subr.mxu0 0.0
    %462 = vmatpush1.xpose.msra.mxu0 0.0
    %463 = vmatprep.subr.mxu0 0.0
    %464 = vmatpush1.xpose.msra.mxu0 0.0
    %465 = vmatprep.subr.mxu0 0.0
    %466 = vmatpush1.xpose.msra.mxu0 0.0
    %467 = vmatprep.subr.mxu0 0.0
    %468 = vmatpush1.xpose.msra.mxu0 0.0
    %469 = vmatprep.subr.mxu0 0.0
    %470 = vmatpush1.xpose.msra.mxu0 0.0
    %471 = vmatprep.subr.mxu0 0.0
    %472 = vmatpush1.xpose.msra.mxu0 0.0
    %473 = vmatprep.mubr.f32.mxu0 0.0
    %474 = vmatmul.mubr.f32.gmra.mrb[0].mxu0 %v405
    %v475 = vpop.f32.mrb[0].mxu0
    %v476 = vadd.f32 0.0, %v475
    %v477 = vpop.f32.mrb[0].mxu0
    %478 = vdwg.mxu0
    %v479 = vmul.f32 %v248, 0.25
    %v480 = vmul.f32 %v324, 0.25
    %v481 = vmul.f32 %v400, 0.25
    %v482 = vmul.f32 %v476, 0.25
    %vm483 = vcmask 64512
    %v484 = vsel %vm483, %v479, -inf
    %485 = vmax.xlane.f32.xlu0 %v484
    %v486 = vpop.xlane.xlu0 %485
    %v487 = vsel %vm483, %v480, -inf
    %488 = vmax.xlane.f32.xlu0 %v487
    %v489 = vpop.xlane.xlu0 %488
    %v490 = vsel %vm483, %v481, -inf
    %491 = vmax.xlane.f32.xlu0 %v490
    %v492 = vpop.xlane.xlu0 %491
    %v493 = vsel %vm483, %v482, -inf
    %494 = vmax.xlane.f32.xlu0 %v493
    %v495 = vpop.xlane.xlu0 %494
    %v496 = vsub.f32 %v479, %v486
    %v497 = vsub.f32 %v480, %v489
    %v498 = vsub.f32 %v481, %v492
    %v499 = vsub.f32 %v482, %v495
    %v500 = vmul.f32 %v496, 1.442695
    %v501 = vpow.pop %v500
    %v502 = vmul.f32 %v497, 1.442695
    %v503 = vpow.pop %v502
    %v504 = vmul.f32 %v498, 1.442695
    %v505 = vpow.pop %v504
    %v506 = vmul.f32 %v499, 1.442695
    %v507 = vpow.pop %v506
    %v508 = vsel %vm483, %v501, 0.0
    %509 = vadd.xlane.f32.xlu0 %v508
    %v510 = vpop.xlane.xlu0 %509
    %v511 = vsel %vm483, %v503, 0.0
    %512 = vadd.xlane.f32.xlu0 %v511
    %v513 = vpop.xlane.xlu0 %512
    %v514 = vsel %vm483, %v505, 0.0
    %515 = vadd.xlane.f32.xlu0 %v514
    %v516 = vpop.xlane.xlu0 %515
    %v517 = vsel %vm483, %v507, 0.0
    %518 = vadd.xlane.f32.xlu0 %v517
    %v519 = vpop.xlane.xlu0 %518
    %v520 = vrcp.pop %v510
    %v521 = vrcp.pop %v513
    %v522 = vrcp.pop %v516
    %v523 = vrcp.pop %v519
    %v524 = vmul.f32 %v501, %v520
    %v525 = vmul.f32 %v503, %v521
    %v526 = vmul.f32 %v505, %v522
    %v527 = vmul.f32 %v507, %v523
    %528 = vrot.lane.b32.xlu0 %v154, 64
    %v529 = vpop.permute.xlu0 %528
    %v532 = vsel %vm483, %v524, 0
    %534 = vmatprep.subr.mxu0 0.0
    %535 = vmatpush1.msra.mxu0 %v529
    %536 = vmatprep.subr.mxu0 0.0
    %537 = vmatpush1.msra.mxu0 0.0
    %538 = vmatprep.subr.mxu0 0.0
    %539 = vmatpush1.msra.mxu0 0.0
    %540 = vmatprep.subr.mxu0 0.0
    %541 = vmatpush1.msra.mxu0 0.0
    %542 = vmatprep.subr.mxu0 0.0
    %543 = vmatpush1.msra.mxu0 0.0
    %544 = vmatprep.subr.mxu0 0.0
    %545 = vmatpush1.msra.mxu0 0.0
    %546 = vmatprep.subr.mxu0 0.0
    %547 = vmatpush1.msra.mxu0 0.0
    %548 = vmatprep.subr.mxu0 0.0
    %549 = vmatpush1.msra.mxu0 0.0
    %550 = vmatprep.subr.mxu0 0.0
    %551 = vmatpush1.msra.mxu0 0.0
    %552 = vmatprep.subr.mxu0 0.0
    %553 = vmatpush1.msra.mxu0 0.0
    %554 = vmatprep.subr.mxu0 0.0
    %555 = vmatpush1.msra.mxu0 0.0
    %556 = vmatprep.subr.mxu0 0.0
    %557 = vmatpush1.msra.mxu0 0.0
    %558 = vmatprep.subr.mxu0 0.0
    %559 = vmatpush1.msra.mxu0 0.0
    %560 = vmatprep.subr.mxu0 0.0
    %561 = vmatpush1.msra.mxu0 0.0
    %562 = vmatprep.subr.mxu0 0.0
    %563 = vmatpush1.msra.mxu0 0.0
    %564 = vmatprep.subr.mxu0 0.0
    %565 = vmatpush1.msra.mxu0 0.0
    %566 = vmatprep.subr.mxu0 0.0
    %567 = vmatpush1.msra.mxu0 0.0
    %568 = vmatprep.subr.mxu0 0.0
    %569 = vmatpush1.msra.mxu0 0.0
    %570 = vmatprep.subr.mxu0 0.0
    %571 = vmatpush1.msra.mxu0 0.0
    %572 = vmatprep.subr.mxu0 0.0
    %573 = vmatpush1.msra.mxu0 0.0
    %574 = vmatprep.subr.mxu0 0.0
    %575 = vmatpush1.msra.mxu0 0.0
    %576 = vmatprep.subr.mxu0 0.0
    %577 = vmatpush1.msra.mxu0 0.0
    %578 = vmatprep.subr.mxu0 0.0
    %579 = vmatpush1.msra.mxu0 0.0
    %580 = vmatprep.subr.mxu0 0.0
    %581 = vmatpush1.msra.mxu0 0.0
    %582 = vmatprep.subr.mxu0 0.0
    %583 = vmatpush1.msra.mxu0 0.0
    %584 = vmatprep.subr.mxu0 0.0
    %585 = vmatpush1.msra.mxu0 0.0
    %586 = vmatprep.subr.mxu0 0.0
    %587 = vmatpush1.msra.mxu0 0.0
    %588 = vmatprep.subr.mxu0 0.0
    %589 = vmatpush1.msra.mxu0 0.0
    %590 = vmatprep.subr.mxu0 0.0
    %591 = vmatpush1.msra.mxu0 0.0
    %592 = vmatprep.subr.mxu0 0.0
    %593 = vmatpush1.msra.mxu0 0.0
    %594 = vmatprep.subr.mxu0 0.0
    %595 = vmatpush1.msra.mxu0 0.0
    %596 = vmatprep.subr.mxu0 0.0
    %597 = vmatpush1.msra.mxu0 0.0
    %598 = vmatprep.mubr.f32.mxu0 0.0
    %599 = vmatmul.mubr.f32.gmra.mrb[0].mxu0 %v532
    %v600 = vpop.f32.mrb[0].mxu0
    %v601 = vadd.f32 0.0, %v600
    %v602 = vpop.f32.mrb[0].mxu0
    %603 = vdwg.mxu0
    %604 = vrot.lane.b32.xlu0 %v155, 64
    %v605 = vpop.permute.xlu0 %604
    %v608 = vsel %vm483, %v525, 0
    %610 = vmatprep.subr.mxu0 0.0
    %611 = vmatpush1.msra.mxu0 %v605
    %612 = vmatprep.subr.mxu0 0.0
    %613 = vmatpush1.msra.mxu0 0.0
    %614 = vmatprep.subr.mxu0 0.0
    %615 = vmatpush1.msra.mxu0 0.0
    %616 = vmatprep.subr.mxu0 0.0
    %617 = vmatpush1.msra.mxu0 0.0
    %618 = vmatprep.subr.mxu0 0.0
    %619 = vmatpush1.msra.mxu0 0.0
    %620 = vmatprep.subr.mxu0 0.0
    %621 = vmatpush1.msra.mxu0 0.0
    %622 = vmatprep.subr.mxu0 0.0
    %623 = vmatpush1.msra.mxu0 0.0
    %624 = vmatprep.subr.mxu0 0.0
    %625 = vmatpush1.msra.mxu0 0.0
    %626 = vmatprep.subr.mxu0 0.0
    %627 = vmatpush1.msra.mxu0 0.0
    %628 = vmatprep.subr.mxu0 0.0
    %629 = vmatpush1.msra.mxu0 0.0
    %630 = vmatprep.subr.mxu0 0.0
    %631 = vmatpush1.msra.mxu0 0.0
    %632 = vmatprep.subr.mxu0 0.0
    %633 = vmatpush1.msra.mxu0 0.0
    %634 = vmatprep.subr.mxu0 0.0
    %635 = vmatpush1.msra.mxu0 0.0
    %636 = vmatprep.subr.mxu0 0.0
    %637 = vmatpush1.msra.mxu0 0.0
    %638 = vmatprep.subr.mxu0 0.0
    %639 = vmatpush1.msra.mxu0 0.0
    %640 = vmatprep.subr.mxu0 0.0
    %641 = vmatpush1.msra.mxu0 0.0
    %642 = vmatprep.subr.mxu0 0.0
    %643 = vmatpush1.msra.mxu0 0.0
    %644 = vmatprep.subr.mxu0 0.0
    %645 = vmatpush1.msra.mxu0 0.0
    %646 = vmatprep.subr.mxu0 0.0
    %647 = vmatpush1.msra.mxu0 0.0
    %648 = vmatprep.subr.mxu0 0.0
    %649 = vmatpush1.msra.mxu0 0.0
    %650 = vmatprep.subr.mxu0 0.0
    %651 = vmatpush1.msra.mxu0 0.0
    %652 = vmatprep.subr.mxu0 0.0
    %653 = vmatpush1.msra.mxu0 0.0
    %654 = vmatprep.subr.mxu0 0.0
    %655 = vmatpush1.msra.mxu0 0.0
    %656 = vmatprep.subr.mxu0 0.0
    %657 = vmatpush1.msra.mxu0 0.0
    %658 = vmatprep.subr.mxu0 0.0
    %659 = vmatpush1.msra.mxu0 0.0
    %660 = vmatprep.subr.mxu0 0.0
    %661 = vmatpush1.msra.mxu0 0.0
    %662 = vmatprep.subr.mxu0 0.0
    %663 = vmatpush1.msra.mxu0 0.0
    %664 = vmatprep.subr.mxu0 0.0
    %665 = vmatpush1.msra.mxu0 0.0
    %666 = vmatprep.subr.mxu0 0.0
    %667 = vmatpush1.msra.mxu0 0.0
    %668 = vmatprep.subr.mxu0 0.0
    %669 = vmatpush1.msra.mxu0 0.0
    %670 = vmatprep.subr.mxu0 0.0
    %671 = vmatpush1.msra.mxu0 0.0
    %672 = vmatprep.subr.mxu0 0.0
    %673 = vmatpush1.msra.mxu0 0.0
    %674 = vmatprep.mubr.f32.mxu0 0.0
    %675 = vmatmul.mubr.f32.gmra.mrb[0].mxu0 %v608
    %v676 = vpop.f32.mrb[0].mxu0
    %v677 = vadd.f32 0.0, %v676
    %v678 = vpop.f32.mrb[0].mxu0
    %679 = vdwg.mxu0
    %680 = vrot.lane.b32.xlu0 %v171, 64
    %v681 = vpop.permute.xlu0 %680
    %v684 = vsel %vm483, %v526, 0
    %686 = vmatprep.subr.mxu0 0.0
    %687 = vmatpush1.msra.mxu0 %v681
    %688 = vmatprep.subr.mxu0 0.0
    %689 = vmatpush1.msra.mxu0 0.0
    %690 = vmatprep.subr.mxu0 0.0
    %691 = vmatpush1.msra.mxu0 0.0
    %692 = vmatprep.subr.mxu0 0.0
    %693 = vmatpush1.msra.mxu0 0.0
    %694 = vmatprep.subr.mxu0 0.0
    %695 = vmatpush1.msra.mxu0 0.0
    %696 = vmatprep.subr.mxu0 0.0
    %697 = vmatpush1.msra.mxu0 0.0
    %698 = vmatprep.subr.mxu0 0.0
    %699 = vmatpush1.msra.mxu0 0.0
    %700 = vmatprep.subr.mxu0 0.0
    %701 = vmatpush1.msra.mxu0 0.0
    %702 = vmatprep.subr.mxu0 0.0
    %703 = vmatpush1.msra.mxu0 0.0
    %704 = vmatprep.subr.mxu0 0.0
    %705 = vmatpush1.msra.mxu0 0.0
    %706 = vmatprep.subr.mxu0 0.0
    %707 = vmatpush1.msra.mxu0 0.0
    %708 = vmatprep.subr.mxu0 0.0
    %709 = vmatpush1.msra.mxu0 0.0
    %710 = vmatprep.subr.mxu0 0.0
    %711 = vmatpush1.msra.mxu0 0.0
    %712 = vmatprep.subr.mxu0 0.0
    %713 = vmatpush1.msra.mxu0 0.0
    %714 = vmatprep.subr.mxu0 0.0
    %715 = vmatpush1.msra.mxu0 0.0
    %716 = vmatprep.subr.mxu0 0.0
    %717 = vmatpush1.msra.mxu0 0.0
    %718 = vmatprep.subr.mxu0 0.0
    %719 = vmatpush1.msra.mxu0 0.0
    %720 = vmatprep.subr.mxu0 0.0
    %721 = vmatpush1.msra.mxu0 0.0
    %722 = vmatprep.subr.mxu0 0.0
    %723 = vmatpush1.msra.mxu0 0.0
    %724 = vmatprep.subr.mxu0 0.0
    %725 = vmatpush1.msra.mxu0 0.0
    %726 = vmatprep.subr.mxu0 0.0
    %727 = vmatpush1.msra.mxu0 0.0
    %728 = vmatprep.subr.mxu0 0.0
    %729 = vmatpush1.msra.mxu0 0.0
    %730 = vmatprep.subr.mxu0 0.0
    %731 = vmatpush1.msra.mxu0 0.0
    %732 = vmatprep.subr.mxu0 0.0
    %733 = vmatpush1.msra.mxu0 0.0
    %734 = vmatprep.subr.mxu0 0.0
    %735 = vmatpush1.msra.mxu0 0.0
    %736 = vmatprep.subr.mxu0 0.0
    %737 = vmatpush1.msra.mxu0 0.0
    %738 = vmatprep.subr.mxu0 0.0
    %739 = vmatpush1.msra.mxu0 0.0
    %740 = vmatprep.subr.mxu0 0.0
    %741 = vmatpush1.msra.mxu0 0.0
    %742 = vmatprep.subr.mxu0 0.0
    %743 = vmatpush1.msra.mxu0 0.0
    %744 = vmatprep.subr.mxu0 0.0
    %745 = vmatpush1.msra.mxu0 0.0
    %746 = vmatprep.subr.mxu0 0.0
    %747 = vmatpush1.msra.mxu0 0.0
    %748 = vmatprep.subr.mxu0 0.0
    %749 = vmatpush1.msra.mxu0 0.0
    %750 = vmatprep.mubr.f32.mxu0 0.0
    %751 = vmatmul.mubr.f32.gmra.mrb[0].mxu0 %v684
    %v752 = vpop.f32.mrb[0].mxu0
    %v753 = vadd.f32 0.0, %v752
    %v754 = vpop.f32.mrb[0].mxu0
    %755 = vdwg.mxu0
    %756 = vrot.lane.b32.xlu0 %v173, 64
    %v757 = vpop.permute.xlu0 %756
    %v760 = vsel %vm483, %v527, 0
    %762 = vmatprep.subr.mxu0 0.0
    %763 = vmatpush1.msra.mxu0 %v757
    %764 = vmatprep.subr.mxu0 0.0
    %765 = vmatpush1.msra.mxu0 0.0
    %766 = vmatprep.subr.mxu0 0.0
    %767 = vmatpush1.msra.mxu0 0.0
    %768 = vmatprep.subr.mxu0 0.0
    %769 = vmatpush1.msra.mxu0 0.0
    %770 = vmatprep.subr.mxu0 0.0
    %771 = vmatpush1.msra.mxu0 0.0
    %772 = vmatprep.subr.mxu0 0.0
    %773 = vmatpush1.msra.mxu0 0.0
    %774 = vmatprep.subr.mxu0 0.0
    %775 = vmatpush1.msra.mxu0 0.0
    %776 = vmatprep.subr.mxu0 0.0
    %777 = vmatpush1.msra.mxu0 0.0
    %778 = vmatprep.subr.mxu0 0.0
    %779 = vmatpush1.msra.mxu0 0.0
    %780 = vmatprep.subr.mxu0 0.0
    %781 = vmatpush1.msra.mxu0 0.0
    %782 = vmatprep.subr.mxu0 0.0
    %783 = vmatpush1.msra.mxu0 0.0
    %784 = vmatprep.subr.mxu0 0.0
    %785 = vmatpush1.msra.mxu0 0.0
    %786 = vmatprep.subr.mxu0 0.0
    %787 = vmatpush1.msra.mxu0 0.0
    %788 = vmatprep.subr.mxu0 0.0
    %789 = vmatpush1.msra.mxu0 0.0
    %790 = vmatprep.subr.mxu0 0.0
    %791 = vmatpush1.msra.mxu0 0.0
    %792 = vmatprep.subr.mxu0 0.0
    %793 = vmatpush1.msra.mxu0 0.0
    %794 = vmatprep.subr.mxu0 0.0
    %795 = vmatpush1.msra.mxu0 0.0
    %796 = vmatprep.subr.mxu0 0.0
    %797 = vmatpush1.msra.mxu0 0.0
    %798 = vmatprep.subr.mxu0 0.0
    %799 = vmatpush1.msra.mxu0 0.0
    %800 = vmatprep.subr.mxu0 0.0
    %801 = vmatpush1.msra.mxu0 0.0
    %802 = vmatprep.subr.mxu0 0.0
    %803 = vmatpush1.msra.mxu0 0.0
    %804 = vmatprep.subr.mxu0 0.0
    %805 = vmatpush1.msra.mxu0 0.0
    %806 = vmatprep.subr.mxu0 0.0
    %807 = vmatpush1.msra.mxu0 0.0
    %808 = vmatprep.subr.mxu0 0.0
    %809 = vmatpush1.msra.mxu0 0.0
    %810 = vmatprep.subr.mxu0 0.0
    %811 = vmatpush1.msra.mxu0 0.0
    %812 = vmatprep.subr.mxu0 0.0
    %813 = vmatpush1.msra.mxu0 0.0
    %814 = vmatprep.subr.mxu0 0.0
    %815 = vmatpush1.msra.mxu0 0.0
    %816 = vmatprep.subr.mxu0 0.0
    %817 = vmatpush1.msra.mxu0 0.0
    %818 = vmatprep.subr.mxu0 0.0
    %819 = vmatpush1.msra.mxu0 0.0
    %820 = vmatprep.subr.mxu0 0.0
    %821 = vmatpush1.msra.mxu0 0.0
    %822 = vmatprep.subr.mxu0 0.0
    %823 = vmatpush1.msra.mxu0 0.0
    %824 = vmatprep.subr.mxu0 0.0
    %825 = vmatpush1.msra.mxu0 0.0
    %826 = vmatprep.mubr.f32.mxu0 0.0
    %827 = vmatmul.mubr.f32.gmra.mrb[0].mxu0 %v760
    %v828 = vpop.f32.mrb[0].mxu0
    %v829 = vadd.f32 0.0, %v828
    %v830 = vpop.f32.mrb[0].mxu0
    %831 = vdwg.mxu0
    %834 = vrot.lane.b32.xlu0 %v753, 16
    %v835 = vpop.permute.xlu0 %834
    %836 = vrot.lane.b32.xlu0 %v829, 16
    %v837 = vpop.permute.xlu0 %836
    %v840 = vsel %vm176, %v601, %v835
    %v841 = vsel %vm176, %v677, %v837
    %v842 = vld [vmem:[%s3] sm:$0xff]
    %v843 = vld [vmem:[%s3 + $0x8] sm:$0xff]
    %v844 = vld [vmem:[%s3 + $0x10] sm:$0xff]
    %v845 = vld [vmem:[%s3 + $0x18] sm:$0xff]
    %v846 = vlaneseq
    %v847 = vshrl.u32 %v846, 7
    %v848 = vsub.s32 3, %v847
    %v849 = vrot.slane %v42, %v848
    %v851 = vsel %vm48, %v840, 0
    %v854 = vsel %vm48, %v841, 0
    %856 = vmatprep.subr.mxu0 0.0
    %857 = vmatpush1.msra.mxu0 %v842
    %858 = vmatprep.subr.mxu0 0.0
    %859 = vmatpush1.msra.mxu0 %v843
    %860 = vmatprep.subr.mxu0 0.0
    %861 = vmatpush1.msra.mxu0 %v844
    %862 = vmatprep.subr.mxu0 0.0
    %863 = vmatpush1.msra.mxu0 %v845
    %864 = vmatprep.subr.mxu0 0.0
    %865 = vmatpush1.msra.mxu0 0.0
    %866 = vmatprep.subr.mxu0 0.0
    %867 = vmatpush1.msra.mxu0 0.0
    %868 = vmatprep.subr.mxu0 0.0
    %869 = vmatpush1.msra.mxu0 0.0
    %870 = vmatprep.subr.mxu0 0.0
    %871 = vmatpush1.msra.mxu0 0.0
    %872 = vmatprep.subr.mxu0 0.0
    %873 = vmatpush1.msra.mxu0 0.0
    %874 = vmatprep.subr.mxu0 0.0
    %875 = vmatpush1.msra.mxu0 0.0
    %876 = vmatprep.subr.mxu0 0.0
    %877 = vmatpush1.msra.mxu0 0.0
    %878 = vmatprep.subr.mxu0 0.0
    %879 = vmatpush1.msra.mxu0 0.0
    %880 = vmatprep.subr.mxu0 0.0
    %881 = vmatpush1.msra.mxu0 0.0
    %882 = vmatprep.subr.mxu0 0.0
    %883 = vmatpush1.msra.mxu0 0.0
    %884 = vmatprep.subr.mxu0 0.0
    %885 = vmatpush1.msra.mxu0 0.0
    %886 = vmatprep.subr.mxu0 0.0
    %887 = vmatpush1.msra.mxu0 0.0
    %888 = vmatprep.subr.mxu0 0.0
    %889 = vmatpush1.msra.mxu0 0.0
    %890 = vmatprep.subr.mxu0 0.0
    %891 = vmatpush1.msra.mxu0 0.0
    %892 = vmatprep.subr.mxu0 0.0
    %893 = vmatpush1.msra.mxu0 0.0
    %894 = vmatprep.subr.mxu0 0.0
    %895 = vmatpush1.msra.mxu0 0.0
    %896 = vmatprep.subr.mxu0 0.0
    %897 = vmatpush1.msra.mxu0 0.0
    %898 = vmatprep.subr.mxu0 0.0
    %899 = vmatpush1.msra.mxu0 0.0
    %900 = vmatprep.subr.mxu0 0.0
    %901 = vmatpush1.msra.mxu0 0.0
    %902 = vmatprep.subr.mxu0 0.0
    %903 = vmatpush1.msra.mxu0 0.0
    %904 = vmatprep.subr.mxu0 0.0
    %905 = vmatpush1.msra.mxu0 0.0
    %906 = vmatprep.subr.mxu0 0.0
    %907 = vmatpush1.msra.mxu0 0.0
    %908 = vmatprep.subr.mxu0 0.0
    %909 = vmatpush1.msra.mxu0 0.0
    %910 = vmatprep.subr.mxu0 0.0
    %911 = vmatpush1.msra.mxu0 0.0
    %912 = vmatprep.subr.mxu0 0.0
    %913 = vmatpush1.msra.mxu0 0.0
    %914 = vmatprep.subr.mxu0 0.0
    %915 = vmatpush1.msra.mxu0 0.0
    %916 = vmatprep.subr.mxu0 0.0
    %917 = vmatpush1.msra.mxu0 0.0
    %918 = vmatprep.subr.mxu0 0.0
    %919 = vmatpush1.msra.mxu0 0.0
    %920 = vmatprep.mubr.f32.mxu0 0.0
    %921 = vmatmul.mubr.f32.gmra.mrb[0].mxu0 %v851
    %v922 = vpop.f32.mrb[0].mxu0
    %v923 = vadd.f32 %v849, %v922
    %v924 = vpop.f32.mrb[0].mxu0
    %925 = vmatprep.mubr.f32.mxu0 0.0
    %926 = vmatmul.mubr.f32.gmra.mrb[0].mxu0 %v854
    %v927 = vpop.f32.mrb[0].mxu0
    %v928 = vadd.f32 %v849, %v927
    %v929 = vpop.f32.mrb[0].mxu0
    %930 = vdwg.mxu0
    %v931 = vadd.f32 %v40, %v923
    %v932 = vadd.f32 %v41, %v928
    %v933 = vsel %vm48, %v931, 0.0
    %934 = vadd.xlane.f32.xlu0 %v933
    %v935 = vpop.xlane.xlu0 %934
    %v936 = vsel %vm48, %v932, 0.0
    %937 = vadd.xlane.f32.xlu0 %v936
    %v938 = vpop.xlane.xlu0 %937
    %v939 = vrcp.pop 32.0
    %v940 = vmul.f32 %v935, %v939
    %v941 = vmul.f32 %v938, %v939
    %v942 = vsub.f32 %v931, %v940
    %v943 = vsub.f32 %v932, %v941
    %v944 = vmul.f32 %v942, %v942
    %v945 = vmul.f32 %v943, %v943
    %v946 = vsel %vm48, %v944, 0.0
    %947 = vadd.xlane.f32.xlu0 %v946
    %v948 = vpop.xlane.xlu0 %947
    %v949 = vsel %vm48, %v945, 0.0
    %950 = vadd.xlane.f32.xlu0 %v949
    %v951 = vpop.xlane.xlu0 %950
    %v952 = vmul.f32 %v948, %v939
    %v953 = vmul.f32 %v951, %v939
    %v954 = vadd.f32 %v952, 1e-05
    %v955 = vadd.f32 %v953, 1e-05
    %v956 = vrsqrt.pop %v954
    %v957 = vrsqrt.pop %v955
    %v958 = vmul.f32 %v942, %v956
    %v959 = vmul.f32 %v943, %v957
    %v960 = vlaneseq
    %v961 = vshrl.u32 %v960, 7
    %v962 = vsub.s32 4, %v961
    %v963 = vrot.slane %v42, %v962
    %v964 = vmul.f32 %v958, %v963
    %v965 = vmul.f32 %v959, %v963
    %v966 = vlaneseq
    %v967 = vshrl.u32 %v966, 7
    %v968 = vsub.s32 5, %v967
    %v969 = vrot.slane %v42, %v968
    %v970 = vadd.f32 %v964, %v969
    %v971 = vadd.f32 %v965, %v969
    %v972 = vpack.c.bf16 %v971, %v970
    %v973 = vld [vmem:[%s5] sm:$0xff]
    %v974 = vld [vmem:[%s5 + $0x8] sm:$0xff]
    %v975 = vld [vmem:[%s5 + $0x10] sm:$0xff]
    %v976 = vld [vmem:[%s5 + $0x18] sm:$0xff]
    %v977 = vld [vmem:[%s5 + $0x40] sm:$0xff]
    %v978 = vld [vmem:[%s5 + $0x48] sm:$0xff]
    %v979 = vld [vmem:[%s5 + $0x50] sm:$0xff]
    %v980 = vld [vmem:[%s5 + $0x58] sm:$0xff]
    %v981 = vld [vmem:[%s5 + $0x80] sm:$0xff]
    %v982 = vld [vmem:[%s5 + $0x88] sm:$0xff]
    %v983 = vld [vmem:[%s5 + $0x90] sm:$0xff]
    %v984 = vld [vmem:[%s5 + $0x98] sm:$0xff]
    %v985 = vld [vmem:[%s5 + $0xc0] sm:$0xff]
    %v986 = vld [vmem:[%s5 + $0xc8] sm:$0xff]
    %v987 = vld [vmem:[%s5 + $0xd0] sm:$0xff]
    %v988 = vld [vmem:[%s5 + $0xd8] sm:$0xff]
    %v989 = vld [vmem:[%s6] sm:$0xff]
    %v991 = vlaneseq
    %v992 = vshrl.u32 %v991, 7
    %v993 = vsub.s32 0, %v992
    %v994 = vrot.slane %v989, %v993
    %v995 = vlaneseq
    %v996 = vshrl.u32 %v995, 7
    %v997 = vsub.s32 1, %v996
    %v998 = vrot.slane %v989, %v997
    %v999 = vlaneseq
    %v1000 = vshrl.u32 %v999, 7
    %v1001 = vsub.s32 2, %v1000
    %v1002 = vrot.slane %v989, %v1001
    %v1003 = vlaneseq
    %v1004 = vshrl.u32 %v1003, 7
    %v1005 = vsub.s32 3, %v1004
    %v1006 = vrot.slane %v989, %v1005
    %v1007 = vlaneseq
    %v1008 = vshrl.u32 %v1007, 7
    %v1009 = vsub.s32 4, %v1008
    %v1010 = vrot.slane %v989, %v1009
    %v1011 = vlaneseq
    %v1012 = vshrl.u32 %v1011, 7
    %v1013 = vsub.s32 5, %v1012
    %v1014 = vrot.slane %v989, %v1013
    %v1015 = vlaneseq
    %v1016 = vshrl.u32 %v1015, 7
    %v1017 = vsub.s32 6, %v1016
    %v1018 = vrot.slane %v989, %v1017
    %v1019 = vlaneseq
    %v1020 = vshrl.u32 %v1019, 7
    %v1021 = vsub.s32 7, %v1020
    %v1022 = vrot.slane %v989, %v1021
    %v1047 = vunpack.c.l.b16 %v973
    %v1048 = vunpack.c.h.b16 %v973
    %v1049 = vunpack.c.l.b16 %v974
    %v1050 = vunpack.c.h.b16 %v974
    %v1051 = vunpack.c.l.b16 %v975
    %v1052 = vunpack.c.h.b16 %v975
    %v1053 = vunpack.c.l.b16 %v976
    %v1054 = vunpack.c.h.b16 %v976
    %v1055 = vunpack.c.l.b16 %v977
    %v1056 = vunpack.c.h.b16 %v977
    %v1057 = vunpack.c.l.b16 %v978
    %v1058 = vunpack.c.h.b16 %v978
    %v1059 = vunpack.c.l.b16 %v979
    %v1060 = vunpack.c.h.b16 %v979
    %v1061 = vunpack.c.l.b16 %v980
    %v1062 = vunpack.c.h.b16 %v980
    %v1063 = vunpack.c.l.b16 %v981
    %v1064 = vunpack.c.h.b16 %v981
    %v1065 = vunpack.c.l.b16 %v982
    %v1066 = vunpack.c.h.b16 %v982
    %v1067 = vunpack.c.l.b16 %v983
    %v1068 = vunpack.c.h.b16 %v983
    %v1069 = vunpack.c.l.b16 %v984
    %v1070 = vunpack.c.h.b16 %v984
    %v1071 = vunpack.c.l.b16 %v985
    %v1072 = vunpack.c.h.b16 %v985
    %v1073 = vunpack.c.l.b16 %v986
    %v1074 = vunpack.c.h.b16 %v986
    %v1075 = vunpack.c.l.b16 %v987
    %v1076 = vunpack.c.h.b16 %v987
    %v1077 = vunpack.c.l.b16 %v988
    %v1078 = vunpack.c.h.b16 %v988
    %v1079 = vpack.c.b16 %v1055, %v1047
    %v1080 = vpack.c.b16 %v1056, %v1048
    %v1081 = vpack.c.b16 %v1057, %v1049
    %v1082 = vpack.c.b16 %v1058, %v1050
    %v1083 = vpack.c.b16 %v1059, %v1051
    %v1084 = vpack.c.b16 %v1060, %v1052
    %v1085 = vpack.c.b16 %v1061, %v1053
    %v1086 = vpack.c.b16 %v1062, %v1054
    %v1087 = vpack.c.b16 %v1071, %v1063
    %v1088 = vpack.c.b16 %v1072, %v1064
    %v1089 = vpack.c.b16 %v1073, %v1065
    %v1090 = vpack.c.b16 %v1074, %v1066
    %v1091 = vpack.c.b16 %v1075, %v1067
    %v1092 = vpack.c.b16 %v1076, %v1068
    %v1093 = vpack.c.b16 %v1077, %v1069
    %v1094 = vpack.c.b16 %v1078, %v1070
    %v1112 = vsel %vm48, %v972, 0
    %1114 = vmatprep.subr.bf16.mxu0 %v1080
    %1115 = vmatpush1.bf16.msra.mxu0 %v1079
    %1116 = vmatprep.subr.bf16.mxu0 %v1088
    %1117 = vmatpush1.bf16.msra.mxu0 %v1087
    %1118 = vmatprep.subr.bf16.mxu0 0
    %1119 = vmatpush1.bf16.msra.mxu0 0
    %1120 = vmatprep.subr.bf16.mxu0 0
    %1121 = vmatpush1.bf16.msra.mxu0 0
    %1122 = vmatprep.subr.bf16.mxu0 0
    %1123 = vmatpush1.bf16.msra.mxu0 0
    %1124 = vmatprep.subr.bf16.mxu0 0
    %1125 = vmatpush1.bf16.msra.mxu0 0
    %1126 = vmatprep.subr.bf16.mxu0 0
    %1127 = vmatpush1.bf16.msra.mxu0 0
    %1128 = vmatprep.subr.bf16.mxu0 0
    %1129 = vmatpush1.bf16.msra.mxu0 0
    %1130 = vmatprep.subr.bf16.mxu0 0
    %1131 = vmatpush1.bf16.msra.mxu0 0
    %1132 = vmatprep.subr.bf16.mxu0 0
    %1133 = vmatpush1.bf16.msra.mxu0 0
    %1134 = vmatprep.subr.bf16.mxu0 0
    %1135 = vmatpush1.bf16.msra.mxu0 0
    %1136 = vmatprep.subr.bf16.mxu0 0
    %1137 = vmatpush1.bf16.msra.mxu0 0
    %1138 = vmatprep.subr.bf16.mxu0 0
    %1139 = vmatpush1.bf16.msra.mxu0 0
    %1140 = vmatprep.subr.bf16.mxu0 0
    %1141 = vmatpush1.bf16.msra.mxu0 0
    %1142 = vmatprep.subr.bf16.mxu0 0
    %1143 = vmatpush1.bf16.msra.mxu0 0
    %1144 = vmatprep.subr.bf16.mxu0 0
    %1145 = vmatpush1.bf16.msra.mxu0 0
    %1146 = vmatprep.mubr.bf16.mxu0 0
    %1147 = vmatmul.mubr.bf16.gmra.mrb[0].mxu0 %v1112
    %v1148 = vpop.f32.mrb[0].mxu0
    %v1149 = vadd.f32 %v994, %v1148
    %v1150 = vpop.f32.mrb[0].mxu0
    %v1151 = vadd.f32 %v998, %v1150
    %v1152 = vpop.f32.mrb[0].mxu0
    %v1153 = vadd.f32 %v994, %v1152
    %v1154 = vpop.f32.mrb[0].mxu0
    %v1155 = vadd.f32 %v998, %v1154
    %1156 = vdwg.mxu0
    %1157 = vmatprep.subr.bf16.mxu0 %v1082
    %1158 = vmatpush1.bf16.msra.mxu0 %v1081
    %1159 = vmatprep.subr.bf16.mxu0 %v1090
    %1160 = vmatpush1.bf16.msra.mxu0 %v1089
    %1161 = vmatprep.subr.bf16.mxu0 0
    %1162 = vmatpush1.bf16.msra.mxu0 0
    %1163 = vmatprep.subr.bf16.mxu0 0
    %1164 = vmatpush1.bf16.msra.mxu0 0
    %1165 = vmatprep.subr.bf16.mxu0 0
    %1166 = vmatpush1.bf16.msra.mxu0 0
    %1167 = vmatprep.subr.bf16.mxu0 0
    %1168 = vmatpush1.bf16.msra.mxu0 0
    %1169 = vmatprep.subr.bf16.mxu0 0
    %1170 = vmatpush1.bf16.msra.mxu0 0
    %1171 = vmatprep.subr.bf16.mxu0 0
    %1172 = vmatpush1.bf16.msra.mxu0 0
    %1173 = vmatprep.subr.bf16.mxu0 0
    %1174 = vmatpush1.bf16.msra.mxu0 0
    %1175 = vmatprep.subr.bf16.mxu0 0
    %1176 = vmatpush1.bf16.msra.mxu0 0
    %1177 = vmatprep.subr.bf16.mxu0 0
    %1178 = vmatpush1.bf16.msra.mxu0 0
    %1179 = vmatprep.subr.bf16.mxu0 0
    %1180 = vmatpush1.bf16.msra.mxu0 0
    %1181 = vmatprep.subr.bf16.mxu0 0
    %1182 = vmatpush1.bf16.msra.mxu0 0
    %1183 = vmatprep.subr.bf16.mxu0 0
    %1184 = vmatpush1.bf16.msra.mxu0 0
    %1185 = vmatprep.subr.bf16.mxu0 0
    %1186 = vmatpush1.bf16.msra.mxu0 0
    %1187 = vmatprep.subr.bf16.mxu0 0
    %1188 = vmatpush1.bf16.msra.mxu0 0
    %1189 = vmatprep.mubr.bf16.mxu0 0
    %1190 = vmatmul.mubr.bf16.gmra.mrb[0].mxu0 %v1112
    %v1191 = vpop.f32.mrb[0].mxu0
    %v1192 = vadd.f32 %v1002, %v1191
    %v1193 = vpop.f32.mrb[0].mxu0
    %v1194 = vadd.f32 %v1006, %v1193
    %v1195 = vpop.f32.mrb[0].mxu0
    %v1196 = vadd.f32 %v1002, %v1195
    %v1197 = vpop.f32.mrb[0].mxu0
    %v1198 = vadd.f32 %v1006, %v1197
    %1199 = vdwg.mxu0
    %1200 = vmatprep.subr.bf16.mxu0 %v1084
    %1201 = vmatpush1.bf16.msra.mxu0 %v1083
    %1202 = vmatprep.subr.bf16.mxu0 %v1092
    %1203 = vmatpush1.bf16.msra.mxu0 %v1091
    %1204 = vmatprep.subr.bf16.mxu0 0
    %1205 = vmatpush1.bf16.msra.mxu0 0
    %1206 = vmatprep.subr.bf16.mxu0 0
    %1207 = vmatpush1.bf16.msra.mxu0 0
    %1208 = vmatprep.subr.bf16.mxu0 0
    %1209 = vmatpush1.bf16.msra.mxu0 0
    %1210 = vmatprep.subr.bf16.mxu0 0
    %1211 = vmatpush1.bf16.msra.mxu0 0
    %1212 = vmatprep.subr.bf16.mxu0 0
    %1213 = vmatpush1.bf16.msra.mxu0 0
    %1214 = vmatprep.subr.bf16.mxu0 0
    %1215 = vmatpush1.bf16.msra.mxu0 0
    %1216 = vmatprep.subr.bf16.mxu0 0
    %1217 = vmatpush1.bf16.msra.mxu0 0
    %1218 = vmatprep.subr.bf16.mxu0 0
    %1219 = vmatpush1.bf16.msra.mxu0 0
    %1220 = vmatprep.subr.bf16.mxu0 0
    %1221 = vmatpush1.bf16.msra.mxu0 0
    %1222 = vmatprep.subr.bf16.mxu0 0
    %1223 = vmatpush1.bf16.msra.mxu0 0
    %1224 = vmatprep.subr.bf16.mxu0 0
    %1225 = vmatpush1.bf16.msra.mxu0 0
    %1226 = vmatprep.subr.bf16.mxu0 0
    %1227 = vmatpush1.bf16.msra.mxu0 0
    %1228 = vmatprep.subr.bf16.mxu0 0
    %1229 = vmatpush1.bf16.msra.mxu0 0
    %1230 = vmatprep.subr.bf16.mxu0 0
    %1231 = vmatpush1.bf16.msra.mxu0 0
    %1232 = vmatprep.mubr.bf16.mxu0 0
    %1233 = vmatmul.mubr.bf16.gmra.mrb[0].mxu0 %v1112
    %v1234 = vpop.f32.mrb[0].mxu0
    %v1235 = vadd.f32 %v1010, %v1234
    %v1236 = vpop.f32.mrb[0].mxu0
    %v1237 = vadd.f32 %v1014, %v1236
    %v1238 = vpop.f32.mrb[0].mxu0
    %v1239 = vadd.f32 %v1010, %v1238
    %v1240 = vpop.f32.mrb[0].mxu0
    %v1241 = vadd.f32 %v1014, %v1240
    %1242 = vdwg.mxu0
    %1243 = vmatprep.subr.bf16.mxu0 %v1086
    %1244 = vmatpush1.bf16.msra.mxu0 %v1085
    %1245 = vmatprep.subr.bf16.mxu0 %v1094
    %1246 = vmatpush1.bf16.msra.mxu0 %v1093
    %1247 = vmatprep.subr.bf16.mxu0 0
    %1248 = vmatpush1.bf16.msra.mxu0 0
    %1249 = vmatprep.subr.bf16.mxu0 0
    %1250 = vmatpush1.bf16.msra.mxu0 0
    %1251 = vmatprep.subr.bf16.mxu0 0
    %1252 = vmatpush1.bf16.msra.mxu0 0
    %1253 = vmatprep.subr.bf16.mxu0 0
    %1254 = vmatpush1.bf16.msra.mxu0 0
    %1255 = vmatprep.subr.bf16.mxu0 0
    %1256 = vmatpush1.bf16.msra.mxu0 0
    %1257 = vmatprep.subr.bf16.mxu0 0
    %1258 = vmatpush1.bf16.msra.mxu0 0
    %1259 = vmatprep.subr.bf16.mxu0 0
    %1260 = vmatpush1.bf16.msra.mxu0 0
    %1261 = vmatprep.subr.bf16.mxu0 0
    %1262 = vmatpush1.bf16.msra.mxu0 0
    %1263 = vmatprep.subr.bf16.mxu0 0
    %1264 = vmatpush1.bf16.msra.mxu0 0
    %1265 = vmatprep.subr.bf16.mxu0 0
    %1266 = vmatpush1.bf16.msra.mxu0 0
    %1267 = vmatprep.subr.bf16.mxu0 0
    %1268 = vmatpush1.bf16.msra.mxu0 0
    %1269 = vmatprep.subr.bf16.mxu0 0
    %1270 = vmatpush1.bf16.msra.mxu0 0
    %1271 = vmatprep.subr.bf16.mxu0 0
    %1272 = vmatpush1.bf16.msra.mxu0 0
    %1273 = vmatprep.subr.bf16.mxu0 0
    %1274 = vmatpush1.bf16.msra.mxu0 0
    %1275 = vmatprep.mubr.bf16.mxu0 0
    %1276 = vmatmul.mubr.bf16.gmra.mrb[0].mxu0 %v1112
    %v1277 = vpop.f32.mrb[0].mxu0
    %v1278 = vadd.f32 %v1018, %v1277
    %v1279 = vpop.f32.mrb[0].mxu0
    %v1280 = vadd.f32 %v1022, %v1279
    %v1281 = vpop.f32.mrb[0].mxu0
    %v1282 = vadd.f32 %v1018, %v1281
    %v1283 = vpop.f32.mrb[0].mxu0
    %v1284 = vadd.f32 %v1022, %v1283
    %1285 = vdwg.mxu0
    %v1286 = vmax.f32 %v1149, 0.0
    %v1287 = vmax.f32 %v1151, 0.0
    %v1288 = vmax.f32 %v1192, 0.0
    %v1289 = vmax.f32 %v1194, 0.0
    %v1290 = vmax.f32 %v1235, 0.0
    %v1291 = vmax.f32 %v1237, 0.0
    %v1292 = vmax.f32 %v1278, 0.0
    %v1293 = vmax.f32 %v1280, 0.0
    %v1294 = vmax.f32 %v1153, 0.0
    %v1295 = vmax.f32 %v1155, 0.0
    %v1296 = vmax.f32 %v1196, 0.0
    %v1297 = vmax.f32 %v1198, 0.0
    %v1298 = vmax.f32 %v1239, 0.0
    %v1299 = vmax.f32 %v1241, 0.0
    %v1300 = vmax.f32 %v1282, 0.0
    %v1301 = vmax.f32 %v1284, 0.0
    %v1302 = vpack.c.bf16 %v1294, %v1286
    %v1303 = vpack.c.bf16 %v1295, %v1287
    %v1304 = vpack.c.bf16 %v1296, %v1288
    %v1305 = vpack.c.bf16 %v1297, %v1289
    %v1306 = vpack.c.bf16 %v1298, %v1290
    %v1307 = vpack.c.bf16 %v1299, %v1291
    %v1308 = vpack.c.bf16 %v1300, %v1292
    %v1309 = vpack.c.bf16 %v1301, %v1293
    %v1310 = vld [vmem:[%s7] sm:$0xf]
    %v1311 = vld [vmem:[%s7 + $0x4] sm:$0xf]
    %v1312 = vld [vmem:[%s7 + $0x8] sm:$0xf]
    %v1313 = vld [vmem:[%s7 + $0xc] sm:$0xf]
    %v1314 = vld [vmem:[%s7 + $0x10] sm:$0xf]
    %v1315 = vld [vmem:[%s7 + $0x14] sm:$0xf]
    %v1316 = vld [vmem:[%s7 + $0x18] sm:$0xf]
    %v1317 = vld [vmem:[%s7 + $0x1c] sm:$0xf]
    %v1318 = vld [vmem:[%s7 + $0x20] sm:$0xf]
    %v1319 = vld [vmem:[%s7 + $0x24] sm:$0xf]
    %v1320 = vld [vmem:[%s7 + $0x28] sm:$0xf]
    %v1321 = vld [vmem:[%s7 + $0x2c] sm:$0xf]
    %v1322 = vld [vmem:[%s7 + $0x30] sm:$0xf]
    %v1323 = vld [vmem:[%s7 + $0x34] sm:$0xf]
    %v1324 = vld [vmem:[%s7 + $0x38] sm:$0xf]
    %v1325 = vld [vmem:[%s7 + $0x3c] sm:$0xf]
    %v1326 = vld [vmem:[%s7 + $0x40] sm:$0xf]
    %v1327 = vld [vmem:[%s7 + $0x44] sm:$0xf]
    %v1328 = vld [vmem:[%s7 + $0x48] sm:$0xf]
    %v1329 = vld [vmem:[%s7 + $0x4c] sm:$0xf]
    %v1330 = vld [vmem:[%s7 + $0x50] sm:$0xf]
    %v1331 = vld [vmem:[%s7 + $0x54] sm:$0xf]
    %v1332 = vld [vmem:[%s7 + $0x58] sm:$0xf]
    %v1333 = vld [vmem:[%s7 + $0x5c] sm:$0xf]
    %v1334 = vld [vmem:[%s7 + $0x60] sm:$0xf]
    %v1335 = vld [vmem:[%s7 + $0x64] sm:$0xf]
    %v1336 = vld [vmem:[%s7 + $0x68] sm:$0xf]
    %v1337 = vld [vmem:[%s7 + $0x6c] sm:$0xf]
    %v1338 = vld [vmem:[%s7 + $0x70] sm:$0xf]
    %v1339 = vld [vmem:[%s7 + $0x74] sm:$0xf]
    %v1340 = vld [vmem:[%s7 + $0x78] sm:$0xf]
    %v1341 = vld [vmem:[%s7 + $0x7c] sm:$0xf]
    %v1342 = vld [vmem:[%s7 + $0x80] sm:$0xf]
    %v1343 = vld [vmem:[%s7 + $0x84] sm:$0xf]
    %v1344 = vld [vmem:[%s7 + $0x88] sm:$0xf]
    %v1345 = vld [vmem:[%s7 + $0x8c] sm:$0xf]
    %v1346 = vld [vmem:[%s7 + $0x90] sm:$0xf]
    %v1347 = vld [vmem:[%s7 + $0x94] sm:$0xf]
    %v1348 = vld [vmem:[%s7 + $0x98] sm:$0xf]
    %v1349 = vld [vmem:[%s7 + $0x9c] sm:$0xf]
    %v1350 = vld [vmem:[%s7 + $0xa0] sm:$0xf]
    %v1351 = vld [vmem:[%s7 + $0xa4] sm:$0xf]
    %v1352 = vld [vmem:[%s7 + $0xa8] sm:$0xf]
    %v1353 = vld [vmem:[%s7 + $0xac] sm:$0xf]
    %v1354 = vld [vmem:[%s7 + $0xb0] sm:$0xf]
    %v1355 = vld [vmem:[%s7 + $0xb4] sm:$0xf]
    %v1356 = vld [vmem:[%s7 + $0xb8] sm:$0xf]
    %v1357 = vld [vmem:[%s7 + $0xbc] sm:$0xf]
    %v1358 = vld [vmem:[%s7 + $0xc0] sm:$0xf]
    %v1359 = vld [vmem:[%s7 + $0xc4] sm:$0xf]
    %v1360 = vld [vmem:[%s7 + $0xc8] sm:$0xf]
    %v1361 = vld [vmem:[%s7 + $0xcc] sm:$0xf]
    %v1362 = vld [vmem:[%s7 + $0xd0] sm:$0xf]
    %v1363 = vld [vmem:[%s7 + $0xd4] sm:$0xf]
    %v1364 = vld [vmem:[%s7 + $0xd8] sm:$0xf]
    %v1365 = vld [vmem:[%s7 + $0xdc] sm:$0xf]
    %v1366 = vld [vmem:[%s7 + $0xe0] sm:$0xf]
    %v1367 = vld [vmem:[%s7 + $0xe4] sm:$0xf]
    %v1368 = vld [vmem:[%s7 + $0xe8] sm:$0xf]
    %v1369 = vld [vmem:[%s7 + $0xec] sm:$0xf]
    %v1370 = vld [vmem:[%s7 + $0xf0] sm:$0xf]
    %v1371 = vld [vmem:[%s7 + $0xf4] sm:$0xf]
    %v1372 = vld [vmem:[%s7 + $0xf8] sm:$0xf]
    %v1373 = vld [vmem:[%s7 + $0xfc] sm:$0xf]
    %v1374 = vld [vmem:[%s7 + $0x100] sm:$0xf]
    %v1375 = vld [vmem:[%s7 + $0x104] sm:$0xf]
    %v1376 = vld [vmem:[%s7 + $0x108] sm:$0xf]
    %v1377 = vld [vmem:[%s7 + $0x10c] sm:$0xf]
    %v1378 = vld [vmem:[%s7 + $0x110] sm:$0xf]
    %v1379 = vld [vmem:[%s7 + $0x114] sm:$0xf]
    %v1380 = vld [vmem:[%s7 + $0x118] sm:$0xf]
    %v1381 = vld [vmem:[%s7 + $0x11c] sm:$0xf]
    %v1382 = vld [vmem:[%s7 + $0x120] sm:$0xf]
    %v1383 = vld [vmem:[%s7 + $0x124] sm:$0xf]
    %v1384 = vld [vmem:[%s7 + $0x128] sm:$0xf]
    %v1385 = vld [vmem:[%s7 + $0x12c] sm:$0xf]
    %v1386 = vld [vmem:[%s7 + $0x130] sm:$0xf]
    %v1387 = vld [vmem:[%s7 + $0x134] sm:$0xf]
    %v1388 = vld [vmem:[%s7 + $0x138] sm:$0xf]
    %v1389 = vld [vmem:[%s7 + $0x13c] sm:$0xf]
    %v1390 = vld [vmem:[%s7 + $0x140] sm:$0xf]
    %v1391 = vld [vmem:[%s7 + $0x144] sm:$0xf]
    %v1392 = vld [vmem:[%s7 + $0x148] sm:$0xf]
    %v1393 = vld [vmem:[%s7 + $0x14c] sm:$0xf]
    %v1394 = vld [vmem:[%s7 + $0x150] sm:$0xf]
    %v1395 = vld [vmem:[%s7 + $0x154] sm:$0xf]
    %v1396 = vld [vmem:[%s7 + $0x158] sm:$0xf]
    %v1397 = vld [vmem:[%s7 + $0x15c] sm:$0xf]
    %v1398 = vld [vmem:[%s7 + $0x160] sm:$0xf]
    %v1399 = vld [vmem:[%s7 + $0x164] sm:$0xf]
    %v1400 = vld [vmem:[%s7 + $0x168] sm:$0xf]
    %v1401 = vld [vmem:[%s7 + $0x16c] sm:$0xf]
    %v1402 = vld [vmem:[%s7 + $0x170] sm:$0xf]
    %v1403 = vld [vmem:[%s7 + $0x174] sm:$0xf]
    %v1404 = vld [vmem:[%s7 + $0x178] sm:$0xf]
    %v1405 = vld [vmem:[%s7 + $0x17c] sm:$0xf]
    %v1406 = vld [vmem:[%s7 + $0x180] sm:$0xf]
    %v1407 = vld [vmem:[%s7 + $0x184] sm:$0xf]
    %v1408 = vld [vmem:[%s7 + $0x188] sm:$0xf]
    %v1409 = vld [vmem:[%s7 + $0x18c] sm:$0xf]
    %v1410 = vld [vmem:[%s7 + $0x190] sm:$0xf]
    %v1411 = vld [vmem:[%s7 + $0x194] sm:$0xf]
    %v1412 = vld [vmem:[%s7 + $0x198] sm:$0xf]
    %v1413 = vld [vmem:[%s7 + $0x19c] sm:$0xf]
    %v1414 = vld [vmem:[%s7 + $0x1a0] sm:$0xf]
    %v1415 = vld [vmem:[%s7 + $0x1a4] sm:$0xf]
    %v1416 = vld [vmem:[%s7 + $0x1a8] sm:$0xf]
    %v1417 = vld [vmem:[%s7 + $0x1ac] sm:$0xf]
    %v1418 = vld [vmem:[%s7 + $0x1b0] sm:$0xf]
    %v1419 = vld [vmem:[%s7 + $0x1b4] sm:$0xf]
    %v1420 = vld [vmem:[%s7 + $0x1b8] sm:$0xf]
    %v1421 = vld [vmem:[%s7 + $0x1bc] sm:$0xf]
    %v1422 = vld [vmem:[%s7 + $0x1c0] sm:$0xf]
    %v1423 = vld [vmem:[%s7 + $0x1c4] sm:$0xf]
    %v1424 = vld [vmem:[%s7 + $0x1c8] sm:$0xf]
    %v1425 = vld [vmem:[%s7 + $0x1cc] sm:$0xf]
    %v1426 = vld [vmem:[%s7 + $0x1d0] sm:$0xf]
    %v1427 = vld [vmem:[%s7 + $0x1d4] sm:$0xf]
    %v1428 = vld [vmem:[%s7 + $0x1d8] sm:$0xf]
    %v1429 = vld [vmem:[%s7 + $0x1dc] sm:$0xf]
    %v1430 = vld [vmem:[%s7 + $0x1e0] sm:$0xf]
    %v1431 = vld [vmem:[%s7 + $0x1e4] sm:$0xf]
    %v1432 = vld [vmem:[%s7 + $0x1e8] sm:$0xf]
    %v1433 = vld [vmem:[%s7 + $0x1ec] sm:$0xf]
    %v1434 = vld [vmem:[%s7 + $0x1f0] sm:$0xf]
    %v1435 = vld [vmem:[%s7 + $0x1f4] sm:$0xf]
    %v1436 = vld [vmem:[%s7 + $0x1f8] sm:$0xf]
    %v1437 = vld [vmem:[%s7 + $0x1fc] sm:$0xf]
    %v1438 = vld [vmem:[%s5 + $0x20] sm:$0xff]
    %v1439 = vld [vmem:[%s5 + $0x28] sm:$0xff]
    %v1440 = vld [vmem:[%s5 + $0x30] sm:$0xff]
    %v1441 = vld [vmem:[%s5 + $0x38] sm:$0xff]
    %v1442 = vld [vmem:[%s5 + $0x60] sm:$0xff]
    %v1443 = vld [vmem:[%s5 + $0x68] sm:$0xff]
    %v1444 = vld [vmem:[%s5 + $0x70] sm:$0xff]
    %v1445 = vld [vmem:[%s5 + $0x78] sm:$0xff]
    %v1446 = vld [vmem:[%s5 + $0xa0] sm:$0xff]
    %v1447 = vld [vmem:[%s5 + $0xa8] sm:$0xff]
    %v1448 = vld [vmem:[%s5 + $0xb0] sm:$0xff]
    %v1449 = vld [vmem:[%s5 + $0xb8] sm:$0xff]
    %v1450 = vld [vmem:[%s5 + $0xe0] sm:$0xff]
    %v1451 = vld [vmem:[%s5 + $0xe8] sm:$0xff]
    %v1452 = vld [vmem:[%s5 + $0xf0] sm:$0xff]
    %v1453 = vld [vmem:[%s5 + $0xf8] sm:$0xff]
    %v1454 = vld [vmem:[%s6 + $0x8] sm:$0xff]
    %v1456 = vlaneseq
    %v1457 = vshrl.u32 %v1456, 7
    %v1458 = vsub.s32 0, %v1457
    %v1459 = vrot.slane %v1454, %v1458
    %v1460 = vlaneseq
    %v1461 = vshrl.u32 %v1460, 7
    %v1462 = vsub.s32 1, %v1461
    %v1463 = vrot.slane %v1454, %v1462
    %v1464 = vlaneseq
    %v1465 = vshrl.u32 %v1464, 7
    %v1466 = vsub.s32 2, %v1465
    %v1467 = vrot.slane %v1454, %v1466
    %v1468 = vlaneseq
    %v1469 = vshrl.u32 %v1468, 7
    %v1470 = vsub.s32 3, %v1469
    %v1471 = vrot.slane %v1454, %v1470
    %v1472 = vlaneseq
    %v1473 = vshrl.u32 %v1472, 7
    %v1474 = vsub.s32 4, %v1473
    %v1475 = vrot.slane %v1454, %v1474
    %v1476 = vlaneseq
    %v1477 = vshrl.u32 %v1476, 7
    %v1478 = vsub.s32 5, %v1477
    %v1479 = vrot.slane %v1454, %v1478
    %v1480 = vlaneseq
    %v1481 = vshrl.u32 %v1480, 7
    %v1482 = vsub.s32 6, %v1481
    %v1483 = vrot.slane %v1454, %v1482
    %v1484 = vlaneseq
    %v1485 = vshrl.u32 %v1484, 7
    %v1486 = vsub.s32 7, %v1485
    %v1487 = vrot.slane %v1454, %v1486
    %v1512 = vunpack.c.l.b16 %v1438
    %v1513 = vunpack.c.h.b16 %v1438
    %v1514 = vunpack.c.l.b16 %v1439
    %v1515 = vunpack.c.h.b16 %v1439
    %v1516 = vunpack.c.l.b16 %v1440
    %v1517 = vunpack.c.h.b16 %v1440
    %v1518 = vunpack.c.l.b16 %v1441
    %v1519 = vunpack.c.h.b16 %v1441
    %v1520 = vunpack.c.l.b16 %v1442
    %v1521 = vunpack.c.h.b16 %v1442
    %v1522 = vunpack.c.l.b16 %v1443
    %v1523 = vunpack.c.h.b16 %v1443
    %v1524 = vunpack.c.l.b16 %v1444
    %v1525 = vunpack.c.h.b16 %v1444
    %v1526 = vunpack.c.l.b16 %v1445
    %v1527 = vunpack.c.h.b16 %v1445
    %v1528 = vunpack.c.l.b16 %v1446
    %v1529 = vunpack.c.h.b16 %v1446
    %v1530 = vunpack.c.l.b16 %v1447
    %v1531 = vunpack.c.h.b16 %v1447
    %v1532 = vunpack.c.l.b16 %v1448
    %v1533 = vunpack.c.h.b16 %v1448
    %v1534 = vunpack.c.l.b16 %v1449
    %v1535 = vunpack.c.h.b16 %v1449
    %v1536 = vunpack.c.l.b16 %v1450
    %v1537 = vunpack.c.h.b16 %v1450
    %v1538 = vunpack.c.l.b16 %v1451
    %v1539 = vunpack.c.h.b16 %v1451
    %v1540 = vunpack.c.l.b16 %v1452
    %v1541 = vunpack.c.h.b16 %v1452
    %v1542 = vunpack.c.l.b16 %v1453
    %v1543 = vunpack.c.h.b16 %v1453
    %v1544 = vpack.c.b16 %v1520, %v1512
    %v1545 = vpack.c.b16 %v1521, %v1513
    %v1546 = vpack.c.b16 %v1522, %v1514
    %v1547 = vpack.c.b16 %v1523, %v1515
    %v1548 = vpack.c.b16 %v1524, %v1516
    %v1549 = vpack.c.b16 %v1525, %v1517
    %v1550 = vpack.c.b16 %v1526, %v1518
    %v1551 = vpack.c.b16 %v1527, %v1519
    %v1552 = vpack.c.b16 %v1536, %v1528
    %v1553 = vpack.c.b16 %v1537, %v1529
    %v1554 = vpack.c.b16 %v1538, %v1530
    %v1555 = vpack.c.b16 %v1539, %v1531
    %v1556 = vpack.c.b16 %v1540, %v1532
    %v1557 = vpack.c.b16 %v1541, %v1533
    %v1558 = vpack.c.b16 %v1542, %v1534
    %v1559 = vpack.c.b16 %v1543, %v1535
    %1576 = vmatprep.subr.bf16.mxu0 %v1545
    %1577 = vmatpush1.bf16.msra.mxu0 %v1544
    %1578 = vmatprep.subr.bf16.mxu0 %v1553
    %1579 = vmatpush1.bf16.msra.mxu0 %v1552
    %1580 = vmatprep.subr.bf16.mxu0 0
    %1581 = vmatpush1.bf16.msra.mxu0 0
    %1582 = vmatprep.subr.bf16.mxu0 0
    %1583 = vmatpush1.bf16.msra.mxu0 0
    %1584 = vmatprep.subr.bf16.mxu0 0
    %1585 = vmatpush1.bf16.msra.mxu0 0
    %1586 = vmatprep.subr.bf16.mxu0 0
    %1587 = vmatpush1.bf16.msra.mxu0 0
    %1588 = vmatprep.subr.bf16.mxu0 0
    %1589 = vmatpush1.bf16.msra.mxu0 0
    %1590 = vmatprep.subr.bf16.mxu0 0
    %1591 = vmatpush1.bf16.msra.mxu0 0
    %1592 = vmatprep.subr.bf16.mxu0 0
    %1593 = vmatpush1.bf16.msra.mxu0 0
    %1594 = vmatprep.subr.bf16.mxu0 0
    %1595 = vmatpush1.bf16.msra.mxu0 0
    %1596 = vmatprep.subr.bf16.mxu0 0
    %1597 = vmatpush1.bf16.msra.mxu0 0
    %1598 = vmatprep.subr.bf16.mxu0 0
    %1599 = vmatpush1.bf16.msra.mxu0 0
    %1600 = vmatprep.subr.bf16.mxu0 0
    %1601 = vmatpush1.bf16.msra.mxu0 0
    %1602 = vmatprep.subr.bf16.mxu0 0
    %1603 = vmatpush1.bf16.msra.mxu0 0
    %1604 = vmatprep.subr.bf16.mxu0 0
    %1605 = vmatpush1.bf16.msra.mxu0 0
    %1606 = vmatprep.subr.bf16.mxu0 0
    %1607 = vmatpush1.bf16.msra.mxu0 0
    %1608 = vmatprep.mubr.bf16.mxu0 0
    %1609 = vmatmul.mubr.bf16.gmra.mrb[0].mxu0 %v1112
    %v1610 = vpop.f32.mrb[0].mxu0
    %v1611 = vadd.f32 %v1459, %v1610
    %v1612 = vpop.f32.mrb[0].mxu0
    %v1613 = vadd.f32 %v1463, %v1612
    %v1614 = vpop.f32.mrb[0].mxu0
    %v1615 = vadd.f32 %v1459, %v1614
    %v1616 = vpop.f32.mrb[0].mxu0
    %v1617 = vadd.f32 %v1463, %v1616
    %1618 = vdwg.mxu0
    %1619 = vmatprep.subr.bf16.mxu0 %v1547
    %1620 = vmatpush1.bf16.msra.mxu0 %v1546
    %1621 = vmatprep.subr.bf16.mxu0 %v1555
    %1622 = vmatpush1.bf16.msra.mxu0 %v1554
    %1623 = vmatprep.subr.bf16.mxu0 0
    %1624 = vmatpush1.bf16.msra.mxu0 0
    %1625 = vmatprep.subr.bf16.mxu0 0
    %1626 = vmatpush1.bf16.msra.mxu0 0
    %1627 = vmatprep.subr.bf16.mxu0 0
    %1628 = vmatpush1.bf16.msra.mxu0 0
    %1629 = vmatprep.subr.bf16.mxu0 0
    %1630 = vmatpush1.bf16.msra.mxu0 0
    %1631 = vmatprep.subr.bf16.mxu0 0
    %1632 = vmatpush1.bf16.msra.mxu0 0
    %1633 = vmatprep.subr.bf16.mxu0 0
    %1634 = vmatpush1.bf16.msra.mxu0 0
    %1635 = vmatprep.subr.bf16.mxu0 0
    %1636 = vmatpush1.bf16.msra.mxu0 0
    %1637 = vmatprep.subr.bf16.mxu0 0
    %1638 = vmatpush1.bf16.msra.mxu0 0
    %1639 = vmatprep.subr.bf16.mxu0 0
    %1640 = vmatpush1.bf16.msra.mxu0 0
    %1641 = vmatprep.subr.bf16.mxu0 0
    %1642 = vmatpush1.bf16.msra.mxu0 0
    %1643 = vmatprep.subr.bf16.mxu0 0
    %1644 = vmatpush1.bf16.msra.mxu0 0
    %1645 = vmatprep.subr.bf16.mxu0 0
    %1646 = vmatpush1.bf16.msra.mxu0 0
    %1647 = vmatprep.subr.bf16.mxu0 0
    %1648 = vmatpush1.bf16.msra.mxu0 0
    %1649 = vmatprep.subr.bf16.mxu0 0
    %1650 = vmatpush1.bf16.msra.mxu0 0
    %1651 = vmatprep.mubr.bf16.mxu0 0
    %1652 = vmatmul.mubr.bf16.gmra.mrb[0].mxu0 %v1112
    %v1653 = vpop.f32.mrb[0].mxu0
    %v1654 = vadd.f32 %v1467, %v1653
    %v1655 = vpop.f32.mrb[0].mxu0
    %v1656 = vadd.f32 %v1471, %v1655
    %v1657 = vpop.f32.mrb[0].mxu0
    %v1658 = vadd.f32 %v1467, %v1657
    %v1659 = vpop.f32.mrb[0].mxu0
    %v1660 = vadd.f32 %v1471, %v1659
    %1661 = vdwg.mxu0
    %1662 = vmatprep.subr.bf16.mxu0 %v1549
    %1663 = vmatpush1.bf16.msra.mxu0 %v1548
    %1664 = vmatprep.subr.bf16.mxu0 %v1557
    %1665 = vmatpush1.bf16.msra.mxu0 %v1556
    %1666 = vmatprep.subr.bf16.mxu0 0
    %1667 = vmatpush1.bf16.msra.mxu0 0
    %1668 = vmatprep.subr.bf16.mxu0 0
    %1669 = vmatpush1.bf16.msra.mxu0 0
    %1670 = vmatprep.subr.bf16.mxu0 0
    %1671 = vmatpush1.bf16.msra.mxu0 0
    %1672 = vmatprep.subr.bf16.mxu0 0
    %1673 = vmatpush1.bf16.msra.mxu0 0
    %1674 = vmatprep.subr.bf16.mxu0 0
    %1675 = vmatpush1.bf16.msra.mxu0 0
    %1676 = vmatprep.subr.bf16.mxu0 0
    %1677 = vmatpush1.bf16.msra.mxu0 0
    %1678 = vmatprep.subr.bf16.mxu0 0
    %1679 = vmatpush1.bf16.msra.mxu0 0
    %1680 = vmatprep.subr.bf16.mxu0 0
    %1681 = vmatpush1.bf16.msra.mxu0 0
    %1682 = vmatprep.subr.bf16.mxu0 0
    %1683 = vmatpush1.bf16.msra.mxu0 0
    %1684 = vmatprep.subr.bf16.mxu0 0
    %1685 = vmatpush1.bf16.msra.mxu0 0
    %1686 = vmatprep.subr.bf16.mxu0 0
    %1687 = vmatpush1.bf16.msra.mxu0 0
    %1688 = vmatprep.subr.bf16.mxu0 0
    %1689 = vmatpush1.bf16.msra.mxu0 0
    %1690 = vmatprep.subr.bf16.mxu0 0
    %1691 = vmatpush1.bf16.msra.mxu0 0
    %1692 = vmatprep.subr.bf16.mxu0 0
    %1693 = vmatpush1.bf16.msra.mxu0 0
    %1694 = vmatprep.mubr.bf16.mxu0 0
    %1695 = vmatmul.mubr.bf16.gmra.mrb[0].mxu0 %v1112
    %v1696 = vpop.f32.mrb[0].mxu0
    %v1697 = vadd.f32 %v1475, %v1696
    %v1698 = vpop.f32.mrb[0].mxu0
    %v1699 = vadd.f32 %v1479, %v1698
    %v1700 = vpop.f32.mrb[0].mxu0
    %v1701 = vadd.f32 %v1475, %v1700
    %v1702 = vpop.f32.mrb[0].mxu0
    %v1703 = vadd.f32 %v1479, %v1702
    %1704 = vdwg.mxu0
    %1705 = vmatprep.subr.bf16.mxu0 %v1551
    %1706 = vmatpush1.bf16.msra.mxu0 %v1550
    %1707 = vmatprep.subr.bf16.mxu0 %v1559
    %1708 = vmatpush1.bf16.msra.mxu0 %v1558
    %1709 = vmatprep.subr.bf16.mxu0 0
    %1710 = vmatpush1.bf16.msra.mxu0 0
    %1711 = vmatprep.subr.bf16.mxu0 0
    %1712 = vmatpush1.bf16.msra.mxu0 0
    %1713 = vmatprep.subr.bf16.mxu0 0
    %1714 = vmatpush1.bf16.msra.mxu0 0
    %1715 = vmatprep.subr.bf16.mxu0 0
    %1716 = vmatpush1.bf16.msra.mxu0 0
    %1717 = vmatprep.subr.bf16.mxu0 0
    %1718 = vmatpush1.bf16.msra.mxu0 0
    %1719 = vmatprep.subr.bf16.mxu0 0
    %1720 = vmatpush1.bf16.msra.mxu0 0
    %1721 = vmatprep.subr.bf16.mxu0 0
    %1722 = vmatpush1.bf16.msra.mxu0 0
    %1723 = vmatprep.subr.bf16.mxu0 0
    %1724 = vmatpush1.bf16.msra.mxu0 0
    %1725 = vmatprep.subr.bf16.mxu0 0
    %1726 = vmatpush1.bf16.msra.mxu0 0
    %1727 = vmatprep.subr.bf16.mxu0 0
    %1728 = vmatpush1.bf16.msra.mxu0 0
    %1729 = vmatprep.subr.bf16.mxu0 0
    %1730 = vmatpush1.bf16.msra.mxu0 0
    %1731 = vmatprep.subr.bf16.mxu0 0
    %1732 = vmatpush1.bf16.msra.mxu0 0
    %1733 = vmatprep.subr.bf16.mxu0 0
    %1734 = vmatpush1.bf16.msra.mxu0 0
    %1735 = vmatprep.subr.bf16.mxu0 0
    %1736 = vmatpush1.bf16.msra.mxu0 0
    %1737 = vmatprep.mubr.bf16.mxu0 0
    %1738 = vmatmul.mubr.bf16.gmra.mrb[0].mxu0 %v1112
    %v1739 = vpop.f32.mrb[0].mxu0
    %v1740 = vadd.f32 %v1483, %v1739
    %v1741 = vpop.f32.mrb[0].mxu0
    %v1742 = vadd.f32 %v1487, %v1741
    %v1743 = vpop.f32.mrb[0].mxu0
    %v1744 = vadd.f32 %v1483, %v1743
    %v1745 = vpop.f32.mrb[0].mxu0
    %v1746 = vadd.f32 %v1487, %v1745
    %1747 = vdwg.mxu0
    %v1748 = vmax.f32 %v1611, 0.0
    %v1749 = vmax.f32 %v1613, 0.0
    %v1750 = vmax.f32 %v1654, 0.0
    %v1751 = vmax.f32 %v1656, 0.0
    %v1752 = vmax.f32 %v1697, 0.0
    %v1753 = vmax.f32 %v1699, 0.0
    %v1754 = vmax.f32 %v1740, 0.0
    %v1755 = vmax.f32 %v1742, 0.0
    %v1756 = vmax.f32 %v1615, 0.0
    %v1757 = vmax.f32 %v1617, 0.0
    %v1758 = vmax.f32 %v1658, 0.0
    %v1759 = vmax.f32 %v1660, 0.0
    %v1760 = vmax.f32 %v1701, 0.0
    %v1761 = vmax.f32 %v1703, 0.0
    %v1762 = vmax.f32 %v1744, 0.0
    %v1763 = vmax.f32 %v1746, 0.0
    %v1764 = vpack.c.bf16 %v1756, %v1748
    %v1765 = vpack.c.bf16 %v1757, %v1749
    %v1766 = vpack.c.bf16 %v1758, %v1750
    %v1767 = vpack.c.bf16 %v1759, %v1751
    %v1768 = vpack.c.bf16 %v1760, %v1752
    %v1769 = vpack.c.bf16 %v1761, %v1753
    %v1770 = vpack.c.bf16 %v1762, %v1754
    %v1771 = vpack.c.bf16 %v1763, %v1755
    %v1772 = vld [vmem:[%s7 + $0x200] sm:$0xf]
    %v1773 = vld [vmem:[%s7 + $0x204] sm:$0xf]
    %v1774 = vld [vmem:[%s7 + $0x208] sm:$0xf]
    %v1775 = vld [vmem:[%s7 + $0x20c] sm:$0xf]
    %v1776 = vld [vmem:[%s7 + $0x210] sm:$0xf]
    %v1777 = vld [vmem:[%s7 + $0x214] sm:$0xf]
    %v1778 = vld [vmem:[%s7 + $0x218] sm:$0xf]
    %v1779 = vld [vmem:[%s7 + $0x21c] sm:$0xf]
    %v1780 = vld [vmem:[%s7 + $0x220] sm:$0xf]
    %v1781 = vld [vmem:[%s7 + $0x224] sm:$0xf]
    %v1782 = vld [vmem:[%s7 + $0x228] sm:$0xf]
    %v1783 = vld [vmem:[%s7 + $0x22c] sm:$0xf]
    %v1784 = vld [vmem:[%s7 + $0x230] sm:$0xf]
    %v1785 = vld [vmem:[%s7 + $0x234] sm:$0xf]
    %v1786 = vld [vmem:[%s7 + $0x238] sm:$0xf]
    %v1787 = vld [vmem:[%s7 + $0x23c] sm:$0xf]
    %v1788 = vld [vmem:[%s7 + $0x240] sm:$0xf]
    %v1789 = vld [vmem:[%s7 + $0x244] sm:$0xf]
    %v1790 = vld [vmem:[%s7 + $0x248] sm:$0xf]
    %v1791 = vld [vmem:[%s7 + $0x24c] sm:$0xf]
    %v1792 = vld [vmem:[%s7 + $0x250] sm:$0xf]
    %v1793 = vld [vmem:[%s7 + $0x254] sm:$0xf]
    %v1794 = vld [vmem:[%s7 + $0x258] sm:$0xf]
    %v1795 = vld [vmem:[%s7 + $0x25c] sm:$0xf]
    %v1796 = vld [vmem:[%s7 + $0x260] sm:$0xf]
    %v1797 = vld [vmem:[%s7 + $0x264] sm:$0xf]
    %v1798 = vld [vmem:[%s7 + $0x268] sm:$0xf]
    %v1799 = vld [vmem:[%s7 + $0x26c] sm:$0xf]
    %v1800 = vld [vmem:[%s7 + $0x270] sm:$0xf]
    %v1801 = vld [vmem:[%s7 + $0x274] sm:$0xf]
    %v1802 = vld [vmem:[%s7 + $0x278] sm:$0xf]
    %v1803 = vld [vmem:[%s7 + $0x27c] sm:$0xf]
    %v1804 = vld [vmem:[%s7 + $0x280] sm:$0xf]
    %v1805 = vld [vmem:[%s7 + $0x284] sm:$0xf]
    %v1806 = vld [vmem:[%s7 + $0x288] sm:$0xf]
    %v1807 = vld [vmem:[%s7 + $0x28c] sm:$0xf]
    %v1808 = vld [vmem:[%s7 + $0x290] sm:$0xf]
    %v1809 = vld [vmem:[%s7 + $0x294] sm:$0xf]
    %v1810 = vld [vmem:[%s7 + $0x298] sm:$0xf]
    %v1811 = vld [vmem:[%s7 + $0x29c] sm:$0xf]
    %v1812 = vld [vmem:[%s7 + $0x2a0] sm:$0xf]
    %v1813 = vld [vmem:[%s7 + $0x2a4] sm:$0xf]
    %v1814 = vld [vmem:[%s7 + $0x2a8] sm:$0xf]
    %v1815 = vld [vmem:[%s7 + $0x2ac] sm:$0xf]
    %v1816 = vld [vmem:[%s7 + $0x2b0] sm:$0xf]
    %v1817 = vld [vmem:[%s7 + $0x2b4] sm:$0xf]
    %v1818 = vld [vmem:[%s7 + $0x2b8] sm:$0xf]
    %v1819 = vld [vmem:[%s7 + $0x2bc] sm:$0xf]
    %v1820 = vld [vmem:[%s7 + $0x2c0] sm:$0xf]
    %v1821 = vld [vmem:[%s7 + $0x2c4] sm:$0xf]
    %v1822 = vld [vmem:[%s7 + $0x2c8] sm:$0xf]
    %v1823 = vld [vmem:[%s7 + $0x2cc] sm:$0xf]
    %v1824 = vld [vmem:[%s7 + $0x2d0] sm:$0xf]
    %v1825 = vld [vmem:[%s7 + $0x2d4] sm:$0xf]
    %v1826 = vld [vmem:[%s7 + $0x2d8] sm:$0xf]
    %v1827 = vld [vmem:[%s7 + $0x2dc] sm:$0xf]
    %v1828 = vld [vmem:[%s7 + $0x2e0] sm:$0xf]
    %v1829 = vld [vmem:[%s7 + $0x2e4] sm:$0xf]
    %v1830 = vld [vmem:[%s7 + $0x2e8] sm:$0xf]
    %v1831 = vld [vmem:[%s7 + $0x2ec] sm:$0xf]
    %v1832 = vld [vmem:[%s7 + $0x2f0] sm:$0xf]
    %v1833 = vld [vmem:[%s7 + $0x2f4] sm:$0xf]
    %v1834 = vld [vmem:[%s7 + $0x2f8] sm:$0xf]
    %v1835 = vld [vmem:[%s7 + $0x2fc] sm:$0xf]
    %v1836 = vld [vmem:[%s7 + $0x300] sm:$0xf]
    %v1837 = vld [vmem:[%s7 + $0x304] sm:$0xf]
    %v1838 = vld [vmem:[%s7 + $0x308] sm:$0xf]
    %v1839 = vld [vmem:[%s7 + $0x30c] sm:$0xf]
    %v1840 = vld [vmem:[%s7 + $0x310] sm:$0xf]
    %v1841 = vld [vmem:[%s7 + $0x314] sm:$0xf]
    %v1842 = vld [vmem:[%s7 + $0x318] sm:$0xf]
    %v1843 = vld [vmem:[%s7 + $0x31c] sm:$0xf]
    %v1844 = vld [vmem:[%s7 + $0x320] sm:$0xf]
    %v1845 = vld [vmem:[%s7 + $0x324] sm:$0xf]
    %v1846 = vld [vmem:[%s7 + $0x328] sm:$0xf]
    %v1847 = vld [vmem:[%s7 + $0x32c] sm:$0xf]
    %v1848 = vld [vmem:[%s7 + $0x330] sm:$0xf]
    %v1849 = vld [vmem:[%s7 + $0x334] sm:$0xf]
    %v1850 = vld [vmem:[%s7 + $0x338] sm:$0xf]
    %v1851 = vld [vmem:[%s7 + $0x33c] sm:$0xf]
    %v1852 = vld [vmem:[%s7 + $0x340] sm:$0xf]
    %v1853 = vld [vmem:[%s7 + $0x344] sm:$0xf]
    %v1854 = vld [vmem:[%s7 + $0x348] sm:$0xf]
    %v1855 = vld [vmem:[%s7 + $0x34c] sm:$0xf]
    %v1856 = vld [vmem:[%s7 + $0x350] sm:$0xf]
    %v1857 = vld [vmem:[%s7 + $0x354] sm:$0xf]
    %v1858 = vld [vmem:[%s7 + $0x358] sm:$0xf]
    %v1859 = vld [vmem:[%s7 + $0x35c] sm:$0xf]
    %v1860 = vld [vmem:[%s7 + $0x360] sm:$0xf]
    %v1861 = vld [vmem:[%s7 + $0x364] sm:$0xf]
    %v1862 = vld [vmem:[%s7 + $0x368] sm:$0xf]
    %v1863 = vld [vmem:[%s7 + $0x36c] sm:$0xf]
    %v1864 = vld [vmem:[%s7 + $0x370] sm:$0xf]
    %v1865 = vld [vmem:[%s7 + $0x374] sm:$0xf]
    %v1866 = vld [vmem:[%s7 + $0x378] sm:$0xf]
    %v1867 = vld [vmem:[%s7 + $0x37c] sm:$0xf]
    %v1868 = vld [vmem:[%s7 + $0x380] sm:$0xf]
    %v1869 = vld [vmem:[%s7 + $0x384] sm:$0xf]
    %v1870 = vld [vmem:[%s7 + $0x388] sm:$0xf]
    %v1871 = vld [vmem:[%s7 + $0x38c] sm:$0xf]
    %v1872 = vld [vmem:[%s7 + $0x390] sm:$0xf]
    %v1873 = vld [vmem:[%s7 + $0x394] sm:$0xf]
    %v1874 = vld [vmem:[%s7 + $0x398] sm:$0xf]
    %v1875 = vld [vmem:[%s7 + $0x39c] sm:$0xf]
    %v1876 = vld [vmem:[%s7 + $0x3a0] sm:$0xf]
    %v1877 = vld [vmem:[%s7 + $0x3a4] sm:$0xf]
    %v1878 = vld [vmem:[%s7 + $0x3a8] sm:$0xf]
    %v1879 = vld [vmem:[%s7 + $0x3ac] sm:$0xf]
    %v1880 = vld [vmem:[%s7 + $0x3b0] sm:$0xf]
    %v1881 = vld [vmem:[%s7 + $0x3b4] sm:$0xf]
    %v1882 = vld [vmem:[%s7 + $0x3b8] sm:$0xf]
    %v1883 = vld [vmem:[%s7 + $0x3bc] sm:$0xf]
    %v1884 = vld [vmem:[%s7 + $0x3c0] sm:$0xf]
    %v1885 = vld [vmem:[%s7 + $0x3c4] sm:$0xf]
    %v1886 = vld [vmem:[%s7 + $0x3c8] sm:$0xf]
    %v1887 = vld [vmem:[%s7 + $0x3cc] sm:$0xf]
    %v1888 = vld [vmem:[%s7 + $0x3d0] sm:$0xf]
    %v1889 = vld [vmem:[%s7 + $0x3d4] sm:$0xf]
    %v1890 = vld [vmem:[%s7 + $0x3d8] sm:$0xf]
    %v1891 = vld [vmem:[%s7 + $0x3dc] sm:$0xf]
    %v1892 = vld [vmem:[%s7 + $0x3e0] sm:$0xf]
    %v1893 = vld [vmem:[%s7 + $0x3e4] sm:$0xf]
    %v1894 = vld [vmem:[%s7 + $0x3e8] sm:$0xf]
    %v1895 = vld [vmem:[%s7 + $0x3ec] sm:$0xf]
    %v1896 = vld [vmem:[%s7 + $0x3f0] sm:$0xf]
    %v1897 = vld [vmem:[%s7 + $0x3f4] sm:$0xf]
    %v1898 = vld [vmem:[%s7 + $0x3f8] sm:$0xf]
    %v1899 = vld [vmem:[%s7 + $0x3fc] sm:$0xf]
    %v2028 = vunpack.c.l.b16 %v1772
    %v2029 = vunpack.c.l.b16 %v1773
    %v2030 = vunpack.c.l.b16 %v1774
    %v2031 = vunpack.c.l.b16 %v1775
    %v2032 = vunpack.c.l.b16 %v1776
    %v2033 = vunpack.c.l.b16 %v1777
    %v2034 = vunpack.c.l.b16 %v1778
    %v2035 = vunpack.c.l.b16 %v1779
    %v2036 = vunpack.c.l.b16 %v1780
    %v2037 = vunpack.c.l.b16 %v1781
    %v2038 = vunpack.c.l.b16 %v1782
    %v2039 = vunpack.c.l.b16 %v1783
    %v2040 = vunpack.c.l.b16 %v1784
    %v2041 = vunpack.c.l.b16 %v1785
    %v2042 = vunpack.c.l.b16 %v1786
    %v2043 = vunpack.c.l.b16 %v1787
    %v2044 = vunpack.c.l.b16 %v1788
    %v2045 = vunpack.c.l.b16 %v1789
    %v2046 = vunpack.c.l.b16 %v1790
    %v2047 = vunpack.c.l.b16 %v1791
    %v2048 = vunpack.c.l.b16 %v1792
    %v2049 = vunpack.c.l.b16 %v1793
    %v2050 = vunpack.c.l.b16 %v1794
    %v2051 = vunpack.c.l.b16 %v1795
    %v2052 = vunpack.c.l.b16 %v1796
    %v2053 = vunpack.c.l.b16 %v1797
    %v2054 = vunpack.c.l.b16 %v1798
    %v2055 = vunpack.c.l.b16 %v1799
    %v2056 = vunpack.c.l.b16 %v1800
    %v2057 = vunpack.c.l.b16 %v1801
    %v2058 = vunpack.c.l.b16 %v1802
    %v2059 = vunpack.c.l.b16 %v1803
    %v2060 = vunpack.c.l.b16 %v1804
    %v2061 = vunpack.c.l.b16 %v1805
    %v2062 = vunpack.c.l.b16 %v1806
    %v2063 = vunpack.c.l.b16 %v1807
    %v2064 = vunpack.c.l.b16 %v1808
    %v2065 = vunpack.c.l.b16 %v1809
    %v2066 = vunpack.c.l.b16 %v1810
    %v2067 = vunpack.c.l.b16 %v1811
    %v2068 = vunpack.c.l.b16 %v1812
    %v2069 = vunpack.c.l.b16 %v1813
    %v2070 = vunpack.c.l.b16 %v1814
    %v2071 = vunpack.c.l.b16 %v1815
    %v2072 = vunpack.c.l.b16 %v1816
    %v2073 = vunpack.c.l.b16 %v1817
    %v2074 = vunpack.c.l.b16 %v1818
    %v2075 = vunpack.c.l.b16 %v1819
    %v2076 = vunpack.c.l.b16 %v1820
    %v2077 = vunpack.c.l.b16 %v1821
    %v2078 = vunpack.c.l.b16 %v1822
    %v2079 = vunpack.c.l.b16 %v1823
    %v2080 = vunpack.c.l.b16 %v1824
    %v2081 = vunpack.c.l.b16 %v1825
    %v2082 = vunpack.c.l.b16 %v1826
    %v2083 = vunpack.c.l.b16 %v1827
    %v2084 = vunpack.c.l.b16 %v1828
    %v2085 = vunpack.c.l.b16 %v1829
    %v2086 = vunpack.c.l.b16 %v1830
    %v2087 = vunpack.c.l.b16 %v1831
    %v2088 = vunpack.c.l.b16 %v1832
    %v2089 = vunpack.c.l.b16 %v1833
    %v2090 = vunpack.c.l.b16 %v1834
    %v2091 = vunpack.c.l.b16 %v1835
    %v2092 = vunpack.c.l.b16 %v1836
    %v2093 = vunpack.c.l.b16 %v1837
    %v2094 = vunpack.c.l.b16 %v1838
    %v2095 = vunpack.c.l.b16 %v1839
    %v2096 = vunpack.c.l.b16 %v1840
    %v2097 = vunpack.c.l.b16 %v1841
    %v2098 = vunpack.c.l.b16 %v1842
    %v2099 = vunpack.c.l.b16 %v1843
    %v2100 = vunpack.c.l.b16 %v1844
    %v2101 = vunpack.c.l.b16 %v1845
    %v2102 = vunpack.c.l.b16 %v1846
    %v2103 = vunpack.c.l.b16 %v1847
    %v2104 = vunpack.c.l.b16 %v1848
    %v2105 = vunpack.c.l.b16 %v1849
    %v2106 = vunpack.c.l.b16 %v1850
    %v2107 = vunpack.c.l.b16 %v1851
    %v2108 = vunpack.c.l.b16 %v1852
    %v2109 = vunpack.c.l.b16 %v1853
    %v2110 = vunpack.c.l.b16 %v1854
    %v2111 = vunpack.c.l.b16 %v1855
    %v2112 = vunpack.c.l.b16 %v1856
    %v2113 = vunpack.c.l.b16 %v1857
    %v2114 = vunpack.c.l.b16 %v1858
    %v2115 = vunpack.c.l.b16 %v1859
    %v2116 = vunpack.c.l.b16 %v1860
    %v2117 = vunpack.c.l.b16 %v1861
    %v2118 = vunpack.c.l.b16 %v1862
    %v2119 = vunpack.c.l.b16 %v1863
    %v2120 = vunpack.c.l.b16 %v1864
    %v2121 = vunpack.c.l.b16 %v1865
    %v2122 = vunpack.c.l.b16 %v1866
    %v2123 = vunpack.c.l.b16 %v1867
    %v2124 = vunpack.c.l.b16 %v1868
    %v2125 = vunpack.c.l.b16 %v1869
    %v2126 = vunpack.c.l.b16 %v1870
    %v2127 = vunpack.c.l.b16 %v1871
    %v2128 = vunpack.c.l.b16 %v1872
    %v2129 = vunpack.c.l.b16 %v1873
    %v2130 = vunpack.c.l.b16 %v1874
    %v2131 = vunpack.c.l.b16 %v1875
    %v2132 = vunpack.c.l.b16 %v1876
    %v2133 = vunpack.c.l.b16 %v1877
    %v2134 = vunpack.c.l.b16 %v1878
    %v2135 = vunpack.c.l.b16 %v1879
    %v2136 = vunpack.c.l.b16 %v1880
    %v2137 = vunpack.c.l.b16 %v1881
    %v2138 = vunpack.c.l.b16 %v1882
    %v2139 = vunpack.c.l.b16 %v1883
    %v2140 = vunpack.c.l.b16 %v1884
    %v2141 = vunpack.c.l.b16 %v1885
    %v2142 = vunpack.c.l.b16 %v1886
    %v2143 = vunpack.c.l.b16 %v1887
    %v2144 = vunpack.c.l.b16 %v1888
    %v2145 = vunpack.c.l.b16 %v1889
    %v2146 = vunpack.c.l.b16 %v1890
    %v2147 = vunpack.c.l.b16 %v1891
    %v2148 = vunpack.c.l.b16 %v1892
    %v2149 = vunpack.c.l.b16 %v1893
    %v2150 = vunpack.c.l.b16 %v1894
    %v2151 = vunpack.c.l.b16 %v1895
    %v2152 = vunpack.c.l.b16 %v1896
    %v2153 = vunpack.c.l.b16 %v1897
    %v2154 = vunpack.c.l.b16 %v1898
    %v2155 = vunpack.c.l.b16 %v1899
    %v2156 = vpack.c.b16 %v2029, %v2028
    %v2157 = vpack.c.b16 %v2031, %v2030
    %v2158 = vpack.c.b16 %v2033, %v2032
    %v2159 = vpack.c.b16 %v2035, %v2034
    %v2160 = vpack.c.b16 %v2037, %v2036
    %v2161 = vpack.c.b16 %v2039, %v2038
    %v2162 = vpack.c.b16 %v2041, %v2040
    %v2163 = vpack.c.b16 %v2043, %v2042
    %v2164 = vpack.c.b16 %v2045, %v2044
    %v2165 = vpack.c.b16 %v2047, %v2046
    %v2166 = vpack.c.b16 %v2049, %v2048
    %v2167 = vpack.c.b16 %v2051, %v2050
    %v2168 = vpack.c.b16 %v2053, %v2052
    %v2169 = vpack.c.b16 %v2055, %v2054
    %v2170 = vpack.c.b16 %v2057, %v2056
    %v2171 = vpack.c.b16 %v2059, %v2058
    %v2172 = vpack.c.b16 %v2061, %v2060
    %v2173 = vpack.c.b16 %v2063, %v2062
    %v2174 = vpack.c.b16 %v2065, %v2064
    %v2175 = vpack.c.b16 %v2067, %v2066
    %v2176 = vpack.c.b16 %v2069, %v2068
    %v2177 = vpack.c.b16 %v2071, %v2070
    %v2178 = vpack.c.b16 %v2073, %v2072
    %v2179 = vpack.c.b16 %v2075, %v2074
    %v2180 = vpack.c.b16 %v2077, %v2076
    %v2181 = vpack.c.b16 %v2079, %v2078
    %v2182 = vpack.c.b16 %v2081, %v2080
    %v2183 = vpack.c.b16 %v2083, %v2082
    %v2184 = vpack.c.b16 %v2085, %v2084
    %v2185 = vpack.c.b16 %v2087, %v2086
    %v2186 = vpack.c.b16 %v2089, %v2088
    %v2187 = vpack.c.b16 %v2091, %v2090
    %v2188 = vpack.c.b16 %v2093, %v2092
    %v2189 = vpack.c.b16 %v2095, %v2094
    %v2190 = vpack.c.b16 %v2097, %v2096
    %v2191 = vpack.c.b16 %v2099, %v2098
    %v2192 = vpack.c.b16 %v2101, %v2100
    %v2193 = vpack.c.b16 %v2103, %v2102
    %v2194 = vpack.c.b16 %v2105, %v2104
    %v2195 = vpack.c.b16 %v2107, %v2106
    %v2196 = vpack.c.b16 %v2109, %v2108
    %v2197 = vpack.c.b16 %v2111, %v2110
    %v2198 = vpack.c.b16 %v2113, %v2112
    %v2199 = vpack.c.b16 %v2115, %v2114
    %v2200 = vpack.c.b16 %v2117, %v2116
    %v2201 = vpack.c.b16 %v2119, %v2118
    %v2202 = vpack.c.b16 %v2121, %v2120
    %v2203 = vpack.c.b16 %v2123, %v2122
    %v2204 = vpack.c.b16 %v2125, %v2124
    %v2205 = vpack.c.b16 %v2127, %v2126
    %v2206 = vpack.c.b16 %v2129, %v2128
    %v2207 = vpack.c.b16 %v2131, %v2130
    %v2208 = vpack.c.b16 %v2133, %v2132
    %v2209 = vpack.c.b16 %v2135, %v2134
    %v2210 = vpack.c.b16 %v2137, %v2136
    %v2211 = vpack.c.b16 %v2139, %v2138
    %v2212 = vpack.c.b16 %v2141, %v2140
    %v2213 = vpack.c.b16 %v2143, %v2142
    %v2214 = vpack.c.b16 %v2145, %v2144
    %v2215 = vpack.c.b16 %v2147, %v2146
    %v2216 = vpack.c.b16 %v2149, %v2148
    %v2217 = vpack.c.b16 %v2151, %v2150
    %v2218 = vpack.c.b16 %v2153, %v2152
    %v2219 = vpack.c.b16 %v2155, %v2154
    %2284 = vmatprep.subr.bf16.mxu0 0
    %2285 = vmatpush1.bf16.msra.mxu0 %v2156
    %2286 = vmatprep.subr.bf16.mxu0 0
    %2287 = vmatpush1.bf16.msra.mxu0 %v2157
    %2288 = vmatprep.subr.bf16.mxu0 0
    %2289 = vmatpush1.bf16.msra.mxu0 %v2158
    %2290 = vmatprep.subr.bf16.mxu0 0
    %2291 = vmatpush1.bf16.msra.mxu0 %v2159
    %2292 = vmatprep.subr.bf16.mxu0 0
    %2293 = vmatpush1.bf16.msra.mxu0 %v2160
    %2294 = vmatprep.subr.bf16.mxu0 0
    %2295 = vmatpush1.bf16.msra.mxu0 %v2161
    %2296 = vmatprep.subr.bf16.mxu0 0
    %2297 = vmatpush1.bf16.msra.mxu0 %v2162
    %2298 = vmatprep.subr.bf16.mxu0 0
    %2299 = vmatpush1.bf16.msra.mxu0 %v2163
    %2300 = vmatprep.subr.bf16.mxu0 0
    %2301 = vmatpush1.bf16.msra.mxu0 %v2164
    %2302 = vmatprep.subr.bf16.mxu0 0
    %2303 = vmatpush1.bf16.msra.mxu0 %v2165
    %2304 = vmatprep.subr.bf16.mxu0 0
    %2305 = vmatpush1.bf16.msra.mxu0 %v2166
    %2306 = vmatprep.subr.bf16.mxu0 0
    %2307 = vmatpush1.bf16.msra.mxu0 %v2167
    %2308 = vmatprep.subr.bf16.mxu0 0
    %2309 = vmatpush1.bf16.msra.mxu0 %v2168
    %2310 = vmatprep.subr.bf16.mxu0 0
    %2311 = vmatpush1.bf16.msra.mxu0 %v2169
    %2312 = vmatprep.subr.bf16.mxu0 0
    %2313 = vmatpush1.bf16.msra.mxu0 %v2170
    %2314 = vmatprep.subr.bf16.mxu0 0
    %2315 = vmatpush1.bf16.msra.mxu0 %v2171
    %2316 = vmatprep.mubr.bf16.mxu0 %v1765
    %2317 = vmatmul.mubr.bf16.gmra.mrb[0].mxu0 %v1764
    %v2318 = vpop.f32.mrb[0].mxu0
    %v2319 = vadd.f32 0.0, %v2318
    %v2320 = vpop.f32.mrb[0].mxu0
    %v2321 = vpop.f32.mrb[0].mxu0
    %v2322 = vadd.f32 0.0, %v2321
    %v2323 = vpop.f32.mrb[0].mxu0
    %2324 = vdwg.mxu0
    %2325 = vmatprep.subr.bf16.mxu0 0
    %2326 = vmatpush1.bf16.msra.mxu0 %v2172
    %2327 = vmatprep.subr.bf16.mxu0 0
    %2328 = vmatpush1.bf16.msra.mxu0 %v2173
    %2329 = vmatprep.subr.bf16.mxu0 0
    %2330 = vmatpush1.bf16.msra.mxu0 %v2174
    %2331 = vmatprep.subr.bf16.mxu0 0
    %2332 = vmatpush1.bf16.msra.mxu0 %v2175
    %2333 = vmatprep.subr.bf16.mxu0 0
    %2334 = vmatpush1.bf16.msra.mxu0 %v2176
    %2335 = vmatprep.subr.bf16.mxu0 0
    %2336 = vmatpush1.bf16.msra.mxu0 %v2177
    %2337 = vmatprep.subr.bf16.mxu0 0
    %2338 = vmatpush1.bf16.msra.mxu0 %v2178
    %2339 = vmatprep.subr.bf16.mxu0 0
    %2340 = vmatpush1.bf16.msra.mxu0 %v2179
    %2341 = vmatprep.subr.bf16.mxu0 0
    %2342 = vmatpush1.bf16.msra.mxu0 %v2180
    %2343 = vmatprep.subr.bf16.mxu0 0
    %2344 = vmatpush1.bf16.msra.mxu0 %v2181
    %2345 = vmatprep.subr.bf16.mxu0 0
    %2346 = vmatpush1.bf16.msra.mxu0 %v2182
    %2347 = vmatprep.subr.bf16.mxu0 0
    %2348 = vmatpush1.bf16.msra.mxu0 %v2183
    %2349 = vmatprep.subr.bf16.mxu0 0
    %2350 = vmatpush1.bf16.msra.mxu0 %v2184
    %2351 = vmatprep.subr.bf16.mxu0 0
    %2352 = vmatpush1.bf16.msra.mxu0 %v2185
    %2353 = vmatprep.subr.bf16.mxu0 0
    %2354 = vmatpush1.bf16.msra.mxu0 %v2186
    %2355 = vmatprep.subr.bf16.mxu0 0
    %2356 = vmatpush1.bf16.msra.mxu0 %v2187
    %2357 = vmatprep.mubr.bf16.mxu0 %v1767
    %2358 = vmatmul.mubr.bf16.gmra.mrb[0].mxu0 %v1766
    %v2359 = vpop.f32.mrb[0].mxu0
    %v2360 = vadd.f32 %v2319, %v2359
    %v2361 = vpop.f32.mrb[0].mxu0
    %v2362 = vpop.f32.mrb[0].mxu0
    %v2363 = vadd.f32 %v2322, %v2362
    %v2364 = vpop.f32.mrb[0].mxu0
    %2365 = vdwg.mxu0
    %2366 = vmatprep.subr.bf16.mxu0 0
    %2367 = vmatpush1.bf16.msra.mxu0 %v2188
    %2368 = vmatprep.subr.bf16.mxu0 0
    %2369 = vmatpush1.bf16.msra.mxu0 %v2189
    %2370 = vmatprep.subr.bf16.mxu0 0
    %2371 = vmatpush1.bf16.msra.mxu0 %v2190
    %2372 = vmatprep.subr.bf16.mxu0 0
    %2373 = vmatpush1.bf16.msra.mxu0 %v2191
    %2374 = vmatprep.subr.bf16.mxu0 0
    %2375 = vmatpush1.bf16.msra.mxu0 %v2192
    %2376 = vmatprep.subr.bf16.mxu0 0
    %2377 = vmatpush1.bf16.msra.mxu0 %v2193
    %2378 = vmatprep.subr.bf16.mxu0 0
    %2379 = vmatpush1.bf16.msra.mxu0 %v2194
    %2380 = vmatprep.subr.bf16.mxu0 0
    %2381 = vmatpush1.bf16.msra.mxu0 %v2195
    %2382 = vmatprep.subr.bf16.mxu0 0
    %2383 = vmatpush1.bf16.msra.mxu0 %v2196
    %2384 = vmatprep.subr.bf16.mxu0 0
    %2385 = vmatpush1.bf16.msra.mxu0 %v2197
    %2386 = vmatprep.subr.bf16.mxu0 0
    %2387 = vmatpush1.bf16.msra.mxu0 %v2198
    %2388 = vmatprep.subr.bf16.mxu0 0
    %2389 = vmatpush1.bf16.msra.mxu0 %v2199
    %2390 = vmatprep.subr.bf16.mxu0 0
    %2391 = vmatpush1.bf16.msra.mxu0 %v2200
    %2392 = vmatprep.subr.bf16.mxu0 0
    %2393 = vmatpush1.bf16.msra.mxu0 %v2201
    %2394 = vmatprep.subr.bf16.mxu0 0
    %2395 = vmatpush1.bf16.msra.mxu0 %v2202
    %2396 = vmatprep.subr.bf16.mxu0 0
    %2397 = vmatpush1.bf16.msra.mxu0 %v2203
    %2398 = vmatprep.mubr.bf16.mxu0 %v1769
    %2399 = vmatmul.mubr.bf16.gmra.mrb[0].mxu0 %v1768
    %v2400 = vpop.f32.mrb[0].mxu0
    %v2401 = vadd.f32 %v2360, %v2400
    %v2402 = vpop.f32.mrb[0].mxu0
    %v2403 = vpop.f32.mrb[0].mxu0
    %v2404 = vadd.f32 %v2363, %v2403
    %v2405 = vpop.f32.mrb[0].mxu0
    %2406 = vdwg.mxu0
    %2407 = vmatprep.subr.bf16.mxu0 0
    %2408 = vmatpush1.bf16.msra.mxu0 %v2204
    %2409 = vmatprep.subr.bf16.mxu0 0
    %2410 = vmatpush1.bf16.msra.mxu0 %v2205
    %2411 = vmatprep.subr.bf16.mxu0 0
    %2412 = vmatpush1.bf16.msra.mxu0 %v2206
    %2413 = vmatprep.subr.bf16.mxu0 0
    %2414 = vmatpush1.bf16.msra.mxu0 %v2207
    %2415 = vmatprep.subr.bf16.mxu0 0
    %2416 = vmatpush1.bf16.msra.mxu0 %v2208
    %2417 = vmatprep.subr.bf16.mxu0 0
    %2418 = vmatpush1.bf16.msra.mxu0 %v2209
    %2419 = vmatprep.subr.bf16.mxu0 0
    %2420 = vmatpush1.bf16.msra.mxu0 %v2210
    %2421 = vmatprep.subr.bf16.mxu0 0
    %2422 = vmatpush1.bf16.msra.mxu0 %v2211
    %2423 = vmatprep.subr.bf16.mxu0 0
    %2424 = vmatpush1.bf16.msra.mxu0 %v2212
    %2425 = vmatprep.subr.bf16.mxu0 0
    %2426 = vmatpush1.bf16.msra.mxu0 %v2213
    %2427 = vmatprep.subr.bf16.mxu0 0
    %2428 = vmatpush1.bf16.msra.mxu0 %v2214
    %2429 = vmatprep.subr.bf16.mxu0 0
    %2430 = vmatpush1.bf16.msra.mxu0 %v2215
    %2431 = vmatprep.subr.bf16.mxu0 0
    %2432 = vmatpush1.bf16.msra.mxu0 %v2216
    %2433 = vmatprep.subr.bf16.mxu0 0
    %2434 = vmatpush1.bf16.msra.mxu0 %v2217
    %2435 = vmatprep.subr.bf16.mxu0 0
    %2436 = vmatpush1.bf16.msra.mxu0 %v2218
    %2437 = vmatprep.subr.bf16.mxu0 0
    %2438 = vmatpush1.bf16.msra.mxu0 %v2219
    %2439 = vmatprep.mubr.bf16.mxu0 %v1771
    %2440 = vmatmul.mubr.bf16.gmra.mrb[0].mxu0 %v1770
    %v2441 = vpop.f32.mrb[0].mxu0
    %v2442 = vadd.f32 %v2401, %v2441
    %v2443 = vpop.f32.mrb[0].mxu0
    %v2444 = vpop.f32.mrb[0].mxu0
    %v2445 = vadd.f32 %v2404, %v2444
    %v2446 = vpop.f32.mrb[0].mxu0
    %2447 = vdwg.mxu0
    %v2576 = vunpack.c.l.b16 %v1310
    %v2577 = vunpack.c.l.b16 %v1311
    %v2578 = vunpack.c.l.b16 %v1312
    %v2579 = vunpack.c.l.b16 %v1313
    %v2580 = vunpack.c.l.b16 %v1314
    %v2581 = vunpack.c.l.b16 %v1315
    %v2582 = vunpack.c.l.b16 %v1316
    %v2583 = vunpack.c.l.b16 %v1317
    %v2584 = vunpack.c.l.b16 %v1318
    %v2585 = vunpack.c.l.b16 %v1319
    %v2586 = vunpack.c.l.b16 %v1320
    %v2587 = vunpack.c.l.b16 %v1321
    %v2588 = vunpack.c.l.b16 %v1322
    %v2589 = vunpack.c.l.b16 %v1323
    %v2590 = vunpack.c.l.b16 %v1324
    %v2591 = vunpack.c.l.b16 %v1325
    %v2592 = vunpack.c.l.b16 %v1326
    %v2593 = vunpack.c.l.b16 %v1327
    %v2594 = vunpack.c.l.b16 %v1328
    %v2595 = vunpack.c.l.b16 %v1329
    %v2596 = vunpack.c.l.b16 %v1330
    %v2597 = vunpack.c.l.b16 %v1331
    %v2598 = vunpack.c.l.b16 %v1332
    %v2599 = vunpack.c.l.b16 %v1333
    %v2600 = vunpack.c.l.b16 %v1334
    %v2601 = vunpack.c.l.b16 %v1335
    %v2602 = vunpack.c.l.b16 %v1336
    %v2603 = vunpack.c.l.b16 %v1337
    %v2604 = vunpack.c.l.b16 %v1338
    %v2605 = vunpack.c.l.b16 %v1339
    %v2606 = vunpack.c.l.b16 %v1340
    %v2607 = vunpack.c.l.b16 %v1341
    %v2608 = vunpack.c.l.b16 %v1342
    %v2609 = vunpack.c.l.b16 %v1343
    %v2610 = vunpack.c.l.b16 %v1344
    %v2611 = vunpack.c.l.b16 %v1345
    %v2612 = vunpack.c.l.b16 %v1346
    %v2613 = vunpack.c.l.b16 %v1347
    %v2614 = vunpack.c.l.b16 %v1348
    %v2615 = vunpack.c.l.b16 %v1349
    %v2616 = vunpack.c.l.b16 %v1350
    %v2617 = vunpack.c.l.b16 %v1351
    %v2618 = vunpack.c.l.b16 %v1352
    %v2619 = vunpack.c.l.b16 %v1353
    %v2620 = vunpack.c.l.b16 %v1354
    %v2621 = vunpack.c.l.b16 %v1355
    %v2622 = vunpack.c.l.b16 %v1356
    %v2623 = vunpack.c.l.b16 %v1357
    %v2624 = vunpack.c.l.b16 %v1358
    %v2625 = vunpack.c.l.b16 %v1359
    %v2626 = vunpack.c.l.b16 %v1360
    %v2627 = vunpack.c.l.b16 %v1361
    %v2628 = vunpack.c.l.b16 %v1362
    %v2629 = vunpack.c.l.b16 %v1363
    %v2630 = vunpack.c.l.b16 %v1364
    %v2631 = vunpack.c.l.b16 %v1365
    %v2632 = vunpack.c.l.b16 %v1366
    %v2633 = vunpack.c.l.b16 %v1367
    %v2634 = vunpack.c.l.b16 %v1368
    %v2635 = vunpack.c.l.b16 %v1369
    %v2636 = vunpack.c.l.b16 %v1370
    %v2637 = vunpack.c.l.b16 %v1371
    %v2638 = vunpack.c.l.b16 %v1372
    %v2639 = vunpack.c.l.b16 %v1373
    %v2640 = vunpack.c.l.b16 %v1374
    %v2641 = vunpack.c.l.b16 %v1375
    %v2642 = vunpack.c.l.b16 %v1376
    %v2643 = vunpack.c.l.b16 %v1377
    %v2644 = vunpack.c.l.b16 %v1378
    %v2645 = vunpack.c.l.b16 %v1379
    %v2646 = vunpack.c.l.b16 %v1380
    %v2647 = vunpack.c.l.b16 %v1381
    %v2648 = vunpack.c.l.b16 %v1382
    %v2649 = vunpack.c.l.b16 %v1383
    %v2650 = vunpack.c.l.b16 %v1384
    %v2651 = vunpack.c.l.b16 %v1385
    %v2652 = vunpack.c.l.b16 %v1386
    %v2653 = vunpack.c.l.b16 %v1387
    %v2654 = vunpack.c.l.b16 %v1388
    %v2655 = vunpack.c.l.b16 %v1389
    %v2656 = vunpack.c.l.b16 %v1390
    %v2657 = vunpack.c.l.b16 %v1391
    %v2658 = vunpack.c.l.b16 %v1392
    %v2659 = vunpack.c.l.b16 %v1393
    %v2660 = vunpack.c.l.b16 %v1394
    %v2661 = vunpack.c.l.b16 %v1395
    %v2662 = vunpack.c.l.b16 %v1396
    %v2663 = vunpack.c.l.b16 %v1397
    %v2664 = vunpack.c.l.b16 %v1398
    %v2665 = vunpack.c.l.b16 %v1399
    %v2666 = vunpack.c.l.b16 %v1400
    %v2667 = vunpack.c.l.b16 %v1401
    %v2668 = vunpack.c.l.b16 %v1402
    %v2669 = vunpack.c.l.b16 %v1403
    %v2670 = vunpack.c.l.b16 %v1404
    %v2671 = vunpack.c.l.b16 %v1405
    %v2672 = vunpack.c.l.b16 %v1406
    %v2673 = vunpack.c.l.b16 %v1407
    %v2674 = vunpack.c.l.b16 %v1408
    %v2675 = vunpack.c.l.b16 %v1409
    %v2676 = vunpack.c.l.b16 %v1410
    %v2677 = vunpack.c.l.b16 %v1411
    %v2678 = vunpack.c.l.b16 %v1412
    %v2679 = vunpack.c.l.b16 %v1413
    %v2680 = vunpack.c.l.b16 %v1414
    %v2681 = vunpack.c.l.b16 %v1415
    %v2682 = vunpack.c.l.b16 %v1416
    %v2683 = vunpack.c.l.b16 %v1417
    %v2684 = vunpack.c.l.b16 %v1418
    %v2685 = vunpack.c.l.b16 %v1419
    %v2686 = vunpack.c.l.b16 %v1420
    %v2687 = vunpack.c.l.b16 %v1421
    %v2688 = vunpack.c.l.b16 %v1422
    %v2689 = vunpack.c.l.b16 %v1423
    %v2690 = vunpack.c.l.b16 %v1424
    %v2691 = vunpack.c.l.b16 %v1425
    %v2692 = vunpack.c.l.b16 %v1426
    %v2693 = vunpack.c.l.b16 %v1427
    %v2694 = vunpack.c.l.b16 %v1428
    %v2695 = vunpack.c.l.b16 %v1429
    %v2696 = vunpack.c.l.b16 %v1430
    %v2697 = vunpack.c.l.b16 %v1431
    %v2698 = vunpack.c.l.b16 %v1432
    %v2699 = vunpack.c.l.b16 %v1433
    %v2700 = vunpack.c.l.b16 %v1434
    %v2701 = vunpack.c.l.b16 %v1435
    %v2702 = vunpack.c.l.b16 %v1436
    %v2703 = vunpack.c.l.b16 %v1437
    %v2704 = vpack.c.b16 %v2577, %v2576
    %v2705 = vpack.c.b16 %v2579, %v2578
    %v2706 = vpack.c.b16 %v2581, %v2580
    %v2707 = vpack.c.b16 %v2583, %v2582
    %v2708 = vpack.c.b16 %v2585, %v2584
    %v2709 = vpack.c.b16 %v2587, %v2586
    %v2710 = vpack.c.b16 %v2589, %v2588
    %v2711 = vpack.c.b16 %v2591, %v2590
    %v2712 = vpack.c.b16 %v2593, %v2592
    %v2713 = vpack.c.b16 %v2595, %v2594
    %v2714 = vpack.c.b16 %v2597, %v2596
    %v2715 = vpack.c.b16 %v2599, %v2598
    %v2716 = vpack.c.b16 %v2601, %v2600
    %v2717 = vpack.c.b16 %v2603, %v2602
    %v2718 = vpack.c.b16 %v2605, %v2604
    %v2719 = vpack.c.b16 %v2607, %v2606
    %v2720 = vpack.c.b16 %v2609, %v2608
    %v2721 = vpack.c.b16 %v2611, %v2610
    %v2722 = vpack.c.b16 %v2613, %v2612
    %v2723 = vpack.c.b16 %v2615, %v2614
    %v2724 = vpack.c.b16 %v2617, %v2616
    %v2725 = vpack.c.b16 %v2619, %v2618
    %v2726 = vpack.c.b16 %v2621, %v2620
    %v2727 = vpack.c.b16 %v2623, %v2622
    %v2728 = vpack.c.b16 %v2625, %v2624
    %v2729 = vpack.c.b16 %v2627, %v2626
    %v2730 = vpack.c.b16 %v2629, %v2628
    %v2731 = vpack.c.b16 %v2631, %v2630
    %v2732 = vpack.c.b16 %v2633, %v2632
    %v2733 = vpack.c.b16 %v2635, %v2634
    %v2734 = vpack.c.b16 %v2637, %v2636
    %v2735 = vpack.c.b16 %v2639, %v2638
    %v2736 = vpack.c.b16 %v2641, %v2640
    %v2737 = vpack.c.b16 %v2643, %v2642
    %v2738 = vpack.c.b16 %v2645, %v2644
    %v2739 = vpack.c.b16 %v2647, %v2646
    %v2740 = vpack.c.b16 %v2649, %v2648
    %v2741 = vpack.c.b16 %v2651, %v2650
    %v2742 = vpack.c.b16 %v2653, %v2652
    %v2743 = vpack.c.b16 %v2655, %v2654
    %v2744 = vpack.c.b16 %v2657, %v2656
    %v2745 = vpack.c.b16 %v2659, %v2658
    %v2746 = vpack.c.b16 %v2661, %v2660
    %v2747 = vpack.c.b16 %v2663, %v2662
    %v2748 = vpack.c.b16 %v2665, %v2664
    %v2749 = vpack.c.b16 %v2667, %v2666
    %v2750 = vpack.c.b16 %v2669, %v2668
    %v2751 = vpack.c.b16 %v2671, %v2670
    %v2752 = vpack.c.b16 %v2673, %v2672
    %v2753 = vpack.c.b16 %v2675, %v2674
    %v2754 = vpack.c.b16 %v2677, %v2676
    %v2755 = vpack.c.b16 %v2679, %v2678
    %v2756 = vpack.c.b16 %v2681, %v2680
    %v2757 = vpack.c.b16 %v2683, %v2682
    %v2758 = vpack.c.b16 %v2685, %v2684
    %v2759 = vpack.c.b16 %v2687, %v2686
    %v2760 = vpack.c.b16 %v2689, %v2688
    %v2761 = vpack.c.b16 %v2691, %v2690
    %v2762 = vpack.c.b16 %v2693, %v2692
    %v2763 = vpack.c.b16 %v2695, %v2694
    %v2764 = vpack.c.b16 %v2697, %v2696
    %v2765 = vpack.c.b16 %v2699, %v2698
    %v2766 = vpack.c.b16 %v2701, %v2700
    %v2767 = vpack.c.b16 %v2703, %v2702
    %2832 = vmatprep.subr.bf16.mxu0 0
    %2833 = vmatpush1.bf16.msra.mxu0 %v2704
    %2834 = vmatprep.subr.bf16.mxu0 0
    %2835 = vmatpush1.bf16.msra.mxu0 %v2705
    %2836 = vmatprep.subr.bf16.mxu0 0
    %2837 = vmatpush1.bf16.msra.mxu0 %v2706
    %2838 = vmatprep.subr.bf16.mxu0 0
    %2839 = vmatpush1.bf16.msra.mxu0 %v2707
    %2840 = vmatprep.subr.bf16.mxu0 0
    %2841 = vmatpush1.bf16.msra.mxu0 %v2708
    %2842 = vmatprep.subr.bf16.mxu0 0
    %2843 = vmatpush1.bf16.msra.mxu0 %v2709
    %2844 = vmatprep.subr.bf16.mxu0 0
    %2845 = vmatpush1.bf16.msra.mxu0 %v2710
    %2846 = vmatprep.subr.bf16.mxu0 0
    %2847 = vmatpush1.bf16.msra.mxu0 %v2711
    %2848 = vmatprep.subr.bf16.mxu0 0
    %2849 = vmatpush1.bf16.msra.mxu0 %v2712
    %2850 = vmatprep.subr.bf16.mxu0 0
    %2851 = vmatpush1.bf16.msra.mxu0 %v2713
    %2852 = vmatprep.subr.bf16.mxu0 0
    %2853 = vmatpush1.bf16.msra.mxu0 %v2714
    %2854 = vmatprep.subr.bf16.mxu0 0
    %2855 = vmatpush1.bf16.msra.mxu0 %v2715
    %2856 = vmatprep.subr.bf16.mxu0 0
    %2857 = vmatpush1.bf16.msra.mxu0 %v2716
    %2858 = vmatprep.subr.bf16.mxu0 0
    %2859 = vmatpush1.bf16.msra.mxu0 %v2717
    %2860 = vmatprep.subr.bf16.mxu0 0
    %2861 = vmatpush1.bf16.msra.mxu0 %v2718
    %2862 = vmatprep.subr.bf16.mxu0 0
    %2863 = vmatpush1.bf16.msra.mxu0 %v2719
    %2864 = vmatprep.mubr.bf16.mxu0 %v1303
    %2865 = vmatmul.mubr.bf16.gmra.mrb[0].mxu0 %v1302
    %v2866 = vpop.f32.mrb[0].mxu0
    %v2867 = vadd.f32 %v2442, %v2866
    %v2868 = vpop.f32.mrb[0].mxu0
    %v2869 = vpop.f32.mrb[0].mxu0
    %v2870 = vadd.f32 %v2445, %v2869
    %v2871 = vpop.f32.mrb[0].mxu0
    %2872 = vdwg.mxu0
    %2873 = vmatprep.subr.bf16.mxu0 0
    %2874 = vmatpush1.bf16.msra.mxu0 %v2720
    %2875 = vmatprep.subr.bf16.mxu0 0
    %2876 = vmatpush1.bf16.msra.mxu0 %v2721
    %2877 = vmatprep.subr.bf16.mxu0 0
    %2878 = vmatpush1.bf16.msra.mxu0 %v2722
    %2879 = vmatprep.subr.bf16.mxu0 0
    %2880 = vmatpush1.bf16.msra.mxu0 %v2723
    %2881 = vmatprep.subr.bf16.mxu0 0
    %2882 = vmatpush1.bf16.msra.mxu0 %v2724
    %2883 = vmatprep.subr.bf16.mxu0 0
    %2884 = vmatpush1.bf16.msra.mxu0 %v2725
    %2885 = vmatprep.subr.bf16.mxu0 0
    %2886 = vmatpush1.bf16.msra.mxu0 %v2726
    %2887 = vmatprep.subr.bf16.mxu0 0
    %2888 = vmatpush1.bf16.msra.mxu0 %v2727
    %2889 = vmatprep.subr.bf16.mxu0 0
    %2890 = vmatpush1.bf16.msra.mxu0 %v2728
    %2891 = vmatprep.subr.bf16.mxu0 0
    %2892 = vmatpush1.bf16.msra.mxu0 %v2729
    %2893 = vmatprep.subr.bf16.mxu0 0
    %2894 = vmatpush1.bf16.msra.mxu0 %v2730
    %2895 = vmatprep.subr.bf16.mxu0 0
    %2896 = vmatpush1.bf16.msra.mxu0 %v2731
    %2897 = vmatprep.subr.bf16.mxu0 0
    %2898 = vmatpush1.bf16.msra.mxu0 %v2732
    %2899 = vmatprep.subr.bf16.mxu0 0
    %2900 = vmatpush1.bf16.msra.mxu0 %v2733
    %2901 = vmatprep.subr.bf16.mxu0 0
    %2902 = vmatpush1.bf16.msra.mxu0 %v2734
    %2903 = vmatprep.subr.bf16.mxu0 0
    %2904 = vmatpush1.bf16.msra.mxu0 %v2735
    %2905 = vmatprep.mubr.bf16.mxu0 %v1305
    %2906 = vmatmul.mubr.bf16.gmra.mrb[0].mxu0 %v1304
    %v2907 = vpop.f32.mrb[0].mxu0
    %v2908 = vadd.f32 %v2867, %v2907
    %v2909 = vpop.f32.mrb[0].mxu0
    %v2910 = vpop.f32.mrb[0].mxu0
    %v2911 = vadd.f32 %v2870, %v2910
    %v2912 = vpop.f32.mrb[0].mxu0
    %2913 = vdwg.mxu0
    %2914 = vmatprep.subr.bf16.mxu0 0
    %2915 = vmatpush1.bf16.msra.mxu0 %v2736
    %2916 = vmatprep.subr.bf16.mxu0 0
    %2917 = vmatpush1.bf16.msra.mxu0 %v2737
    %2918 = vmatprep.subr.bf16.mxu0 0
    %2919 = vmatpush1.bf16.msra.mxu0 %v2738
    %2920 = vmatprep.subr.bf16.mxu0 0
    %2921 = vmatpush1.bf16.msra.mxu0 %v2739
    %2922 = vmatprep.subr.bf16.mxu0 0
    %2923 = vmatpush1.bf16.msra.mxu0 %v2740
    %2924 = vmatprep.subr.bf16.mxu0 0
    %2925 = vmatpush1.bf16.msra.mxu0 %v2741
    %2926 = vmatprep.subr.bf16.mxu0 0
    %2927 = vmatpush1.bf16.msra.mxu0 %v2742
    %2928 = vmatprep.subr.bf16.mxu0 0
    %2929 = vmatpush1.bf16.msra.mxu0 %v2743
    %2930 = vmatprep.subr.bf16.mxu0 0
    %2931 = vmatpush1.bf16.msra.mxu0 %v2744
    %2932 = vmatprep.subr.bf16.mxu0 0
    %2933 = vmatpush1.bf16.msra.mxu0 %v2745
    %2934 = vmatprep.subr.bf16.mxu0 0
    %2935 = vmatpush1.bf16.msra.mxu0 %v2746
    %2936 = vmatprep.subr.bf16.mxu0 0
    %2937 = vmatpush1.bf16.msra.mxu0 %v2747
    %2938 = vmatprep.subr.bf16.mxu0 0
    %2939 = vmatpush1.bf16.msra.mxu0 %v2748
    %2940 = vmatprep.subr.bf16.mxu0 0
    %2941 = vmatpush1.bf16.msra.mxu0 %v2749
    %2942 = vmatprep.subr.bf16.mxu0 0
    %2943 = vmatpush1.bf16.msra.mxu0 %v2750
    %2944 = vmatprep.subr.bf16.mxu0 0
    %2945 = vmatpush1.bf16.msra.mxu0 %v2751
    %2946 = vmatprep.mubr.bf16.mxu0 %v1307
    %2947 = vmatmul.mubr.bf16.gmra.mrb[0].mxu0 %v1306
    %v2948 = vpop.f32.mrb[0].mxu0
    %v2949 = vadd.f32 %v2908, %v2948
    %v2950 = vpop.f32.mrb[0].mxu0
    %v2951 = vpop.f32.mrb[0].mxu0
    %v2952 = vadd.f32 %v2911, %v2951
    %v2953 = vpop.f32.mrb[0].mxu0
    %2954 = vdwg.mxu0
    %2955 = vmatprep.subr.bf16.mxu0 0
    %2956 = vmatpush1.bf16.msra.mxu0 %v2752
    %2957 = vmatprep.subr.bf16.mxu0 0
    %2958 = vmatpush1.bf16.msra.mxu0 %v2753
    %2959 = vmatprep.subr.bf16.mxu0 0
    %2960 = vmatpush1.bf16.msra.mxu0 %v2754
    %2961 = vmatprep.subr.bf16.mxu0 0
    %2962 = vmatpush1.bf16.msra.mxu0 %v2755
    %2963 = vmatprep.subr.bf16.mxu0 0
    %2964 = vmatpush1.bf16.msra.mxu0 %v2756
    %2965 = vmatprep.subr.bf16.mxu0 0
    %2966 = vmatpush1.bf16.msra.mxu0 %v2757
    %2967 = vmatprep.subr.bf16.mxu0 0
    %2968 = vmatpush1.bf16.msra.mxu0 %v2758
    %2969 = vmatprep.subr.bf16.mxu0 0
    %2970 = vmatpush1.bf16.msra.mxu0 %v2759
    %2971 = vmatprep.subr.bf16.mxu0 0
    %2972 = vmatpush1.bf16.msra.mxu0 %v2760
    %2973 = vmatprep.subr.bf16.mxu0 0
    %2974 = vmatpush1.bf16.msra.mxu0 %v2761
    %2975 = vmatprep.subr.bf16.mxu0 0
    %2976 = vmatpush1.bf16.msra.mxu0 %v2762
    %2977 = vmatprep.subr.bf16.mxu0 0
    %2978 = vmatpush1.bf16.msra.mxu0 %v2763
    %2979 = vmatprep.subr.bf16.mxu0 0
    %2980 = vmatpush1.bf16.msra.mxu0 %v2764
    %2981 = vmatprep.subr.bf16.mxu0 0
    %2982 = vmatpush1.bf16.msra.mxu0 %v2765
    %2983 = vmatprep.subr.bf16.mxu0 0
    %2984 = vmatpush1.bf16.msra.mxu0 %v2766
    %2985 = vmatprep.subr.bf16.mxu0 0
    %2986 = vmatpush1.bf16.msra.mxu0 %v2767
    %2987 = vmatprep.mubr.bf16.mxu0 %v1309
    %2988 = vmatmul.mubr.bf16.gmra.mrb[0].mxu0 %v1308
    %v2989 = vpop.f32.mrb[0].mxu0
    %v2990 = vadd.f32 %v2949, %v2989
    %v2991 = vpop.f32.mrb[0].mxu0
    %v2992 = vpop.f32.mrb[0].mxu0
    %v2993 = vadd.f32 %v2952, %v2992
    %v2994 = vpop.f32.mrb[0].mxu0
    %2995 = vdwg.mxu0
    %v2996 = vlaneseq
    %v2997 = vshrl.u32 %v2996, 7
    %v2998 = vsub.s32 0, %v2997
    %v2999 = vrot.slane %v43, %v2998
    %v3000 = vadd.f32 %v2990, %v2999
    %v3001 = vadd.f32 %v2993, %v2999
    %v3002 = vadd.f32 %v970, %v3000
    %v3003 = vadd.f32 %v971, %v3001
    %v3004 = vsel %vm48, %v3002, 0.0
    %3005 = vadd.xlane.f32.xlu0 %v3004
    %v3006 = vpop.xlane.xlu0 %3005
    %v3007 = vsel %vm48, %v3003, 0.0
    %3008 = vadd.xlane.f32.xlu0 %v3007
    %v3009 = vpop.xlane.xlu0 %3008
    %v3010 = vmul.f32 %v3006, %v939
    %v3011 = vmul.f32 %v3009, %v939
    %v3012 = vsub.f32 %v3002, %v3010
    %v3013 = vsub.f32 %v3003, %v3011
    %v3014 = vmul.f32 %v3012, %v3012
    %v3015 = vmul.f32 %v3013, %v3013
    %v3016 = vsel %vm48, %v3014, 0.0
    %3017 = vadd.xlane.f32.xlu0 %v3016
    %v3018 = vpop.xlane.xlu0 %3017
    %v3019 = vsel %vm48, %v3015, 0.0
    %3020 = vadd.xlane.f32.xlu0 %v3019
    %v3021 = vpop.xlane.xlu0 %3020
    %v3022 = vmul.f32 %v3018, %v939
    %v3023 = vmul.f32 %v3021, %v939
    %v3024 = vadd.f32 %v3022, 1e-05
    %v3025 = vadd.f32 %v3023, 1e-05
    %v3026 = vrsqrt.pop %v3024
    %v3027 = vrsqrt.pop %v3025
    %v3028 = vmul.f32 %v3012, %v3026
    %v3029 = vmul.f32 %v3013, %v3027
    %v3030 = vlaneseq
    %v3031 = vshrl.u32 %v3030, 7
    %v3032 = vsub.s32 6, %v3031
    %v3033 = vrot.slane %v42, %v3032
    %v3034 = vmul.f32 %v3028, %v3033
    %v3035 = vmul.f32 %v3029, %v3033
    %v3036 = vlaneseq
    %v3037 = vshrl.u32 %v3036, 7
    %v3038 = vsub.s32 7, %v3037
    %v3039 = vrot.slane %v42, %v3038
    %v3040 = vadd.f32 %v3034, %v3039
    %v3041 = vadd.f32 %v3035, %v3039
    %s3042 = scalar_lea.vmem %s4, 16
    %v3043 = vld [vmem:[%s3042] sm:$0xff]
    %v3044 = vld [vmem:[%s3042 + $0x8] sm:$0x1]
    %s3045 = scalar_lea.vmem %s2, 32
    %v3046 = vld [vmem:[%s3045] sm:$0xff]
    %v3047 = vld [vmem:[%s3045 + $0x8] sm:$0xff]
    %v3048 = vld [vmem:[%s3045 + $0x10] sm:$0xff]
    %v3049 = vld [vmem:[%s3045 + $0x18] sm:$0xff]
    %v3051 = vsel %vm48, %v3040, 0
    %v3054 = vsel %vm48, %v3041, 0
    %3056 = vmatprep.subr.mxu0 0.0
    %3057 = vmatpush1.msra.mxu0 %v3046
    %3058 = vmatprep.subr.mxu0 0.0
    %3059 = vmatpush1.msra.mxu0 %v3047
    %3060 = vmatprep.subr.mxu0 0.0
    %3061 = vmatpush1.msra.mxu0 %v3048
    %3062 = vmatprep.subr.mxu0 0.0
    %3063 = vmatpush1.msra.mxu0 %v3049
    %3064 = vmatprep.subr.mxu0 0.0
    %3065 = vmatpush1.msra.mxu0 0.0
    %3066 = vmatprep.subr.mxu0 0.0
    %3067 = vmatpush1.msra.mxu0 0.0
    %3068 = vmatprep.subr.mxu0 0.0
    %3069 = vmatpush1.msra.mxu0 0.0
    %3070 = vmatprep.subr.mxu0 0.0
    %3071 = vmatpush1.msra.mxu0 0.0
    %3072 = vmatprep.subr.mxu0 0.0
    %3073 = vmatpush1.msra.mxu0 0.0
    %3074 = vmatprep.subr.mxu0 0.0
    %3075 = vmatpush1.msra.mxu0 0.0
    %3076 = vmatprep.subr.mxu0 0.0
    %3077 = vmatpush1.msra.mxu0 0.0
    %3078 = vmatprep.subr.mxu0 0.0
    %3079 = vmatpush1.msra.mxu0 0.0
    %3080 = vmatprep.subr.mxu0 0.0
    %3081 = vmatpush1.msra.mxu0 0.0
    %3082 = vmatprep.subr.mxu0 0.0
    %3083 = vmatpush1.msra.mxu0 0.0
    %3084 = vmatprep.subr.mxu0 0.0
    %3085 = vmatpush1.msra.mxu0 0.0
    %3086 = vmatprep.subr.mxu0 0.0
    %3087 = vmatpush1.msra.mxu0 0.0
    %3088 = vmatprep.subr.mxu0 0.0
    %3089 = vmatpush1.msra.mxu0 0.0
    %3090 = vmatprep.subr.mxu0 0.0
    %3091 = vmatpush1.msra.mxu0 0.0
    %3092 = vmatprep.subr.mxu0 0.0
    %3093 = vmatpush1.msra.mxu0 0.0
    %3094 = vmatprep.subr.mxu0 0.0
    %3095 = vmatpush1.msra.mxu0 0.0
    %3096 = vmatprep.subr.mxu0 0.0
    %3097 = vmatpush1.msra.mxu0 0.0
    %3098 = vmatprep.subr.mxu0 0.0
    %3099 = vmatpush1.msra.mxu0 0.0
    %3100 = vmatprep.subr.mxu0 0.0
    %3101 = vmatpush1.msra.mxu0 0.0
    %3102 = vmatprep.subr.mxu0 0.0
    %3103 = vmatpush1.msra.mxu0 0.0
    %3104 = vmatprep.subr.mxu0 0.0
    %3105 = vmatpush1.msra.mxu0 0.0
    %3106 = vmatprep.subr.mxu0 0.0
    %3107 = vmatpush1.msra.mxu0 0.0
    %3108 = vmatprep.subr.mxu0 0.0
    %3109 = vmatpush1.msra.mxu0 0.0
    %3110 = vmatprep.subr.mxu0 0.0
    %3111 = vmatpush1.msra.mxu0 0.0
    %3112 = vmatprep.subr.mxu0 0.0
    %3113 = vmatpush1.msra.mxu0 0.0
    %3114 = vmatprep.subr.mxu0 0.0
    %3115 = vmatpush1.msra.mxu0 0.0
    %3116 = vmatprep.subr.mxu0 0.0
    %3117 = vmatpush1.msra.mxu0 0.0
    %3118 = vmatprep.subr.mxu0 0.0
    %3119 = vmatpush1.msra.mxu0 0.0
    %3120 = vmatprep.mubr.f32.mxu0 0.0
    %3121 = vmatmul.mubr.f32.gmra.mrb[0].mxu0 %v3051
    %v3122 = vpop.f32.mrb[0].mxu0
    %v3123 = vadd.f32 0.0, %v3122
    %v3124 = vpop.f32.mrb[0].mxu0
    %3125 = vmatprep.mubr.f32.mxu0 0.0
    %3126 = vmatmul.mubr.f32.gmra.mrb[0].mxu0 %v3054
    %v3127 = vpop.f32.mrb[0].mxu0
    %v3128 = vadd.f32 0.0, %v3127
    %v3129 = vpop.f32.mrb[0].mxu0
    %3130 = vdwg.mxu0
    %v3131 = vlaneseq
    %v3132 = vshrl.u32 %v3131, 7
    %v3133 = vsub.s32 0, %v3132
    %v3134 = vrot.slane %v3043, %v3133
    %v3135 = vadd.f32 %v3123, %v3134
    %v3136 = vadd.f32 %v3128, %v3134
    %v3137 = vlaneseq
    %v3138 = vshrl.u32 %v3137, 7
    %v3139 = vsub.s32 1, %v3138
    %v3140 = vrot.slane %v3043, %v3139
    %3142 = vrot.lane.b32.xlu0 %v3140, 32
    %v3143 = vpop.permute.xlu0 %3142
    %v3145 = vadd.f32 %v3123, %v3143
    %v3146 = vadd.f32 %v3128, %v3143
    %v3147 = vlaneseq
    %v3148 = vshrl.u32 %v3147, 7
    %v3149 = vsub.s32 2, %v3148
    %v3150 = vrot.slane %v3043, %v3149
    %3152 = vrot.lane.b32.xlu0 %v3150, 64
    %v3153 = vpop.permute.xlu0 %3152
    %v3155 = vadd.f32 %v3123, %v3153
    %v3156 = vadd.f32 %v3128, %v3153
    %3159 = vrot.lane.b32.xlu0 %v3135, 112
    %v3160 = vpop.permute.xlu0 %3159
    %3161 = vrot.lane.b32.xlu0 %v3136, 112
    %v3162 = vpop.permute.xlu0 %3161
    %3165 = vrot.lane.b32.xlu0 %v3145, 112
    %v3166 = vpop.permute.xlu0 %3165
    %3167 = vrot.lane.b32.xlu0 %v3146, 112
    %v3168 = vpop.permute.xlu0 %3167
    %3171 = vrot.lane.b32.xlu0 %v3155, 112
    %v3172 = vpop.permute.xlu0 %3171
    %3173 = vrot.lane.b32.xlu0 %v3156, 112
    %v3174 = vpop.permute.xlu0 %3173
    %3175 = vrot.lane.b32.xlu0 %v3145, 96
    %v3176 = vpop.permute.xlu0 %3175
    %v3177 = vsel %vm176, %v3135, 0
    %v3179 = vsel %vm176, %v3176, 0
    %3181 = vmatprep.subr.mxu0 0.0
    %3182 = vmatpush1.xpose.msra.mxu0 %v3179
    %3183 = vmatprep.subr.mxu0 0.0
    %3184 = vmatpush1.xpose.msra.mxu0 0.0
    %3185 = vmatprep.subr.mxu0 0.0
    %3186 = vmatpush1.xpose.msra.mxu0 0.0
    %3187 = vmatprep.subr.mxu0 0.0
    %3188 = vmatpush1.xpose.msra.mxu0 0.0
    %3189 = vmatprep.subr.mxu0 0.0
    %3190 = vmatpush1.xpose.msra.mxu0 0.0
    %3191 = vmatprep.subr.mxu0 0.0
    %3192 = vmatpush1.xpose.msra.mxu0 0.0
    %3193 = vmatprep.subr.mxu0 0.0
    %3194 = vmatpush1.xpose.msra.mxu0 0.0
    %3195 = vmatprep.subr.mxu0 0.0
    %3196 = vmatpush1.xpose.msra.mxu0 0.0
    %3197 = vmatprep.subr.mxu0 0.0
    %3198 = vmatpush1.xpose.msra.mxu0 0.0
    %3199 = vmatprep.subr.mxu0 0.0
    %3200 = vmatpush1.xpose.msra.mxu0 0.0
    %3201 = vmatprep.subr.mxu0 0.0
    %3202 = vmatpush1.xpose.msra.mxu0 0.0
    %3203 = vmatprep.subr.mxu0 0.0
    %3204 = vmatpush1.xpose.msra.mxu0 0.0
    %3205 = vmatprep.subr.mxu0 0.0
    %3206 = vmatpush1.xpose.msra.mxu0 0.0
    %3207 = vmatprep.subr.mxu0 0.0
    %3208 = vmatpush1.xpose.msra.mxu0 0.0
    %3209 = vmatprep.subr.mxu0 0.0
    %3210 = vmatpush1.xpose.msra.mxu0 0.0
    %3211 = vmatprep.subr.mxu0 0.0
    %3212 = vmatpush1.xpose.msra.mxu0 0.0
    %3213 = vmatprep.subr.mxu0 0.0
    %3214 = vmatpush1.xpose.msra.mxu0 0.0
    %3215 = vmatprep.subr.mxu0 0.0
    %3216 = vmatpush1.xpose.msra.mxu0 0.0
    %3217 = vmatprep.subr.mxu0 0.0
    %3218 = vmatpush1.xpose.msra.mxu0 0.0
    %3219 = vmatprep.subr.mxu0 0.0
    %3220 = vmatpush1.xpose.msra.mxu0 0.0
    %3221 = vmatprep.subr.mxu0 0.0
    %3222 = vmatpush1.xpose.msra.mxu0 0.0
    %3223 = vmatprep.subr.mxu0 0.0
    %3224 = vmatpush1.xpose.msra.mxu0 0.0
    %3225 = vmatprep.subr.mxu0 0.0
    %3226 = vmatpush1.xpose.msra.mxu0 0.0
    %3227 = vmatprep.subr.mxu0 0.0
    %3228 = vmatpush1.xpose.msra.mxu0 0.0
    %3229 = vmatprep.subr.mxu0 0.0
    %3230 = vmatpush1.xpose.msra.mxu0 0.0
    %3231 = vmatprep.subr.mxu0 0.0
    %3232 = vmatpush1.xpose.msra.mxu0 0.0
    %3233 = vmatprep.subr.mxu0 0.0
    %3234 = vmatpush1.xpose.msra.mxu0 0.0
    %3235 = vmatprep.subr.mxu0 0.0
    %3236 = vmatpush1.xpose.msra.mxu0 0.0
    %3237 = vmatprep.subr.mxu0 0.0
    %3238 = vmatpush1.xpose.msra.mxu0 0.0
    %3239 = vmatprep.subr.mxu0 0.0
    %3240 = vmatpush1.xpose.msra.mxu0 0.0
    %3241 = vmatprep.subr.mxu0 0.0
    %3242 = vmatpush1.xpose.msra.mxu0 0.0
    %3243 = vmatprep.subr.mxu0 0.0
    %3244 = vmatpush1.xpose.msra.mxu0 0.0
    %3245 = vmatprep.mubr.f32.mxu0 0.0
    %3246 = vmatmul.mubr.f32.gmra.mrb[0].mxu0 %v3177
    %v3247 = vpop.f32.mrb[0].mxu0
    %v3248 = vadd.f32 0.0, %v3247
    %v3249 = vpop.f32.mrb[0].mxu0
    %3250 = vdwg.mxu0
    %3251 = vrot.lane.b32.xlu0 %v3146, 96
    %v3252 = vpop.permute.xlu0 %3251
    %v3253 = vsel %vm176, %v3136, 0
    %v3255 = vsel %vm176, %v3252, 0
    %3257 = vmatprep.subr.mxu0 0.0
    %3258 = vmatpush1.xpose.msra.mxu0 %v3255
    %3259 = vmatprep.subr.mxu0 0.0
    %3260 = vmatpush1.xpose.msra.mxu0 0.0
    %3261 = vmatprep.subr.mxu0 0.0
    %3262 = vmatpush1.xpose.msra.mxu0 0.0
    %3263 = vmatprep.subr.mxu0 0.0
    %3264 = vmatpush1.xpose.msra.mxu0 0.0
    %3265 = vmatprep.subr.mxu0 0.0
    %3266 = vmatpush1.xpose.msra.mxu0 0.0
    %3267 = vmatprep.subr.mxu0 0.0
    %3268 = vmatpush1.xpose.msra.mxu0 0.0
    %3269 = vmatprep.subr.mxu0 0.0
    %3270 = vmatpush1.xpose.msra.mxu0 0.0
    %3271 = vmatprep.subr.mxu0 0.0
    %3272 = vmatpush1.xpose.msra.mxu0 0.0
    %3273 = vmatprep.subr.mxu0 0.0
    %3274 = vmatpush1.xpose.msra.mxu0 0.0
    %3275 = vmatprep.subr.mxu0 0.0
    %3276 = vmatpush1.xpose.msra.mxu0 0.0
    %3277 = vmatprep.subr.mxu0 0.0
    %3278 = vmatpush1.xpose.msra.mxu0 0.0
    %3279 = vmatprep.subr.mxu0 0.0
    %3280 = vmatpush1.xpose.msra.mxu0 0.0
    %3281 = vmatprep.subr.mxu0 0.0
    %3282 = vmatpush1.xpose.msra.mxu0 0.0
    %3283 = vmatprep.subr.mxu0 0.0
    %3284 = vmatpush1.xpose.msra.mxu0 0.0
    %3285 = vmatprep.subr.mxu0 0.0
    %3286 = vmatpush1.xpose.msra.mxu0 0.0
    %3287 = vmatprep.subr.mxu0 0.0
    %3288 = vmatpush1.xpose.msra.mxu0 0.0
    %3289 = vmatprep.subr.mxu0 0.0
    %3290 = vmatpush1.xpose.msra.mxu0 0.0
    %3291 = vmatprep.subr.mxu0 0.0
    %3292 = vmatpush1.xpose.msra.mxu0 0.0
    %3293 = vmatprep.subr.mxu0 0.0
    %3294 = vmatpush1.xpose.msra.mxu0 0.0
    %3295 = vmatprep.subr.mxu0 0.0
    %3296 = vmatpush1.xpose.msra.mxu0 0.0
    %3297 = vmatprep.subr.mxu0 0.0
    %3298 = vmatpush1.xpose.msra.mxu0 0.0
    %3299 = vmatprep.subr.mxu0 0.0
    %3300 = vmatpush1.xpose.msra.mxu0 0.0
    %3301 = vmatprep.subr.mxu0 0.0
    %3302 = vmatpush1.xpose.msra.mxu0 0.0
    %3303 = vmatprep.subr.mxu0 0.0
    %3304 = vmatpush1.xpose.msra.mxu0 0.0
    %3305 = vmatprep.subr.mxu0 0.0
    %3306 = vmatpush1.xpose.msra.mxu0 0.0
    %3307 = vmatprep.subr.mxu0 0.0
    %3308 = vmatpush1.xpose.msra.mxu0 0.0
    %3309 = vmatprep.subr.mxu0 0.0
    %3310 = vmatpush1.xpose.msra.mxu0 0.0
    %3311 = vmatprep.subr.mxu0 0.0
    %3312 = vmatpush1.xpose.msra.mxu0 0.0
    %3313 = vmatprep.subr.mxu0 0.0
    %3314 = vmatpush1.xpose.msra.mxu0 0.0
    %3315 = vmatprep.subr.mxu0 0.0
    %3316 = vmatpush1.xpose.msra.mxu0 0.0
    %3317 = vmatprep.subr.mxu0 0.0
    %3318 = vmatpush1.xpose.msra.mxu0 0.0
    %3319 = vmatprep.subr.mxu0 0.0
    %3320 = vmatpush1.xpose.msra.mxu0 0.0
    %3321 = vmatprep.mubr.f32.mxu0 0.0
    %3322 = vmatmul.mubr.f32.gmra.mrb[0].mxu0 %v3253
    %v3323 = vpop.f32.mrb[0].mxu0
    %v3324 = vadd.f32 0.0, %v3323
    %v3325 = vpop.f32.mrb[0].mxu0
    %3326 = vdwg.mxu0
    %3327 = vrot.lane.b32.xlu0 %v3166, 96
    %v3328 = vpop.permute.xlu0 %3327
    %v3329 = vsel %vm176, %v3160, 0
    %v3331 = vsel %vm176, %v3328, 0
    %3333 = vmatprep.subr.mxu0 0.0
    %3334 = vmatpush1.xpose.msra.mxu0 %v3331
    %3335 = vmatprep.subr.mxu0 0.0
    %3336 = vmatpush1.xpose.msra.mxu0 0.0
    %3337 = vmatprep.subr.mxu0 0.0
    %3338 = vmatpush1.xpose.msra.mxu0 0.0
    %3339 = vmatprep.subr.mxu0 0.0
    %3340 = vmatpush1.xpose.msra.mxu0 0.0
    %3341 = vmatprep.subr.mxu0 0.0
    %3342 = vmatpush1.xpose.msra.mxu0 0.0
    %3343 = vmatprep.subr.mxu0 0.0
    %3344 = vmatpush1.xpose.msra.mxu0 0.0
    %3345 = vmatprep.subr.mxu0 0.0
    %3346 = vmatpush1.xpose.msra.mxu0 0.0
    %3347 = vmatprep.subr.mxu0 0.0
    %3348 = vmatpush1.xpose.msra.mxu0 0.0
    %3349 = vmatprep.subr.mxu0 0.0
    %3350 = vmatpush1.xpose.msra.mxu0 0.0
    %3351 = vmatprep.subr.mxu0 0.0
    %3352 = vmatpush1.xpose.msra.mxu0 0.0
    %3353 = vmatprep.subr.mxu0 0.0
    %3354 = vmatpush1.xpose.msra.mxu0 0.0
    %3355 = vmatprep.subr.mxu0 0.0
    %3356 = vmatpush1.xpose.msra.mxu0 0.0
    %3357 = vmatprep.subr.mxu0 0.0
    %3358 = vmatpush1.xpose.msra.mxu0 0.0
    %3359 = vmatprep.subr.mxu0 0.0
    %3360 = vmatpush1.xpose.msra.mxu0 0.0
    %3361 = vmatprep.subr.mxu0 0.0
    %3362 = vmatpush1.xpose.msra.mxu0 0.0
    %3363 = vmatprep.subr.mxu0 0.0
    %3364 = vmatpush1.xpose.msra.mxu0 0.0
    %3365 = vmatprep.subr.mxu0 0.0
    %3366 = vmatpush1.xpose.msra.mxu0 0.0
    %3367 = vmatprep.subr.mxu0 0.0
    %3368 = vmatpush1.xpose.msra.mxu0 0.0
    %3369 = vmatprep.subr.mxu0 0.0
    %3370 = vmatpush1.xpose.msra.mxu0 0.0
    %3371 = vmatprep.subr.mxu0 0.0
    %3372 = vmatpush1.xpose.msra.mxu0 0.0
    %3373 = vmatprep.subr.mxu0 0.0
    %3374 = vmatpush1.xpose.msra.mxu0 0.0
    %3375 = vmatprep.subr.mxu0 0.0
    %3376 = vmatpush1.xpose.msra.mxu0 0.0
    %3377 = vmatprep.subr.mxu0 0.0
    %3378 = vmatpush1.xpose.msra.mxu0 0.0
    %3379 = vmatprep.subr.mxu0 0.0
    %3380 = vmatpush1.xpose.msra.mxu0 0.0
    %3381 = vmatprep.subr.mxu0 0.0
    %3382 = vmatpush1.xpose.msra.mxu0 0.0
    %3383 = vmatprep.subr.mxu0 0.0
    %3384 = vmatpush1.xpose.msra.mxu0 0.0
    %3385 = vmatprep.subr.mxu0 0.0
    %3386 = vmatpush1.xpose.msra.mxu0 0.0
    %3387 = vmatprep.subr.mxu0 0.0
    %3388 = vmatpush1.xpose.msra.mxu0 0.0
    %3389 = vmatprep.subr.mxu0 0.0
    %3390 = vmatpush1.xpose.msra.mxu0 0.0
    %3391 = vmatprep.subr.mxu0 0.0
    %3392 = vmatpush1.xpose.msra.mxu0 0.0
    %3393 = vmatprep.subr.mxu0 0.0
    %3394 = vmatpush1.xpose.msra.mxu0 0.0
    %3395 = vmatprep.subr.mxu0 0.0
    %3396 = vmatpush1.xpose.msra.mxu0 0.0
    %3397 = vmatprep.mubr.f32.mxu0 0.0
    %3398 = vmatmul.mubr.f32.gmra.mrb[0].mxu0 %v3329
    %v3399 = vpop.f32.mrb[0].mxu0
    %v3400 = vadd.f32 0.0, %v3399
    %v3401 = vpop.f32.mrb[0].mxu0
    %3402 = vdwg.mxu0
    %3403 = vrot.lane.b32.xlu0 %v3168, 96
    %v3404 = vpop.permute.xlu0 %3403
    %v3405 = vsel %vm176, %v3162, 0
    %v3407 = vsel %vm176, %v3404, 0
    %3409 = vmatprep.subr.mxu0 0.0
    %3410 = vmatpush1.xpose.msra.mxu0 %v3407
    %3411 = vmatprep.subr.mxu0 0.0
    %3412 = vmatpush1.xpose.msra.mxu0 0.0
    %3413 = vmatprep.subr.mxu0 0.0
    %3414 = vmatpush1.xpose.msra.mxu0 0.0
    %3415 = vmatprep.subr.mxu0 0.0
    %3416 = vmatpush1.xpose.msra.mxu0 0.0
    %3417 = vmatprep.subr.mxu0 0.0
    %3418 = vmatpush1.xpose.msra.mxu0 0.0
    %3419 = vmatprep.subr.mxu0 0.0
    %3420 = vmatpush1.xpose.msra.mxu0 0.0
    %3421 = vmatprep.subr.mxu0 0.0
    %3422 = vmatpush1.xpose.msra.mxu0 0.0
    %3423 = vmatprep.subr.mxu0 0.0
    %3424 = vmatpush1.xpose.msra.mxu0 0.0
    %3425 = vmatprep.subr.mxu0 0.0
    %3426 = vmatpush1.xpose.msra.mxu0 0.0
    %3427 = vmatprep.subr.mxu0 0.0
    %3428 = vmatpush1.xpose.msra.mxu0 0.0
    %3429 = vmatprep.subr.mxu0 0.0
    %3430 = vmatpush1.xpose.msra.mxu0 0.0
    %3431 = vmatprep.subr.mxu0 0.0
    %3432 = vmatpush1.xpose.msra.mxu0 0.0
    %3433 = vmatprep.subr.mxu0 0.0
    %3434 = vmatpush1.xpose.msra.mxu0 0.0
    %3435 = vmatprep.subr.mxu0 0.0
    %3436 = vmatpush1.xpose.msra.mxu0 0.0
    %3437 = vmatprep.subr.mxu0 0.0
    %3438 = vmatpush1.xpose.msra.mxu0 0.0
    %3439 = vmatprep.subr.mxu0 0.0
    %3440 = vmatpush1.xpose.msra.mxu0 0.0
    %3441 = vmatprep.subr.mxu0 0.0
    %3442 = vmatpush1.xpose.msra.mxu0 0.0
    %3443 = vmatprep.subr.mxu0 0.0
    %3444 = vmatpush1.xpose.msra.mxu0 0.0
    %3445 = vmatprep.subr.mxu0 0.0
    %3446 = vmatpush1.xpose.msra.mxu0 0.0
    %3447 = vmatprep.subr.mxu0 0.0
    %3448 = vmatpush1.xpose.msra.mxu0 0.0
    %3449 = vmatprep.subr.mxu0 0.0
    %3450 = vmatpush1.xpose.msra.mxu0 0.0
    %3451 = vmatprep.subr.mxu0 0.0
    %3452 = vmatpush1.xpose.msra.mxu0 0.0
    %3453 = vmatprep.subr.mxu0 0.0
    %3454 = vmatpush1.xpose.msra.mxu0 0.0
    %3455 = vmatprep.subr.mxu0 0.0
    %3456 = vmatpush1.xpose.msra.mxu0 0.0
    %3457 = vmatprep.subr.mxu0 0.0
    %3458 = vmatpush1.xpose.msra.mxu0 0.0
    %3459 = vmatprep.subr.mxu0 0.0
    %3460 = vmatpush1.xpose.msra.mxu0 0.0
    %3461 = vmatprep.subr.mxu0 0.0
    %3462 = vmatpush1.xpose.msra.mxu0 0.0
    %3463 = vmatprep.subr.mxu0 0.0
    %3464 = vmatpush1.xpose.msra.mxu0 0.0
    %3465 = vmatprep.subr.mxu0 0.0
    %3466 = vmatpush1.xpose.msra.mxu0 0.0
    %3467 = vmatprep.subr.mxu0 0.0
    %3468 = vmatpush1.xpose.msra.mxu0 0.0
    %3469 = vmatprep.subr.mxu0 0.0
    %3470 = vmatpush1.xpose.msra.mxu0 0.0
    %3471 = vmatprep.subr.mxu0 0.0
    %3472 = vmatpush1.xpose.msra.mxu0 0.0
    %3473 = vmatprep.mubr.f32.mxu0 0.0
    %3474 = vmatmul.mubr.f32.gmra.mrb[0].mxu0 %v3405
    %v3475 = vpop.f32.mrb[0].mxu0
    %v3476 = vadd.f32 0.0, %v3475
    %v3477 = vpop.f32.mrb[0].mxu0
    %3478 = vdwg.mxu0
    %v3479 = vmul.f32 %v3248, 0.25
    %v3480 = vmul.f32 %v3324, 0.25
    %v3481 = vmul.f32 %v3400, 0.25
    %v3482 = vmul.f32 %v3476, 0.25
    %v3483 = vsel %vm483, %v3479, -inf
    %3484 = vmax.xlane.f32.xlu0 %v3483
    %v3485 = vpop.xlane.xlu0 %3484
    %v3486 = vsel %vm483, %v3480, -inf
    %3487 = vmax.xlane.f32.xlu0 %v3486
    %v3488 = vpop.xlane.xlu0 %3487
    %v3489 = vsel %vm483, %v3481, -inf
    %3490 = vmax.xlane.f32.xlu0 %v3489
    %v3491 = vpop.xlane.xlu0 %3490
    %v3492 = vsel %vm483, %v3482, -inf
    %3493 = vmax.xlane.f32.xlu0 %v3492
    %v3494 = vpop.xlane.xlu0 %3493
    %v3495 = vsub.f32 %v3479, %v3485
    %v3496 = vsub.f32 %v3480, %v3488
    %v3497 = vsub.f32 %v3481, %v3491
    %v3498 = vsub.f32 %v3482, %v3494
    %v3499 = vmul.f32 %v3495, 1.442695
    %v3500 = vpow.pop %v3499
    %v3501 = vmul.f32 %v3496, 1.442695
    %v3502 = vpow.pop %v3501
    %v3503 = vmul.f32 %v3497, 1.442695
    %v3504 = vpow.pop %v3503
    %v3505 = vmul.f32 %v3498, 1.442695
    %v3506 = vpow.pop %v3505
    %v3507 = vsel %vm483, %v3500, 0.0
    %3508 = vadd.xlane.f32.xlu0 %v3507
    %v3509 = vpop.xlane.xlu0 %3508
    %v3510 = vsel %vm483, %v3502, 0.0
    %3511 = vadd.xlane.f32.xlu0 %v3510
    %v3512 = vpop.xlane.xlu0 %3511
    %v3513 = vsel %vm483, %v3504, 0.0
    %3514 = vadd.xlane.f32.xlu0 %v3513
    %v3515 = vpop.xlane.xlu0 %3514
    %v3516 = vsel %vm483, %v3506, 0.0
    %3517 = vadd.xlane.f32.xlu0 %v3516
    %v3518 = vpop.xlane.xlu0 %3517
    %v3519 = vrcp.pop %v3509
    %v3520 = vrcp.pop %v3512
    %v3521 = vrcp.pop %v3515
    %v3522 = vrcp.pop %v3518
    %v3523 = vmul.f32 %v3500, %v3519
    %v3524 = vmul.f32 %v3502, %v3520
    %v3525 = vmul.f32 %v3504, %v3521
    %v3526 = vmul.f32 %v3506, %v3522
    %3527 = vrot.lane.b32.xlu0 %v3155, 64
    %v3528 = vpop.permute.xlu0 %3527
    %v3531 = vsel %vm483, %v3523, 0
    %3533 = vmatprep.subr.mxu0 0.0
    %3534 = vmatpush1.msra.mxu0 %v3528
    %3535 = vmatprep.subr.mxu0 0.0
    %3536 = vmatpush1.msra.mxu0 0.0
    %3537 = vmatprep.subr.mxu0 0.0
    %3538 = vmatpush1.msra.mxu0 0.0
    %3539 = vmatprep.subr.mxu0 0.0
    %3540 = vmatpush1.msra.mxu0 0.0
    %3541 = vmatprep.subr.mxu0 0.0
    %3542 = vmatpush1.msra.mxu0 0.0
    %3543 = vmatprep.subr.mxu0 0.0
    %3544 = vmatpush1.msra.mxu0 0.0
    %3545 = vmatprep.subr.mxu0 0.0
    %3546 = vmatpush1.msra.mxu0 0.0
    %3547 = vmatprep.subr.mxu0 0.0
    %3548 = vmatpush1.msra.mxu0 0.0
    %3549 = vmatprep.subr.mxu0 0.0
    %3550 = vmatpush1.msra.mxu0 0.0
    %3551 = vmatprep.subr.mxu0 0.0
    %3552 = vmatpush1.msra.mxu0 0.0
    %3553 = vmatprep.subr.mxu0 0.0
    %3554 = vmatpush1.msra.mxu0 0.0
    %3555 = vmatprep.subr.mxu0 0.0
    %3556 = vmatpush1.msra.mxu0 0.0
    %3557 = vmatprep.subr.mxu0 0.0
    %3558 = vmatpush1.msra.mxu0 0.0
    %3559 = vmatprep.subr.mxu0 0.0
    %3560 = vmatpush1.msra.mxu0 0.0
    %3561 = vmatprep.subr.mxu0 0.0
    %3562 = vmatpush1.msra.mxu0 0.0
    %3563 = vmatprep.subr.mxu0 0.0
    %3564 = vmatpush1.msra.mxu0 0.0
    %3565 = vmatprep.subr.mxu0 0.0
    %3566 = vmatpush1.msra.mxu0 0.0
    %3567 = vmatprep.subr.mxu0 0.0
    %3568 = vmatpush1.msra.mxu0 0.0
    %3569 = vmatprep.subr.mxu0 0.0
    %3570 = vmatpush1.msra.mxu0 0.0
    %3571 = vmatprep.subr.mxu0 0.0
    %3572 = vmatpush1.msra.mxu0 0.0
    %3573 = vmatprep.subr.mxu0 0.0
    %3574 = vmatpush1.msra.mxu0 0.0
    %3575 = vmatprep.subr.mxu0 0.0
    %3576 = vmatpush1.msra.mxu0 0.0
    %3577 = vmatprep.subr.mxu0 0.0
    %3578 = vmatpush1.msra.mxu0 0.0
    %3579 = vmatprep.subr.mxu0 0.0
    %3580 = vmatpush1.msra.mxu0 0.0
    %3581 = vmatprep.subr.mxu0 0.0
    %3582 = vmatpush1.msra.mxu0 0.0
    %3583 = vmatprep.subr.mxu0 0.0
    %3584 = vmatpush1.msra.mxu0 0.0
    %3585 = vmatprep.subr.mxu0 0.0
    %3586 = vmatpush1.msra.mxu0 0.0
    %3587 = vmatprep.subr.mxu0 0.0
    %3588 = vmatpush1.msra.mxu0 0.0
    %3589 = vmatprep.subr.mxu0 0.0
    %3590 = vmatpush1.msra.mxu0 0.0
    %3591 = vmatprep.subr.mxu0 0.0
    %3592 = vmatpush1.msra.mxu0 0.0
    %3593 = vmatprep.subr.mxu0 0.0
    %3594 = vmatpush1.msra.mxu0 0.0
    %3595 = vmatprep.subr.mxu0 0.0
    %3596 = vmatpush1.msra.mxu0 0.0
    %3597 = vmatprep.mubr.f32.mxu0 0.0
    %3598 = vmatmul.mubr.f32.gmra.mrb[0].mxu0 %v3531
    %v3599 = vpop.f32.mrb[0].mxu0
    %v3600 = vadd.f32 0.0, %v3599
    %v3601 = vpop.f32.mrb[0].mxu0
    %3602 = vdwg.mxu0
    %3603 = vrot.lane.b32.xlu0 %v3156, 64
    %v3604 = vpop.permute.xlu0 %3603
    %v3607 = vsel %vm483, %v3524, 0
    %3609 = vmatprep.subr.mxu0 0.0
    %3610 = vmatpush1.msra.mxu0 %v3604
    %3611 = vmatprep.subr.mxu0 0.0
    %3612 = vmatpush1.msra.mxu0 0.0
    %3613 = vmatprep.subr.mxu0 0.0
    %3614 = vmatpush1.msra.mxu0 0.0
    %3615 = vmatprep.subr.mxu0 0.0
    %3616 = vmatpush1.msra.mxu0 0.0
    %3617 = vmatprep.subr.mxu0 0.0
    %3618 = vmatpush1.msra.mxu0 0.0
    %3619 = vmatprep.subr.mxu0 0.0
    %3620 = vmatpush1.msra.mxu0 0.0
    %3621 = vmatprep.subr.mxu0 0.0
    %3622 = vmatpush1.msra.mxu0 0.0
    %3623 = vmatprep.subr.mxu0 0.0
    %3624 = vmatpush1.msra.mxu0 0.0
    %3625 = vmatprep.subr.mxu0 0.0
    %3626 = vmatpush1.msra.mxu0 0.0
    %3627 = vmatprep.subr.mxu0 0.0
    %3628 = vmatpush1.msra.mxu0 0.0
    %3629 = vmatprep.subr.mxu0 0.0
    %3630 = vmatpush1.msra.mxu0 0.0
    %3631 = vmatprep.subr.mxu0 0.0
    %3632 = vmatpush1.msra.mxu0 0.0
    %3633 = vmatprep.subr.mxu0 0.0
    %3634 = vmatpush1.msra.mxu0 0.0
    %3635 = vmatprep.subr.mxu0 0.0
    %3636 = vmatpush1.msra.mxu0 0.0
    %3637 = vmatprep.subr.mxu0 0.0
    %3638 = vmatpush1.msra.mxu0 0.0
    %3639 = vmatprep.subr.mxu0 0.0
    %3640 = vmatpush1.msra.mxu0 0.0
    %3641 = vmatprep.subr.mxu0 0.0
    %3642 = vmatpush1.msra.mxu0 0.0
    %3643 = vmatprep.subr.mxu0 0.0
    %3644 = vmatpush1.msra.mxu0 0.0
    %3645 = vmatprep.subr.mxu0 0.0
    %3646 = vmatpush1.msra.mxu0 0.0
    %3647 = vmatprep.subr.mxu0 0.0
    %3648 = vmatpush1.msra.mxu0 0.0
    %3649 = vmatprep.subr.mxu0 0.0
    %3650 = vmatpush1.msra.mxu0 0.0
    %3651 = vmatprep.subr.mxu0 0.0
    %3652 = vmatpush1.msra.mxu0 0.0
    %3653 = vmatprep.subr.mxu0 0.0
    %3654 = vmatpush1.msra.mxu0 0.0
    %3655 = vmatprep.subr.mxu0 0.0
    %3656 = vmatpush1.msra.mxu0 0.0
    %3657 = vmatprep.subr.mxu0 0.0
    %3658 = vmatpush1.msra.mxu0 0.0
    %3659 = vmatprep.subr.mxu0 0.0
    %3660 = vmatpush1.msra.mxu0 0.0
    %3661 = vmatprep.subr.mxu0 0.0
    %3662 = vmatpush1.msra.mxu0 0.0
    %3663 = vmatprep.subr.mxu0 0.0
    %3664 = vmatpush1.msra.mxu0 0.0
    %3665 = vmatprep.subr.mxu0 0.0
    %3666 = vmatpush1.msra.mxu0 0.0
    %3667 = vmatprep.subr.mxu0 0.0
    %3668 = vmatpush1.msra.mxu0 0.0
    %3669 = vmatprep.subr.mxu0 0.0
    %3670 = vmatpush1.msra.mxu0 0.0
    %3671 = vmatprep.subr.mxu0 0.0
    %3672 = vmatpush1.msra.mxu0 0.0
    %3673 = vmatprep.mubr.f32.mxu0 0.0
    %3674 = vmatmul.mubr.f32.gmra.mrb[0].mxu0 %v3607
    %v3675 = vpop.f32.mrb[0].mxu0
    %v3676 = vadd.f32 0.0, %v3675
    %v3677 = vpop.f32.mrb[0].mxu0
    %3678 = vdwg.mxu0
    %3679 = vrot.lane.b32.xlu0 %v3172, 64
    %v3680 = vpop.permute.xlu0 %3679
    %v3683 = vsel %vm483, %v3525, 0
    %3685 = vmatprep.subr.mxu0 0.0
    %3686 = vmatpush1.msra.mxu0 %v3680
    %3687 = vmatprep.subr.mxu0 0.0
    %3688 = vmatpush1.msra.mxu0 0.0
    %3689 = vmatprep.subr.mxu0 0.0
    %3690 = vmatpush1.msra.mxu0 0.0
    %3691 = vmatprep.subr.mxu0 0.0
    %3692 = vmatpush1.msra.mxu0 0.0
    %3693 = vmatprep.subr.mxu0 0.0
    %3694 = vmatpush1.msra.mxu0 0.0
    %3695 = vmatprep.subr.mxu0 0.0
    %3696 = vmatpush1.msra.mxu0 0.0
    %3697 = vmatprep.subr.mxu0 0.0
    %3698 = vmatpush1.msra.mxu0 0.0
    %3699 = vmatprep.subr.mxu0 0.0
    %3700 = vmatpush1.msra.mxu0 0.0
    %3701 = vmatprep.subr.mxu0 0.0
    %3702 = vmatpush1.msra.mxu0 0.0
    %3703 = vmatprep.subr.mxu0 0.0
    %3704 = vmatpush1.msra.mxu0 0.0
    %3705 = vmatprep.subr.mxu0 0.0
    %3706 = vmatpush1.msra.mxu0 0.0
    %3707 = vmatprep.subr.mxu0 0.0
    %3708 = vmatpush1.msra.mxu0 0.0
    %3709 = vmatprep.subr.mxu0 0.0
    %3710 = vmatpush1.msra.mxu0 0.0
    %3711 = vmatprep.subr.mxu0 0.0
    %3712 = vmatpush1.msra.mxu0 0.0
    %3713 = vmatprep.subr.mxu0 0.0
    %3714 = vmatpush1.msra.mxu0 0.0
    %3715 = vmatprep.subr.mxu0 0.0
    %3716 = vmatpush1.msra.mxu0 0.0
    %3717 = vmatprep.subr.mxu0 0.0
    %3718 = vmatpush1.msra.mxu0 0.0
    %3719 = vmatprep.subr.mxu0 0.0
    %3720 = vmatpush1.msra.mxu0 0.0
    %3721 = vmatprep.subr.mxu0 0.0
    %3722 = vmatpush1.msra.mxu0 0.0
    %3723 = vmatprep.subr.mxu0 0.0
    %3724 = vmatpush1.msra.mxu0 0.0
    %3725 = vmatprep.subr.mxu0 0.0
    %3726 = vmatpush1.msra.mxu0 0.0
    %3727 = vmatprep.subr.mxu0 0.0
    %3728 = vmatpush1.msra.mxu0 0.0
    %3729 = vmatprep.subr.mxu0 0.0
    %3730 = vmatpush1.msra.mxu0 0.0
    %3731 = vmatprep.subr.mxu0 0.0
    %3732 = vmatpush1.msra.mxu0 0.0
    %3733 = vmatprep.subr.mxu0 0.0
    %3734 = vmatpush1.msra.mxu0 0.0
    %3735 = vmatprep.subr.mxu0 0.0
    %3736 = vmatpush1.msra.mxu0 0.0
    %3737 = vmatprep.subr.mxu0 0.0
    %3738 = vmatpush1.msra.mxu0 0.0
    %3739 = vmatprep.subr.mxu0 0.0
    %3740 = vmatpush1.msra.mxu0 0.0
    %3741 = vmatprep.subr.mxu0 0.0
    %3742 = vmatpush1.msra.mxu0 0.0
    %3743 = vmatprep.subr.mxu0 0.0
    %3744 = vmatpush1.msra.mxu0 0.0
    %3745 = vmatprep.subr.mxu0 0.0
    %3746 = vmatpush1.msra.mxu0 0.0
    %3747 = vmatprep.subr.mxu0 0.0
    %3748 = vmatpush1.msra.mxu0 0.0
    %3749 = vmatprep.mubr.f32.mxu0 0.0
    %3750 = vmatmul.mubr.f32.gmra.mrb[0].mxu0 %v3683
    %v3751 = vpop.f32.mrb[0].mxu0
    %v3752 = vadd.f32 0.0, %v3751
    %v3753 = vpop.f32.mrb[0].mxu0
    %3754 = vdwg.mxu0
    %3755 = vrot.lane.b32.xlu0 %v3174, 64
    %v3756 = vpop.permute.xlu0 %3755
    %v3759 = vsel %vm483, %v3526, 0
    %3761 = vmatprep.subr.mxu0 0.0
    %3762 = vmatpush1.msra.mxu0 %v3756
    %3763 = vmatprep.subr.mxu0 0.0
    %3764 = vmatpush1.msra.mxu0 0.0
    %3765 = vmatprep.subr.mxu0 0.0
    %3766 = vmatpush1.msra.mxu0 0.0
    %3767 = vmatprep.subr.mxu0 0.0
    %3768 = vmatpush1.msra.mxu0 0.0
    %3769 = vmatprep.subr.mxu0 0.0
    %3770 = vmatpush1.msra.mxu0 0.0
    %3771 = vmatprep.subr.mxu0 0.0
    %3772 = vmatpush1.msra.mxu0 0.0
    %3773 = vmatprep.subr.mxu0 0.0
    %3774 = vmatpush1.msra.mxu0 0.0
    %3775 = vmatprep.subr.mxu0 0.0
    %3776 = vmatpush1.msra.mxu0 0.0
    %3777 = vmatprep.subr.mxu0 0.0
    %3778 = vmatpush1.msra.mxu0 0.0
    %3779 = vmatprep.subr.mxu0 0.0
    %3780 = vmatpush1.msra.mxu0 0.0
    %3781 = vmatprep.subr.mxu0 0.0
    %3782 = vmatpush1.msra.mxu0 0.0
    %3783 = vmatprep.subr.mxu0 0.0
    %3784 = vmatpush1.msra.mxu0 0.0
    %3785 = vmatprep.subr.mxu0 0.0
    %3786 = vmatpush1.msra.mxu0 0.0
    %3787 = vmatprep.subr.mxu0 0.0
    %3788 = vmatpush1.msra.mxu0 0.0
    %3789 = vmatprep.subr.mxu0 0.0
    %3790 = vmatpush1.msra.mxu0 0.0
    %3791 = vmatprep.subr.mxu0 0.0
    %3792 = vmatpush1.msra.mxu0 0.0
    %3793 = vmatprep.subr.mxu0 0.0
    %3794 = vmatpush1.msra.mxu0 0.0
    %3795 = vmatprep.subr.mxu0 0.0
    %3796 = vmatpush1.msra.mxu0 0.0
    %3797 = vmatprep.subr.mxu0 0.0
    %3798 = vmatpush1.msra.mxu0 0.0
    %3799 = vmatprep.subr.mxu0 0.0
    %3800 = vmatpush1.msra.mxu0 0.0
    %3801 = vmatprep.subr.mxu0 0.0
    %3802 = vmatpush1.msra.mxu0 0.0
    %3803 = vmatprep.subr.mxu0 0.0
    %3804 = vmatpush1.msra.mxu0 0.0
    %3805 = vmatprep.subr.mxu0 0.0
    %3806 = vmatpush1.msra.mxu0 0.0
    %3807 = vmatprep.subr.mxu0 0.0
    %3808 = vmatpush1.msra.mxu0 0.0
    %3809 = vmatprep.subr.mxu0 0.0
    %3810 = vmatpush1.msra.mxu0 0.0
    %3811 = vmatprep.subr.mxu0 0.0
    %3812 = vmatpush1.msra.mxu0 0.0
    %3813 = vmatprep.subr.mxu0 0.0
    %3814 = vmatpush1.msra.mxu0 0.0
    %3815 = vmatprep.subr.mxu0 0.0
    %3816 = vmatpush1.msra.mxu0 0.0
    %3817 = vmatprep.subr.mxu0 0.0
    %3818 = vmatpush1.msra.mxu0 0.0
    %3819 = vmatprep.subr.mxu0 0.0
    %3820 = vmatpush1.msra.mxu0 0.0
    %3821 = vmatprep.subr.mxu0 0.0
    %3822 = vmatpush1.msra.mxu0 0.0
    %3823 = vmatprep.subr.mxu0 0.0
    %3824 = vmatpush1.msra.mxu0 0.0
    %3825 = vmatprep.mubr.f32.mxu0 0.0
    %3826 = vmatmul.mubr.f32.gmra.mrb[0].mxu0 %v3759
    %v3827 = vpop.f32.mrb[0].mxu0
    %v3828 = vadd.f32 0.0, %v3827
    %v3829 = vpop.f32.mrb[0].mxu0
    %3830 = vdwg.mxu0
    %3833 = vrot.lane.b32.xlu0 %v3752, 16
    %v3834 = vpop.permute.xlu0 %3833
    %3835 = vrot.lane.b32.xlu0 %v3828, 16
    %v3836 = vpop.permute.xlu0 %3835
    %v3839 = vsel %vm176, %v3600, %v3834
    %v3840 = vsel %vm176, %v3676, %v3836
    %s3841 = scalar_lea.vmem %s3, 32
    %v3842 = vld [vmem:[%s3841] sm:$0xff]
    %v3843 = vld [vmem:[%s3841 + $0x8] sm:$0xff]
    %v3844 = vld [vmem:[%s3841 + $0x10] sm:$0xff]
    %v3845 = vld [vmem:[%s3841 + $0x18] sm:$0xff]
    %v3846 = vlaneseq
    %v3847 = vshrl.u32 %v3846, 7
    %v3848 = vsub.s32 3, %v3847
    %v3849 = vrot.slane %v3043, %v3848
    %v3851 = vsel %vm48, %v3839, 0
    %v3854 = vsel %vm48, %v3840, 0
    %3856 = vmatprep.subr.mxu0 0.0
    %3857 = vmatpush1.msra.mxu0 %v3842
    %3858 = vmatprep.subr.mxu0 0.0
    %3859 = vmatpush1.msra.mxu0 %v3843
    %3860 = vmatprep.subr.mxu0 0.0
    %3861 = vmatpush1.msra.mxu0 %v3844
    %3862 = vmatprep.subr.mxu0 0.0
    %3863 = vmatpush1.msra.mxu0 %v3845
    %3864 = vmatprep.subr.mxu0 0.0
    %3865 = vmatpush1.msra.mxu0 0.0
    %3866 = vmatprep.subr.mxu0 0.0
    %3867 = vmatpush1.msra.mxu0 0.0
    %3868 = vmatprep.subr.mxu0 0.0
    %3869 = vmatpush1.msra.mxu0 0.0
    %3870 = vmatprep.subr.mxu0 0.0
    %3871 = vmatpush1.msra.mxu0 0.0
    %3872 = vmatprep.subr.mxu0 0.0
    %3873 = vmatpush1.msra.mxu0 0.0
    %3874 = vmatprep.subr.mxu0 0.0
    %3875 = vmatpush1.msra.mxu0 0.0
    %3876 = vmatprep.subr.mxu0 0.0
    %3877 = vmatpush1.msra.mxu0 0.0
    %3878 = vmatprep.subr.mxu0 0.0
    %3879 = vmatpush1.msra.mxu0 0.0
    %3880 = vmatprep.subr.mxu0 0.0
    %3881 = vmatpush1.msra.mxu0 0.0
    %3882 = vmatprep.subr.mxu0 0.0
    %3883 = vmatpush1.msra.mxu0 0.0
    %3884 = vmatprep.subr.mxu0 0.0
    %3885 = vmatpush1.msra.mxu0 0.0
    %3886 = vmatprep.subr.mxu0 0.0
    %3887 = vmatpush1.msra.mxu0 0.0
    %3888 = vmatprep.subr.mxu0 0.0
    %3889 = vmatpush1.msra.mxu0 0.0
    %3890 = vmatprep.subr.mxu0 0.0
    %3891 = vmatpush1.msra.mxu0 0.0
    %3892 = vmatprep.subr.mxu0 0.0
    %3893 = vmatpush1.msra.mxu0 0.0
    %3894 = vmatprep.subr.mxu0 0.0
    %3895 = vmatpush1.msra.mxu0 0.0
    %3896 = vmatprep.subr.mxu0 0.0
    %3897 = vmatpush1.msra.mxu0 0.0
    %3898 = vmatprep.subr.mxu0 0.0
    %3899 = vmatpush1.msra.mxu0 0.0
    %3900 = vmatprep.subr.mxu0 0.0
    %3901 = vmatpush1.msra.mxu0 0.0
    %3902 = vmatprep.subr.mxu0 0.0
    %3903 = vmatpush1.msra.mxu0 0.0
    %3904 = vmatprep.subr.mxu0 0.0
    %3905 = vmatpush1.msra.mxu0 0.0
    %3906 = vmatprep.subr.mxu0 0.0
    %3907 = vmatpush1.msra.mxu0 0.0
    %3908 = vmatprep.subr.mxu0 0.0
    %3909 = vmatpush1.msra.mxu0 0.0
    %3910 = vmatprep.subr.mxu0 0.0
    %3911 = vmatpush1.msra.mxu0 0.0
    %3912 = vmatprep.subr.mxu0 0.0
    %3913 = vmatpush1.msra.mxu0 0.0
    %3914 = vmatprep.subr.mxu0 0.0
    %3915 = vmatpush1.msra.mxu0 0.0
    %3916 = vmatprep.subr.mxu0 0.0
    %3917 = vmatpush1.msra.mxu0 0.0
    %3918 = vmatprep.subr.mxu0 0.0
    %3919 = vmatpush1.msra.mxu0 0.0
    %3920 = vmatprep.mubr.f32.mxu0 0.0
    %3921 = vmatmul.mubr.f32.gmra.mrb[0].mxu0 %v3851
    %v3922 = vpop.f32.mrb[0].mxu0
    %v3923 = vadd.f32 %v3849, %v3922
    %v3924 = vpop.f32.mrb[0].mxu0
    %3925 = vmatprep.mubr.f32.mxu0 0.0
    %3926 = vmatmul.mubr.f32.gmra.mrb[0].mxu0 %v3854
    %v3927 = vpop.f32.mrb[0].mxu0
    %v3928 = vadd.f32 %v3849, %v3927
    %v3929 = vpop.f32.mrb[0].mxu0
    %3930 = vdwg.mxu0
    %v3931 = vadd.f32 %v3040, %v3923
    %v3932 = vadd.f32 %v3041, %v3928
    %v3933 = vsel %vm48, %v3931, 0.0
    %3934 = vadd.xlane.f32.xlu0 %v3933
    %v3935 = vpop.xlane.xlu0 %3934
    %v3936 = vsel %vm48, %v3932, 0.0
    %3937 = vadd.xlane.f32.xlu0 %v3936
    %v3938 = vpop.xlane.xlu0 %3937
    %v3939 = vmul.f32 %v3935, %v939
    %v3940 = vmul.f32 %v3938, %v939
    %v3941 = vsub.f32 %v3931, %v3939
    %v3942 = vsub.f32 %v3932, %v3940
    %v3943 = vmul.f32 %v3941, %v3941
    %v3944 = vmul.f32 %v3942, %v3942
    %v3945 = vsel %vm48, %v3943, 0.0
    %3946 = vadd.xlane.f32.xlu0 %v3945
    %v3947 = vpop.xlane.xlu0 %3946
    %v3948 = vsel %vm48, %v3944, 0.0
    %3949 = vadd.xlane.f32.xlu0 %v3948
    %v3950 = vpop.xlane.xlu0 %3949
    %v3951 = vmul.f32 %v3947, %v939
    %v3952 = vmul.f32 %v3950, %v939
    %v3953 = vadd.f32 %v3951, 1e-05
    %v3954 = vadd.f32 %v3952, 1e-05
    %v3955 = vrsqrt.pop %v3953
    %v3956 = vrsqrt.pop %v3954
    %v3957 = vmul.f32 %v3941, %v3955
    %v3958 = vmul.f32 %v3942, %v3956
    %v3959 = vlaneseq
    %v3960 = vshrl.u32 %v3959, 7
    %v3961 = vsub.s32 4, %v3960
    %v3962 = vrot.slane %v3043, %v3961
    %v3963 = vmul.f32 %v3957, %v3962
    %v3964 = vmul.f32 %v3958, %v3962
    %v3965 = vlaneseq
    %v3966 = vshrl.u32 %v3965, 7
    %v3967 = vsub.s32 5, %v3966
    %v3968 = vrot.slane %v3043, %v3967
    %v3969 = vadd.f32 %v3963, %v3968
    %v3970 = vadd.f32 %v3964, %v3968
    %v3971 = vpack.c.bf16 %v3970, %v3969
    %s3972 = scalar_lea.vmem %s5, 256
    %v3973 = vld [vmem:[%s3972] sm:$0xff]
    %v3974 = vld [vmem:[%s3972 + $0x8] sm:$0xff]
    %v3975 = vld [vmem:[%s3972 + $0x10] sm:$0xff]
    %v3976 = vld [vmem:[%s3972 + $0x18] sm:$0xff]
    %v3977 = vld [vmem:[%s3972 + $0x40] sm:$0xff]
    %v3978 = vld [vmem:[%s3972 + $0x48] sm:$0xff]
    %v3979 = vld [vmem:[%s3972 + $0x50] sm:$0xff]
    %v3980 = vld [vmem:[%s3972 + $0x58] sm:$0xff]
    %v3981 = vld [vmem:[%s3972 + $0x80] sm:$0xff]
    %v3982 = vld [vmem:[%s3972 + $0x88] sm:$0xff]
    %v3983 = vld [vmem:[%s3972 + $0x90] sm:$0xff]
    %v3984 = vld [vmem:[%s3972 + $0x98] sm:$0xff]
    %v3985 = vld [vmem:[%s3972 + $0xc0] sm:$0xff]
    %v3986 = vld [vmem:[%s3972 + $0xc8] sm:$0xff]
    %v3987 = vld [vmem:[%s3972 + $0xd0] sm:$0xff]
    %v3988 = vld [vmem:[%s3972 + $0xd8] sm:$0xff]
    %s3989 = scalar_lea.vmem %s6, 16
    %v3990 = vld [vmem:[%s3989] sm:$0xff]
    %v3992 = vlaneseq
    %v3993 = vshrl.u32 %v3992, 7
    %v3994 = vsub.s32 0, %v3993
    %v3995 = vrot.slane %v3990, %v3994
    %v3996 = vlaneseq
    %v3997 = vshrl.u32 %v3996, 7
    %v3998 = vsub.s32 1, %v3997
    %v3999 = vrot.slane %v3990, %v3998
    %v4000 = vlaneseq
    %v4001 = vshrl.u32 %v4000, 7
    %v4002 = vsub.s32 2, %v4001
    %v4003 = vrot.slane %v3990, %v4002
    %v4004 = vlaneseq
    %v4005 = vshrl.u32 %v4004, 7
    %v4006 = vsub.s32 3, %v4005
    %v4007 = vrot.slane %v3990, %v4006
    %v4008 = vlaneseq
    %v4009 = vshrl.u32 %v4008, 7
    %v4010 = vsub.s32 4, %v4009
    %v4011 = vrot.slane %v3990, %v4010
    %v4012 = vlaneseq
    %v4013 = vshrl.u32 %v4012, 7
    %v4014 = vsub.s32 5, %v4013
    %v4015 = vrot.slane %v3990, %v4014
    %v4016 = vlaneseq
    %v4017 = vshrl.u32 %v4016, 7
    %v4018 = vsub.s32 6, %v4017
    %v4019 = vrot.slane %v3990, %v4018
    %v4020 = vlaneseq
    %v4021 = vshrl.u32 %v4020, 7
    %v4022 = vsub.s32 7, %v4021
    %v4023 = vrot.slane %v3990, %v4022
    %v4048 = vunpack.c.l.b16 %v3973
    %v4049 = vunpack.c.h.b16 %v3973
    %v4050 = vunpack.c.l.b16 %v3974
    %v4051 = vunpack.c.h.b16 %v3974
    %v4052 = vunpack.c.l.b16 %v3975
    %v4053 = vunpack.c.h.b16 %v3975
    %v4054 = vunpack.c.l.b16 %v3976
    %v4055 = vunpack.c.h.b16 %v3976
    %v4056 = vunpack.c.l.b16 %v3977
    %v4057 = vunpack.c.h.b16 %v3977
    %v4058 = vunpack.c.l.b16 %v3978
    %v4059 = vunpack.c.h.b16 %v3978
    %v4060 = vunpack.c.l.b16 %v3979
    %v4061 = vunpack.c.h.b16 %v3979
    %v4062 = vunpack.c.l.b16 %v3980
    %v4063 = vunpack.c.h.b16 %v3980
    %v4064 = vunpack.c.l.b16 %v3981
    %v4065 = vunpack.c.h.b16 %v3981
    %v4066 = vunpack.c.l.b16 %v3982
    %v4067 = vunpack.c.h.b16 %v3982
    %v4068 = vunpack.c.l.b16 %v3983
    %v4069 = vunpack.c.h.b16 %v3983
    %v4070 = vunpack.c.l.b16 %v3984
    %v4071 = vunpack.c.h.b16 %v3984
    %v4072 = vunpack.c.l.b16 %v3985
    %v4073 = vunpack.c.h.b16 %v3985
    %v4074 = vunpack.c.l.b16 %v3986
    %v4075 = vunpack.c.h.b16 %v3986
    %v4076 = vunpack.c.l.b16 %v3987
    %v4077 = vunpack.c.h.b16 %v3987
    %v4078 = vunpack.c.l.b16 %v3988
    %v4079 = vunpack.c.h.b16 %v3988
    %v4080 = vpack.c.b16 %v4056, %v4048
    %v4081 = vpack.c.b16 %v4057, %v4049
    %v4082 = vpack.c.b16 %v4058, %v4050
    %v4083 = vpack.c.b16 %v4059, %v4051
    %v4084 = vpack.c.b16 %v4060, %v4052
    %v4085 = vpack.c.b16 %v4061, %v4053
    %v4086 = vpack.c.b16 %v4062, %v4054
    %v4087 = vpack.c.b16 %v4063, %v4055
    %v4088 = vpack.c.b16 %v4072, %v4064
    %v4089 = vpack.c.b16 %v4073, %v4065
    %v4090 = vpack.c.b16 %v4074, %v4066
    %v4091 = vpack.c.b16 %v4075, %v4067
    %v4092 = vpack.c.b16 %v4076, %v4068
    %v4093 = vpack.c.b16 %v4077, %v4069
    %v4094 = vpack.c.b16 %v4078, %v4070
    %v4095 = vpack.c.b16 %v4079, %v4071
    %v4113 = vsel %vm48, %v3971, 0
    %4115 = vmatprep.subr.bf16.mxu0 %v4081
    %4116 = vmatpush1.bf16.msra.mxu0 %v4080
    %4117 = vmatprep.subr.bf16.mxu0 %v4089
    %4118 = vmatpush1.bf16.msra.mxu0 %v4088
    %4119 = vmatprep.subr.bf16.mxu0 0
    %4120 = vmatpush1.bf16.msra.mxu0 0
    %4121 = vmatprep.subr.bf16.mxu0 0
    %4122 = vmatpush1.bf16.msra.mxu0 0
    %4123 = vmatprep.subr.bf16.mxu0 0
    %4124 = vmatpush1.bf16.msra.mxu0 0
    %4125 = vmatprep.subr.bf16.mxu0 0
    %4126 = vmatpush1.bf16.msra.mxu0 0
    %4127 = vmatprep.subr.bf16.mxu0 0
    %4128 = vmatpush1.bf16.msra.mxu0 0
    %4129 = vmatprep.subr.bf16.mxu0 0
    %4130 = vmatpush1.bf16.msra.mxu0 0
    %4131 = vmatprep.subr.bf16.mxu0 0
    %4132 = vmatpush1.bf16.msra.mxu0 0
    %4133 = vmatprep.subr.bf16.mxu0 0
    %4134 = vmatpush1.bf16.msra.mxu0 0
    %4135 = vmatprep.subr.bf16.mxu0 0
    %4136 = vmatpush1.bf16.msra.mxu0 0
    %4137 = vmatprep.subr.bf16.mxu0 0
    %4138 = vmatpush1.bf16.msra.mxu0 0
    %4139 = vmatprep.subr.bf16.mxu0 0
    %4140 = vmatpush1.bf16.msra.mxu0 0
    %4141 = vmatprep.subr.bf16.mxu0 0
    %4142 = vmatpush1.bf16.msra.mxu0 0
    %4143 = vmatprep.subr.bf16.mxu0 0
    %4144 = vmatpush1.bf16.msra.mxu0 0
    %4145 = vmatprep.subr.bf16.mxu0 0
    %4146 = vmatpush1.bf16.msra.mxu0 0
    %4147 = vmatprep.mubr.bf16.mxu0 0
    %4148 = vmatmul.mubr.bf16.gmra.mrb[0].mxu0 %v4113
    %v4149 = vpop.f32.mrb[0].mxu0
    %v4150 = vadd.f32 %v3995, %v4149
    %v4151 = vpop.f32.mrb[0].mxu0
    %v4152 = vadd.f32 %v3999, %v4151
    %v4153 = vpop.f32.mrb[0].mxu0
    %v4154 = vadd.f32 %v3995, %v4153
    %v4155 = vpop.f32.mrb[0].mxu0
    %v4156 = vadd.f32 %v3999, %v4155
    %4157 = vdwg.mxu0
    %4158 = vmatprep.subr.bf16.mxu0 %v4083
    %4159 = vmatpush1.bf16.msra.mxu0 %v4082
    %4160 = vmatprep.subr.bf16.mxu0 %v4091
    %4161 = vmatpush1.bf16.msra.mxu0 %v4090
    %4162 = vmatprep.subr.bf16.mxu0 0
    %4163 = vmatpush1.bf16.msra.mxu0 0
    %4164 = vmatprep.subr.bf16.mxu0 0
    %4165 = vmatpush1.bf16.msra.mxu0 0
    %4166 = vmatprep.subr.bf16.mxu0 0
    %4167 = vmatpush1.bf16.msra.mxu0 0
    %4168 = vmatprep.subr.bf16.mxu0 0
    %4169 = vmatpush1.bf16.msra.mxu0 0
    %4170 = vmatprep.subr.bf16.mxu0 0
    %4171 = vmatpush1.bf16.msra.mxu0 0
    %4172 = vmatprep.subr.bf16.mxu0 0
    %4173 = vmatpush1.bf16.msra.mxu0 0
    %4174 = vmatprep.subr.bf16.mxu0 0
    %4175 = vmatpush1.bf16.msra.mxu0 0
    %4176 = vmatprep.subr.bf16.mxu0 0
    %4177 = vmatpush1.bf16.msra.mxu0 0
    %4178 = vmatprep.subr.bf16.mxu0 0
    %4179 = vmatpush1.bf16.msra.mxu0 0
    %4180 = vmatprep.subr.bf16.mxu0 0
    %4181 = vmatpush1.bf16.msra.mxu0 0
    %4182 = vmatprep.subr.bf16.mxu0 0
    %4183 = vmatpush1.bf16.msra.mxu0 0
    %4184 = vmatprep.subr.bf16.mxu0 0
    %4185 = vmatpush1.bf16.msra.mxu0 0
    %4186 = vmatprep.subr.bf16.mxu0 0
    %4187 = vmatpush1.bf16.msra.mxu0 0
    %4188 = vmatprep.subr.bf16.mxu0 0
    %4189 = vmatpush1.bf16.msra.mxu0 0
    %4190 = vmatprep.mubr.bf16.mxu0 0
    %4191 = vmatmul.mubr.bf16.gmra.mrb[0].mxu0 %v4113
    %v4192 = vpop.f32.mrb[0].mxu0
    %v4193 = vadd.f32 %v4003, %v4192
    %v4194 = vpop.f32.mrb[0].mxu0
    %v4195 = vadd.f32 %v4007, %v4194
    %v4196 = vpop.f32.mrb[0].mxu0
    %v4197 = vadd.f32 %v4003, %v4196
    %v4198 = vpop.f32.mrb[0].mxu0
    %v4199 = vadd.f32 %v4007, %v4198
    %4200 = vdwg.mxu0
    %4201 = vmatprep.subr.bf16.mxu0 %v4085
    %4202 = vmatpush1.bf16.msra.mxu0 %v4084
    %4203 = vmatprep.subr.bf16.mxu0 %v4093
    %4204 = vmatpush1.bf16.msra.mxu0 %v4092
    %4205 = vmatprep.subr.bf16.mxu0 0
    %4206 = vmatpush1.bf16.msra.mxu0 0
    %4207 = vmatprep.subr.bf16.mxu0 0
    %4208 = vmatpush1.bf16.msra.mxu0 0
    %4209 = vmatprep.subr.bf16.mxu0 0
    %4210 = vmatpush1.bf16.msra.mxu0 0
    %4211 = vmatprep.subr.bf16.mxu0 0
    %4212 = vmatpush1.bf16.msra.mxu0 0
    %4213 = vmatprep.subr.bf16.mxu0 0
    %4214 = vmatpush1.bf16.msra.mxu0 0
    %4215 = vmatprep.subr.bf16.mxu0 0
    %4216 = vmatpush1.bf16.msra.mxu0 0
    %4217 = vmatprep.subr.bf16.mxu0 0
    %4218 = vmatpush1.bf16.msra.mxu0 0
    %4219 = vmatprep.subr.bf16.mxu0 0
    %4220 = vmatpush1.bf16.msra.mxu0 0
    %4221 = vmatprep.subr.bf16.mxu0 0
    %4222 = vmatpush1.bf16.msra.mxu0 0
    %4223 = vmatprep.subr.bf16.mxu0 0
    %4224 = vmatpush1.bf16.msra.mxu0 0
    %4225 = vmatprep.subr.bf16.mxu0 0
    %4226 = vmatpush1.bf16.msra.mxu0 0
    %4227 = vmatprep.subr.bf16.mxu0 0
    %4228 = vmatpush1.bf16.msra.mxu0 0
    %4229 = vmatprep.subr.bf16.mxu0 0
    %4230 = vmatpush1.bf16.msra.mxu0 0
    %4231 = vmatprep.subr.bf16.mxu0 0
    %4232 = vmatpush1.bf16.msra.mxu0 0
    %4233 = vmatprep.mubr.bf16.mxu0 0
    %4234 = vmatmul.mubr.bf16.gmra.mrb[0].mxu0 %v4113
    %v4235 = vpop.f32.mrb[0].mxu0
    %v4236 = vadd.f32 %v4011, %v4235
    %v4237 = vpop.f32.mrb[0].mxu0
    %v4238 = vadd.f32 %v4015, %v4237
    %v4239 = vpop.f32.mrb[0].mxu0
    %v4240 = vadd.f32 %v4011, %v4239
    %v4241 = vpop.f32.mrb[0].mxu0
    %v4242 = vadd.f32 %v4015, %v4241
    %4243 = vdwg.mxu0
    %4244 = vmatprep.subr.bf16.mxu0 %v4087
    %4245 = vmatpush1.bf16.msra.mxu0 %v4086
    %4246 = vmatprep.subr.bf16.mxu0 %v4095
    %4247 = vmatpush1.bf16.msra.mxu0 %v4094
    %4248 = vmatprep.subr.bf16.mxu0 0
    %4249 = vmatpush1.bf16.msra.mxu0 0
    %4250 = vmatprep.subr.bf16.mxu0 0
    %4251 = vmatpush1.bf16.msra.mxu0 0
    %4252 = vmatprep.subr.bf16.mxu0 0
    %4253 = vmatpush1.bf16.msra.mxu0 0
    %4254 = vmatprep.subr.bf16.mxu0 0
    %4255 = vmatpush1.bf16.msra.mxu0 0
    %4256 = vmatprep.subr.bf16.mxu0 0
    %4257 = vmatpush1.bf16.msra.mxu0 0
    %4258 = vmatprep.subr.bf16.mxu0 0
    %4259 = vmatpush1.bf16.msra.mxu0 0
    %4260 = vmatprep.subr.bf16.mxu0 0
    %4261 = vmatpush1.bf16.msra.mxu0 0
    %4262 = vmatprep.subr.bf16.mxu0 0
    %4263 = vmatpush1.bf16.msra.mxu0 0
    %4264 = vmatprep.subr.bf16.mxu0 0
    %4265 = vmatpush1.bf16.msra.mxu0 0
    %4266 = vmatprep.subr.bf16.mxu0 0
    %4267 = vmatpush1.bf16.msra.mxu0 0
    %4268 = vmatprep.subr.bf16.mxu0 0
    %4269 = vmatpush1.bf16.msra.mxu0 0
    %4270 = vmatprep.subr.bf16.mxu0 0
    %4271 = vmatpush1.bf16.msra.mxu0 0
    %4272 = vmatprep.subr.bf16.mxu0 0
    %4273 = vmatpush1.bf16.msra.mxu0 0
    %4274 = vmatprep.subr.bf16.mxu0 0
    %4275 = vmatpush1.bf16.msra.mxu0 0
    %4276 = vmatprep.mubr.bf16.mxu0 0
    %4277 = vmatmul.mubr.bf16.gmra.mrb[0].mxu0 %v4113
    %v4278 = vpop.f32.mrb[0].mxu0
    %v4279 = vadd.f32 %v4019, %v4278
    %v4280 = vpop.f32.mrb[0].mxu0
    %v4281 = vadd.f32 %v4023, %v4280
    %v4282 = vpop.f32.mrb[0].mxu0
    %v4283 = vadd.f32 %v4019, %v4282
    %v4284 = vpop.f32.mrb[0].mxu0
    %v4285 = vadd.f32 %v4023, %v4284
    %4286 = vdwg.mxu0
    %v4287 = vmax.f32 %v4150, 0.0
    %v4288 = vmax.f32 %v4152, 0.0
    %v4289 = vmax.f32 %v4193, 0.0
    %v4290 = vmax.f32 %v4195, 0.0
    %v4291 = vmax.f32 %v4236, 0.0
    %v4292 = vmax.f32 %v4238, 0.0
    %v4293 = vmax.f32 %v4279, 0.0
    %v4294 = vmax.f32 %v4281, 0.0
    %v4295 = vmax.f32 %v4154, 0.0
    %v4296 = vmax.f32 %v4156, 0.0
    %v4297 = vmax.f32 %v4197, 0.0
    %v4298 = vmax.f32 %v4199, 0.0
    %v4299 = vmax.f32 %v4240, 0.0
    %v4300 = vmax.f32 %v4242, 0.0
    %v4301 = vmax.f32 %v4283, 0.0
    %v4302 = vmax.f32 %v4285, 0.0
    %v4303 = vpack.c.bf16 %v4295, %v4287
    %v4304 = vpack.c.bf16 %v4296, %v4288
    %v4305 = vpack.c.bf16 %v4297, %v4289
    %v4306 = vpack.c.bf16 %v4298, %v4290
    %v4307 = vpack.c.bf16 %v4299, %v4291
    %v4308 = vpack.c.bf16 %v4300, %v4292
    %v4309 = vpack.c.bf16 %v4301, %v4293
    %v4310 = vpack.c.bf16 %v4302, %v4294
    %s4311 = scalar_lea.vmem %s7, 1024
    %v4312 = vld [vmem:[%s4311] sm:$0xf]
    %v4313 = vld [vmem:[%s4311 + $0x4] sm:$0xf]
    %v4314 = vld [vmem:[%s4311 + $0x8] sm:$0xf]
    %v4315 = vld [vmem:[%s4311 + $0xc] sm:$0xf]
    %v4316 = vld [vmem:[%s4311 + $0x10] sm:$0xf]
    %v4317 = vld [vmem:[%s4311 + $0x14] sm:$0xf]
    %v4318 = vld [vmem:[%s4311 + $0x18] sm:$0xf]
    %v4319 = vld [vmem:[%s4311 + $0x1c] sm:$0xf]
    %v4320 = vld [vmem:[%s4311 + $0x20] sm:$0xf]
    %v4321 = vld [vmem:[%s4311 + $0x24] sm:$0xf]
    %v4322 = vld [vmem:[%s4311 + $0x28] sm:$0xf]
    %v4323 = vld [vmem:[%s4311 + $0x2c] sm:$0xf]
    %v4324 = vld [vmem:[%s4311 + $0x30] sm:$0xf]
    %v4325 = vld [vmem:[%s4311 + $0x34] sm:$0xf]
    %v4326 = vld [vmem:[%s4311 + $0x38] sm:$0xf]
    %v4327 = vld [vmem:[%s4311 + $0x3c] sm:$0xf]
    %v4328 = vld [vmem:[%s4311 + $0x40] sm:$0xf]
    %v4329 = vld [vmem:[%s4311 + $0x44] sm:$0xf]
    %v4330 = vld [vmem:[%s4311 + $0x48] sm:$0xf]
    %v4331 = vld [vmem:[%s4311 + $0x4c] sm:$0xf]
    %v4332 = vld [vmem:[%s4311 + $0x50] sm:$0xf]
    %v4333 = vld [vmem:[%s4311 + $0x54] sm:$0xf]
    %v4334 = vld [vmem:[%s4311 + $0x58] sm:$0xf]
    %v4335 = vld [vmem:[%s4311 + $0x5c] sm:$0xf]
    %v4336 = vld [vmem:[%s4311 + $0x60] sm:$0xf]
    %v4337 = vld [vmem:[%s4311 + $0x64] sm:$0xf]
    %v4338 = vld [vmem:[%s4311 + $0x68] sm:$0xf]
    %v4339 = vld [vmem:[%s4311 + $0x6c] sm:$0xf]
    %v4340 = vld [vmem:[%s4311 + $0x70] sm:$0xf]
    %v4341 = vld [vmem:[%s4311 + $0x74] sm:$0xf]
    %v4342 = vld [vmem:[%s4311 + $0x78] sm:$0xf]
    %v4343 = vld [vmem:[%s4311 + $0x7c] sm:$0xf]
    %v4344 = vld [vmem:[%s4311 + $0x80] sm:$0xf]
    %v4345 = vld [vmem:[%s4311 + $0x84] sm:$0xf]
    %v4346 = vld [vmem:[%s4311 + $0x88] sm:$0xf]
    %v4347 = vld [vmem:[%s4311 + $0x8c] sm:$0xf]
    %v4348 = vld [vmem:[%s4311 + $0x90] sm:$0xf]
    %v4349 = vld [vmem:[%s4311 + $0x94] sm:$0xf]
    %v4350 = vld [vmem:[%s4311 + $0x98] sm:$0xf]
    %v4351 = vld [vmem:[%s4311 + $0x9c] sm:$0xf]
    %v4352 = vld [vmem:[%s4311 + $0xa0] sm:$0xf]
    %v4353 = vld [vmem:[%s4311 + $0xa4] sm:$0xf]
    %v4354 = vld [vmem:[%s4311 + $0xa8] sm:$0xf]
    %v4355 = vld [vmem:[%s4311 + $0xac] sm:$0xf]
    %v4356 = vld [vmem:[%s4311 + $0xb0] sm:$0xf]
    %v4357 = vld [vmem:[%s4311 + $0xb4] sm:$0xf]
    %v4358 = vld [vmem:[%s4311 + $0xb8] sm:$0xf]
    %v4359 = vld [vmem:[%s4311 + $0xbc] sm:$0xf]
    %v4360 = vld [vmem:[%s4311 + $0xc0] sm:$0xf]
    %v4361 = vld [vmem:[%s4311 + $0xc4] sm:$0xf]
    %v4362 = vld [vmem:[%s4311 + $0xc8] sm:$0xf]
    %v4363 = vld [vmem:[%s4311 + $0xcc] sm:$0xf]
    %v4364 = vld [vmem:[%s4311 + $0xd0] sm:$0xf]
    %v4365 = vld [vmem:[%s4311 + $0xd4] sm:$0xf]
    %v4366 = vld [vmem:[%s4311 + $0xd8] sm:$0xf]
    %v4367 = vld [vmem:[%s4311 + $0xdc] sm:$0xf]
    %v4368 = vld [vmem:[%s4311 + $0xe0] sm:$0xf]
    %v4369 = vld [vmem:[%s4311 + $0xe4] sm:$0xf]
    %v4370 = vld [vmem:[%s4311 + $0xe8] sm:$0xf]
    %v4371 = vld [vmem:[%s4311 + $0xec] sm:$0xf]
    %v4372 = vld [vmem:[%s4311 + $0xf0] sm:$0xf]
    %v4373 = vld [vmem:[%s4311 + $0xf4] sm:$0xf]
    %v4374 = vld [vmem:[%s4311 + $0xf8] sm:$0xf]
    %v4375 = vld [vmem:[%s4311 + $0xfc] sm:$0xf]
    %v4376 = vld [vmem:[%s4311 + $0x100] sm:$0xf]
    %v4377 = vld [vmem:[%s4311 + $0x104] sm:$0xf]
    %v4378 = vld [vmem:[%s4311 + $0x108] sm:$0xf]
    %v4379 = vld [vmem:[%s4311 + $0x10c] sm:$0xf]
    %v4380 = vld [vmem:[%s4311 + $0x110] sm:$0xf]
    %v4381 = vld [vmem:[%s4311 + $0x114] sm:$0xf]
    %v4382 = vld [vmem:[%s4311 + $0x118] sm:$0xf]
    %v4383 = vld [vmem:[%s4311 + $0x11c] sm:$0xf]
    %v4384 = vld [vmem:[%s4311 + $0x120] sm:$0xf]
    %v4385 = vld [vmem:[%s4311 + $0x124] sm:$0xf]
    %v4386 = vld [vmem:[%s4311 + $0x128] sm:$0xf]
    %v4387 = vld [vmem:[%s4311 + $0x12c] sm:$0xf]
    %v4388 = vld [vmem:[%s4311 + $0x130] sm:$0xf]
    %v4389 = vld [vmem:[%s4311 + $0x134] sm:$0xf]
    %v4390 = vld [vmem:[%s4311 + $0x138] sm:$0xf]
    %v4391 = vld [vmem:[%s4311 + $0x13c] sm:$0xf]
    %v4392 = vld [vmem:[%s4311 + $0x140] sm:$0xf]
    %v4393 = vld [vmem:[%s4311 + $0x144] sm:$0xf]
    %v4394 = vld [vmem:[%s4311 + $0x148] sm:$0xf]
    %v4395 = vld [vmem:[%s4311 + $0x14c] sm:$0xf]
    %v4396 = vld [vmem:[%s4311 + $0x150] sm:$0xf]
    %v4397 = vld [vmem:[%s4311 + $0x154] sm:$0xf]
    %v4398 = vld [vmem:[%s4311 + $0x158] sm:$0xf]
    %v4399 = vld [vmem:[%s4311 + $0x15c] sm:$0xf]
    %v4400 = vld [vmem:[%s4311 + $0x160] sm:$0xf]
    %v4401 = vld [vmem:[%s4311 + $0x164] sm:$0xf]
    %v4402 = vld [vmem:[%s4311 + $0x168] sm:$0xf]
    %v4403 = vld [vmem:[%s4311 + $0x16c] sm:$0xf]
    %v4404 = vld [vmem:[%s4311 + $0x170] sm:$0xf]
    %v4405 = vld [vmem:[%s4311 + $0x174] sm:$0xf]
    %v4406 = vld [vmem:[%s4311 + $0x178] sm:$0xf]
    %v4407 = vld [vmem:[%s4311 + $0x17c] sm:$0xf]
    %v4408 = vld [vmem:[%s4311 + $0x180] sm:$0xf]
    %v4409 = vld [vmem:[%s4311 + $0x184] sm:$0xf]
    %v4410 = vld [vmem:[%s4311 + $0x188] sm:$0xf]
    %v4411 = vld [vmem:[%s4311 + $0x18c] sm:$0xf]
    %v4412 = vld [vmem:[%s4311 + $0x190] sm:$0xf]
    %v4413 = vld [vmem:[%s4311 + $0x194] sm:$0xf]
    %v4414 = vld [vmem:[%s4311 + $0x198] sm:$0xf]
    %v4415 = vld [vmem:[%s4311 + $0x19c] sm:$0xf]
    %v4416 = vld [vmem:[%s4311 + $0x1a0] sm:$0xf]
    %v4417 = vld [vmem:[%s4311 + $0x1a4] sm:$0xf]
    %v4418 = vld [vmem:[%s4311 + $0x1a8] sm:$0xf]
    %v4419 = vld [vmem:[%s4311 + $0x1ac] sm:$0xf]
    %v4420 = vld [vmem:[%s4311 + $0x1b0] sm:$0xf]
    %v4421 = vld [vmem:[%s4311 + $0x1b4] sm:$0xf]
    %v4422 = vld [vmem:[%s4311 + $0x1b8] sm:$0xf]
    %v4423 = vld [vmem:[%s4311 + $0x1bc] sm:$0xf]
    %v4424 = vld [vmem:[%s4311 + $0x1c0] sm:$0xf]
    %v4425 = vld [vmem:[%s4311 + $0x1c4] sm:$0xf]
    %v4426 = vld [vmem:[%s4311 + $0x1c8] sm:$0xf]
    %v4427 = vld [vmem:[%s4311 + $0x1cc] sm:$0xf]
    %v4428 = vld [vmem:[%s4311 + $0x1d0] sm:$0xf]
    %v4429 = vld [vmem:[%s4311 + $0x1d4] sm:$0xf]
    %v4430 = vld [vmem:[%s4311 + $0x1d8] sm:$0xf]
    %v4431 = vld [vmem:[%s4311 + $0x1dc] sm:$0xf]
    %v4432 = vld [vmem:[%s4311 + $0x1e0] sm:$0xf]
    %v4433 = vld [vmem:[%s4311 + $0x1e4] sm:$0xf]
    %v4434 = vld [vmem:[%s4311 + $0x1e8] sm:$0xf]
    %v4435 = vld [vmem:[%s4311 + $0x1ec] sm:$0xf]
    %v4436 = vld [vmem:[%s4311 + $0x1f0] sm:$0xf]
    %v4437 = vld [vmem:[%s4311 + $0x1f4] sm:$0xf]
    %v4438 = vld [vmem:[%s4311 + $0x1f8] sm:$0xf]
    %v4439 = vld [vmem:[%s4311 + $0x1fc] sm:$0xf]
    %v4440 = vld [vmem:[%s3972 + $0x20] sm:$0xff]
    %v4441 = vld [vmem:[%s3972 + $0x28] sm:$0xff]
    %v4442 = vld [vmem:[%s3972 + $0x30] sm:$0xff]
    %v4443 = vld [vmem:[%s3972 + $0x38] sm:$0xff]
    %v4444 = vld [vmem:[%s3972 + $0x60] sm:$0xff]
    %v4445 = vld [vmem:[%s3972 + $0x68] sm:$0xff]
    %v4446 = vld [vmem:[%s3972 + $0x70] sm:$0xff]
    %v4447 = vld [vmem:[%s3972 + $0x78] sm:$0xff]
    %v4448 = vld [vmem:[%s3972 + $0xa0] sm:$0xff]
    %v4449 = vld [vmem:[%s3972 + $0xa8] sm:$0xff]
    %v4450 = vld [vmem:[%s3972 + $0xb0] sm:$0xff]
    %v4451 = vld [vmem:[%s3972 + $0xb8] sm:$0xff]
    %v4452 = vld [vmem:[%s3972 + $0xe0] sm:$0xff]
    %v4453 = vld [vmem:[%s3972 + $0xe8] sm:$0xff]
    %v4454 = vld [vmem:[%s3972 + $0xf0] sm:$0xff]
    %v4455 = vld [vmem:[%s3972 + $0xf8] sm:$0xff]
    %v4456 = vld [vmem:[%s3989 + $0x8] sm:$0xff]
    %v4458 = vlaneseq
    %v4459 = vshrl.u32 %v4458, 7
    %v4460 = vsub.s32 0, %v4459
    %v4461 = vrot.slane %v4456, %v4460
    %v4462 = vlaneseq
    %v4463 = vshrl.u32 %v4462, 7
    %v4464 = vsub.s32 1, %v4463
    %v4465 = vrot.slane %v4456, %v4464
    %v4466 = vlaneseq
    %v4467 = vshrl.u32 %v4466, 7
    %v4468 = vsub.s32 2, %v4467
    %v4469 = vrot.slane %v4456, %v4468
    %v4470 = vlaneseq
    %v4471 = vshrl.u32 %v4470, 7
    %v4472 = vsub.s32 3, %v4471
    %v4473 = vrot.slane %v4456, %v4472
    %v4474 = vlaneseq
    %v4475 = vshrl.u32 %v4474, 7
    %v4476 = vsub.s32 4, %v4475
    %v4477 = vrot.slane %v4456, %v4476
    %v4478 = vlaneseq
    %v4479 = vshrl.u32 %v4478, 7
    %v4480 = vsub.s32 5, %v4479
    %v4481 = vrot.slane %v4456, %v4480
    %v4482 = vlaneseq
    %v4483 = vshrl.u32 %v4482, 7
    %v4484 = vsub.s32 6, %v4483
    %v4485 = vrot.slane %v4456, %v4484
    %v4486 = vlaneseq
    %v4487 = vshrl.u32 %v4486, 7
    %v4488 = vsub.s32 7, %v4487
    %v4489 = vrot.slane %v4456, %v4488
    %v4514 = vunpack.c.l.b16 %v4440
    %v4515 = vunpack.c.h.b16 %v4440
    %v4516 = vunpack.c.l.b16 %v4441
    %v4517 = vunpack.c.h.b16 %v4441
    %v4518 = vunpack.c.l.b16 %v4442
    %v4519 = vunpack.c.h.b16 %v4442
    %v4520 = vunpack.c.l.b16 %v4443
    %v4521 = vunpack.c.h.b16 %v4443
    %v4522 = vunpack.c.l.b16 %v4444
    %v4523 = vunpack.c.h.b16 %v4444
    %v4524 = vunpack.c.l.b16 %v4445
    %v4525 = vunpack.c.h.b16 %v4445
    %v4526 = vunpack.c.l.b16 %v4446
    %v4527 = vunpack.c.h.b16 %v4446
    %v4528 = vunpack.c.l.b16 %v4447
    %v4529 = vunpack.c.h.b16 %v4447
    %v4530 = vunpack.c.l.b16 %v4448
    %v4531 = vunpack.c.h.b16 %v4448
    %v4532 = vunpack.c.l.b16 %v4449
    %v4533 = vunpack.c.h.b16 %v4449
    %v4534 = vunpack.c.l.b16 %v4450
    %v4535 = vunpack.c.h.b16 %v4450
    %v4536 = vunpack.c.l.b16 %v4451
    %v4537 = vunpack.c.h.b16 %v4451
    %v4538 = vunpack.c.l.b16 %v4452
    %v4539 = vunpack.c.h.b16 %v4452
    %v4540 = vunpack.c.l.b16 %v4453
    %v4541 = vunpack.c.h.b16 %v4453
    %v4542 = vunpack.c.l.b16 %v4454
    %v4543 = vunpack.c.h.b16 %v4454
    %v4544 = vunpack.c.l.b16 %v4455
    %v4545 = vunpack.c.h.b16 %v4455
    %v4546 = vpack.c.b16 %v4522, %v4514
    %v4547 = vpack.c.b16 %v4523, %v4515
    %v4548 = vpack.c.b16 %v4524, %v4516
    %v4549 = vpack.c.b16 %v4525, %v4517
    %v4550 = vpack.c.b16 %v4526, %v4518
    %v4551 = vpack.c.b16 %v4527, %v4519
    %v4552 = vpack.c.b16 %v4528, %v4520
    %v4553 = vpack.c.b16 %v4529, %v4521
    %v4554 = vpack.c.b16 %v4538, %v4530
    %v4555 = vpack.c.b16 %v4539, %v4531
    %v4556 = vpack.c.b16 %v4540, %v4532
    %v4557 = vpack.c.b16 %v4541, %v4533
    %v4558 = vpack.c.b16 %v4542, %v4534
    %v4559 = vpack.c.b16 %v4543, %v4535
    %v4560 = vpack.c.b16 %v4544, %v4536
    %v4561 = vpack.c.b16 %v4545, %v4537
    %4578 = vmatprep.subr.bf16.mxu0 %v4547
    %4579 = vmatpush1.bf16.msra.mxu0 %v4546
    %4580 = vmatprep.subr.bf16.mxu0 %v4555
    %4581 = vmatpush1.bf16.msra.mxu0 %v4554
    %4582 = vmatprep.subr.bf16.mxu0 0
    %4583 = vmatpush1.bf16.msra.mxu0 0
    %4584 = vmatprep.subr.bf16.mxu0 0
    %4585 = vmatpush1.bf16.msra.mxu0 0
    %4586 = vmatprep.subr.bf16.mxu0 0
    %4587 = vmatpush1.bf16.msra.mxu0 0
    %4588 = vmatprep.subr.bf16.mxu0 0
    %4589 = vmatpush1.bf16.msra.mxu0 0
    %4590 = vmatprep.subr.bf16.mxu0 0
    %4591 = vmatpush1.bf16.msra.mxu0 0
    %4592 = vmatprep.subr.bf16.mxu0 0
    %4593 = vmatpush1.bf16.msra.mxu0 0
    %4594 = vmatprep.subr.bf16.mxu0 0
    %4595 = vmatpush1.bf16.msra.mxu0 0
    %4596 = vmatprep.subr.bf16.mxu0 0
    %4597 = vmatpush1.bf16.msra.mxu0 0
    %4598 = vmatprep.subr.bf16.mxu0 0
    %4599 = vmatpush1.bf16.msra.mxu0 0
    %4600 = vmatprep.subr.bf16.mxu0 0
    %4601 = vmatpush1.bf16.msra.mxu0 0
    %4602 = vmatprep.subr.bf16.mxu0 0
    %4603 = vmatpush1.bf16.msra.mxu0 0
    %4604 = vmatprep.subr.bf16.mxu0 0
    %4605 = vmatpush1.bf16.msra.mxu0 0
    %4606 = vmatprep.subr.bf16.mxu0 0
    %4607 = vmatpush1.bf16.msra.mxu0 0
    %4608 = vmatprep.subr.bf16.mxu0 0
    %4609 = vmatpush1.bf16.msra.mxu0 0
    %4610 = vmatprep.mubr.bf16.mxu0 0
    %4611 = vmatmul.mubr.bf16.gmra.mrb[0].mxu0 %v4113
    %v4612 = vpop.f32.mrb[0].mxu0
    %v4613 = vadd.f32 %v4461, %v4612
    %v4614 = vpop.f32.mrb[0].mxu0
    %v4615 = vadd.f32 %v4465, %v4614
    %v4616 = vpop.f32.mrb[0].mxu0
    %v4617 = vadd.f32 %v4461, %v4616
    %v4618 = vpop.f32.mrb[0].mxu0
    %v4619 = vadd.f32 %v4465, %v4618
    %4620 = vdwg.mxu0
    %4621 = vmatprep.subr.bf16.mxu0 %v4549
    %4622 = vmatpush1.bf16.msra.mxu0 %v4548
    %4623 = vmatprep.subr.bf16.mxu0 %v4557
    %4624 = vmatpush1.bf16.msra.mxu0 %v4556
    %4625 = vmatprep.subr.bf16.mxu0 0
    %4626 = vmatpush1.bf16.msra.mxu0 0
    %4627 = vmatprep.subr.bf16.mxu0 0
    %4628 = vmatpush1.bf16.msra.mxu0 0
    %4629 = vmatprep.subr.bf16.mxu0 0
    %4630 = vmatpush1.bf16.msra.mxu0 0
    %4631 = vmatprep.subr.bf16.mxu0 0
    %4632 = vmatpush1.bf16.msra.mxu0 0
    %4633 = vmatprep.subr.bf16.mxu0 0
    %4634 = vmatpush1.bf16.msra.mxu0 0
    %4635 = vmatprep.subr.bf16.mxu0 0
    %4636 = vmatpush1.bf16.msra.mxu0 0
    %4637 = vmatprep.subr.bf16.mxu0 0
    %4638 = vmatpush1.bf16.msra.mxu0 0
    %4639 = vmatprep.subr.bf16.mxu0 0
    %4640 = vmatpush1.bf16.msra.mxu0 0
    %4641 = vmatprep.subr.bf16.mxu0 0
    %4642 = vmatpush1.bf16.msra.mxu0 0
    %4643 = vmatprep.subr.bf16.mxu0 0
    %4644 = vmatpush1.bf16.msra.mxu0 0
    %4645 = vmatprep.subr.bf16.mxu0 0
    %4646 = vmatpush1.bf16.msra.mxu0 0
    %4647 = vmatprep.subr.bf16.mxu0 0
    %4648 = vmatpush1.bf16.msra.mxu0 0
    %4649 = vmatprep.subr.bf16.mxu0 0
    %4650 = vmatpush1.bf16.msra.mxu0 0
    %4651 = vmatprep.subr.bf16.mxu0 0
    %4652 = vmatpush1.bf16.msra.mxu0 0
    %4653 = vmatprep.mubr.bf16.mxu0 0
    %4654 = vmatmul.mubr.bf16.gmra.mrb[0].mxu0 %v4113
    %v4655 = vpop.f32.mrb[0].mxu0
    %v4656 = vadd.f32 %v4469, %v4655
    %v4657 = vpop.f32.mrb[0].mxu0
    %v4658 = vadd.f32 %v4473, %v4657
    %v4659 = vpop.f32.mrb[0].mxu0
    %v4660 = vadd.f32 %v4469, %v4659
    %v4661 = vpop.f32.mrb[0].mxu0
    %v4662 = vadd.f32 %v4473, %v4661
    %4663 = vdwg.mxu0
    %4664 = vmatprep.subr.bf16.mxu0 %v4551
    %4665 = vmatpush1.bf16.msra.mxu0 %v4550
    %4666 = vmatprep.subr.bf16.mxu0 %v4559
    %4667 = vmatpush1.bf16.msra.mxu0 %v4558
    %4668 = vmatprep.subr.bf16.mxu0 0
    %4669 = vmatpush1.bf16.msra.mxu0 0
    %4670 = vmatprep.subr.bf16.mxu0 0
    %4671 = vmatpush1.bf16.msra.mxu0 0
    %4672 = vmatprep.subr.bf16.mxu0 0
    %4673 = vmatpush1.bf16.msra.mxu0 0
    %4674 = vmatprep.subr.bf16.mxu0 0
    %4675 = vmatpush1.bf16.msra.mxu0 0
    %4676 = vmatprep.subr.bf16.mxu0 0
    %4677 = vmatpush1.bf16.msra.mxu0 0
    %4678 = vmatprep.subr.bf16.mxu0 0
    %4679 = vmatpush1.bf16.msra.mxu0 0
    %4680 = vmatprep.subr.bf16.mxu0 0
    %4681 = vmatpush1.bf16.msra.mxu0 0
    %4682 = vmatprep.subr.bf16.mxu0 0
    %4683 = vmatpush1.bf16.msra.mxu0 0
    %4684 = vmatprep.subr.bf16.mxu0 0
    %4685 = vmatpush1.bf16.msra.mxu0 0
    %4686 = vmatprep.subr.bf16.mxu0 0
    %4687 = vmatpush1.bf16.msra.mxu0 0
    %4688 = vmatprep.subr.bf16.mxu0 0
    %4689 = vmatpush1.bf16.msra.mxu0 0
    %4690 = vmatprep.subr.bf16.mxu0 0
    %4691 = vmatpush1.bf16.msra.mxu0 0
    %4692 = vmatprep.subr.bf16.mxu0 0
    %4693 = vmatpush1.bf16.msra.mxu0 0
    %4694 = vmatprep.subr.bf16.mxu0 0
    %4695 = vmatpush1.bf16.msra.mxu0 0
    %4696 = vmatprep.mubr.bf16.mxu0 0
    %4697 = vmatmul.mubr.bf16.gmra.mrb[0].mxu0 %v4113
    %v4698 = vpop.f32.mrb[0].mxu0
    %v4699 = vadd.f32 %v4477, %v4698
    %v4700 = vpop.f32.mrb[0].mxu0
    %v4701 = vadd.f32 %v4481, %v4700
    %v4702 = vpop.f32.mrb[0].mxu0
    %v4703 = vadd.f32 %v4477, %v4702
    %v4704 = vpop.f32.mrb[0].mxu0
    %v4705 = vadd.f32 %v4481, %v4704
    %4706 = vdwg.mxu0
    %4707 = vmatprep.subr.bf16.mxu0 %v4553
    %4708 = vmatpush1.bf16.msra.mxu0 %v4552
    %4709 = vmatprep.subr.bf16.mxu0 %v4561
    %4710 = vmatpush1.bf16.msra.mxu0 %v4560
    %4711 = vmatprep.subr.bf16.mxu0 0
    %4712 = vmatpush1.bf16.msra.mxu0 0
    %4713 = vmatprep.subr.bf16.mxu0 0
    %4714 = vmatpush1.bf16.msra.mxu0 0
    %4715 = vmatprep.subr.bf16.mxu0 0
    %4716 = vmatpush1.bf16.msra.mxu0 0
    %4717 = vmatprep.subr.bf16.mxu0 0
    %4718 = vmatpush1.bf16.msra.mxu0 0
    %4719 = vmatprep.subr.bf16.mxu0 0
    %4720 = vmatpush1.bf16.msra.mxu0 0
    %4721 = vmatprep.subr.bf16.mxu0 0
    %4722 = vmatpush1.bf16.msra.mxu0 0
    %4723 = vmatprep.subr.bf16.mxu0 0
    %4724 = vmatpush1.bf16.msra.mxu0 0
    %4725 = vmatprep.subr.bf16.mxu0 0
    %4726 = vmatpush1.bf16.msra.mxu0 0
    %4727 = vmatprep.subr.bf16.mxu0 0
    %4728 = vmatpush1.bf16.msra.mxu0 0
    %4729 = vmatprep.subr.bf16.mxu0 0
    %4730 = vmatpush1.bf16.msra.mxu0 0
    %4731 = vmatprep.subr.bf16.mxu0 0
    %4732 = vmatpush1.bf16.msra.mxu0 0
    %4733 = vmatprep.subr.bf16.mxu0 0
    %4734 = vmatpush1.bf16.msra.mxu0 0
    %4735 = vmatprep.subr.bf16.mxu0 0
    %4736 = vmatpush1.bf16.msra.mxu0 0
    %4737 = vmatprep.subr.bf16.mxu0 0
    %4738 = vmatpush1.bf16.msra.mxu0 0
    %4739 = vmatprep.mubr.bf16.mxu0 0
    %4740 = vmatmul.mubr.bf16.gmra.mrb[0].mxu0 %v4113
    %v4741 = vpop.f32.mrb[0].mxu0
    %v4742 = vadd.f32 %v4485, %v4741
    %v4743 = vpop.f32.mrb[0].mxu0
    %v4744 = vadd.f32 %v4489, %v4743
    %v4745 = vpop.f32.mrb[0].mxu0
    %v4746 = vadd.f32 %v4485, %v4745
    %v4747 = vpop.f32.mrb[0].mxu0
    %v4748 = vadd.f32 %v4489, %v4747
    %4749 = vdwg.mxu0
    %v4750 = vmax.f32 %v4613, 0.0
    %v4751 = vmax.f32 %v4615, 0.0
    %v4752 = vmax.f32 %v4656, 0.0
    %v4753 = vmax.f32 %v4658, 0.0
    %v4754 = vmax.f32 %v4699, 0.0
    %v4755 = vmax.f32 %v4701, 0.0
    %v4756 = vmax.f32 %v4742, 0.0
    %v4757 = vmax.f32 %v4744, 0.0
    %v4758 = vmax.f32 %v4617, 0.0
    %v4759 = vmax.f32 %v4619, 0.0
    %v4760 = vmax.f32 %v4660, 0.0
    %v4761 = vmax.f32 %v4662, 0.0
    %v4762 = vmax.f32 %v4703, 0.0
    %v4763 = vmax.f32 %v4705, 0.0
    %v4764 = vmax.f32 %v4746, 0.0
    %v4765 = vmax.f32 %v4748, 0.0
    %v4766 = vpack.c.bf16 %v4758, %v4750
    %v4767 = vpack.c.bf16 %v4759, %v4751
    %v4768 = vpack.c.bf16 %v4760, %v4752
    %v4769 = vpack.c.bf16 %v4761, %v4753
    %v4770 = vpack.c.bf16 %v4762, %v4754
    %v4771 = vpack.c.bf16 %v4763, %v4755
    %v4772 = vpack.c.bf16 %v4764, %v4756
    %v4773 = vpack.c.bf16 %v4765, %v4757
    %v4774 = vld [vmem:[%s4311 + $0x200] sm:$0xf]
    %v4775 = vld [vmem:[%s4311 + $0x204] sm:$0xf]
    %v4776 = vld [vmem:[%s4311 + $0x208] sm:$0xf]
    %v4777 = vld [vmem:[%s4311 + $0x20c] sm:$0xf]
    %v4778 = vld [vmem:[%s4311 + $0x210] sm:$0xf]
    %v4779 = vld [vmem:[%s4311 + $0x214] sm:$0xf]
    %v4780 = vld [vmem:[%s4311 + $0x218] sm:$0xf]
    %v4781 = vld [vmem:[%s4311 + $0x21c] sm:$0xf]
    %v4782 = vld [vmem:[%s4311 + $0x220] sm:$0xf]
    %v4783 = vld [vmem:[%s4311 + $0x224] sm:$0xf]
    %v4784 = vld [vmem:[%s4311 + $0x228] sm:$0xf]
    %v4785 = vld [vmem:[%s4311 + $0x22c] sm:$0xf]
    %v4786 = vld [vmem:[%s4311 + $0x230] sm:$0xf]
    %v4787 = vld [vmem:[%s4311 + $0x234] sm:$0xf]
    %v4788 = vld [vmem:[%s4311 + $0x238] sm:$0xf]
    %v4789 = vld [vmem:[%s4311 + $0x23c] sm:$0xf]
    %v4790 = vld [vmem:[%s4311 + $0x240] sm:$0xf]
    %v4791 = vld [vmem:[%s4311 + $0x244] sm:$0xf]
    %v4792 = vld [vmem:[%s4311 + $0x248] sm:$0xf]
    %v4793 = vld [vmem:[%s4311 + $0x24c] sm:$0xf]
    %v4794 = vld [vmem:[%s4311 + $0x250] sm:$0xf]
    %v4795 = vld [vmem:[%s4311 + $0x254] sm:$0xf]
    %v4796 = vld [vmem:[%s4311 + $0x258] sm:$0xf]
    %v4797 = vld [vmem:[%s4311 + $0x25c] sm:$0xf]
    %v4798 = vld [vmem:[%s4311 + $0x260] sm:$0xf]
    %v4799 = vld [vmem:[%s4311 + $0x264] sm:$0xf]
    %v4800 = vld [vmem:[%s4311 + $0x268] sm:$0xf]
    %v4801 = vld [vmem:[%s4311 + $0x26c] sm:$0xf]
    %v4802 = vld [vmem:[%s4311 + $0x270] sm:$0xf]
    %v4803 = vld [vmem:[%s4311 + $0x274] sm:$0xf]
    %v4804 = vld [vmem:[%s4311 + $0x278] sm:$0xf]
    %v4805 = vld [vmem:[%s4311 + $0x27c] sm:$0xf]
    %v4806 = vld [vmem:[%s4311 + $0x280] sm:$0xf]
    %v4807 = vld [vmem:[%s4311 + $0x284] sm:$0xf]
    %v4808 = vld [vmem:[%s4311 + $0x288] sm:$0xf]
    %v4809 = vld [vmem:[%s4311 + $0x28c] sm:$0xf]
    %v4810 = vld [vmem:[%s4311 + $0x290] sm:$0xf]
    %v4811 = vld [vmem:[%s4311 + $0x294] sm:$0xf]
    %v4812 = vld [vmem:[%s4311 + $0x298] sm:$0xf]
    %v4813 = vld [vmem:[%s4311 + $0x29c] sm:$0xf]
    %v4814 = vld [vmem:[%s4311 + $0x2a0] sm:$0xf]
    %v4815 = vld [vmem:[%s4311 + $0x2a4] sm:$0xf]
    %v4816 = vld [vmem:[%s4311 + $0x2a8] sm:$0xf]
    %v4817 = vld [vmem:[%s4311 + $0x2ac] sm:$0xf]
    %v4818 = vld [vmem:[%s4311 + $0x2b0] sm:$0xf]
    %v4819 = vld [vmem:[%s4311 + $0x2b4] sm:$0xf]
    %v4820 = vld [vmem:[%s4311 + $0x2b8] sm:$0xf]
    %v4821 = vld [vmem:[%s4311 + $0x2bc] sm:$0xf]
    %v4822 = vld [vmem:[%s4311 + $0x2c0] sm:$0xf]
    %v4823 = vld [vmem:[%s4311 + $0x2c4] sm:$0xf]
    %v4824 = vld [vmem:[%s4311 + $0x2c8] sm:$0xf]
    %v4825 = vld [vmem:[%s4311 + $0x2cc] sm:$0xf]
    %v4826 = vld [vmem:[%s4311 + $0x2d0] sm:$0xf]
    %v4827 = vld [vmem:[%s4311 + $0x2d4] sm:$0xf]
    %v4828 = vld [vmem:[%s4311 + $0x2d8] sm:$0xf]
    %v4829 = vld [vmem:[%s4311 + $0x2dc] sm:$0xf]
    %v4830 = vld [vmem:[%s4311 + $0x2e0] sm:$0xf]
    %v4831 = vld [vmem:[%s4311 + $0x2e4] sm:$0xf]
    %v4832 = vld [vmem:[%s4311 + $0x2e8] sm:$0xf]
    %v4833 = vld [vmem:[%s4311 + $0x2ec] sm:$0xf]
    %v4834 = vld [vmem:[%s4311 + $0x2f0] sm:$0xf]
    %v4835 = vld [vmem:[%s4311 + $0x2f4] sm:$0xf]
    %v4836 = vld [vmem:[%s4311 + $0x2f8] sm:$0xf]
    %v4837 = vld [vmem:[%s4311 + $0x2fc] sm:$0xf]
    %v4838 = vld [vmem:[%s4311 + $0x300] sm:$0xf]
    %v4839 = vld [vmem:[%s4311 + $0x304] sm:$0xf]
    %v4840 = vld [vmem:[%s4311 + $0x308] sm:$0xf]
    %v4841 = vld [vmem:[%s4311 + $0x30c] sm:$0xf]
    %v4842 = vld [vmem:[%s4311 + $0x310] sm:$0xf]
    %v4843 = vld [vmem:[%s4311 + $0x314] sm:$0xf]
    %v4844 = vld [vmem:[%s4311 + $0x318] sm:$0xf]
    %v4845 = vld [vmem:[%s4311 + $0x31c] sm:$0xf]
    %v4846 = vld [vmem:[%s4311 + $0x320] sm:$0xf]
    %v4847 = vld [vmem:[%s4311 + $0x324] sm:$0xf]
    %v4848 = vld [vmem:[%s4311 + $0x328] sm:$0xf]
    %v4849 = vld [vmem:[%s4311 + $0x32c] sm:$0xf]
    %v4850 = vld [vmem:[%s4311 + $0x330] sm:$0xf]
    %v4851 = vld [vmem:[%s4311 + $0x334] sm:$0xf]
    %v4852 = vld [vmem:[%s4311 + $0x338] sm:$0xf]
    %v4853 = vld [vmem:[%s4311 + $0x33c] sm:$0xf]
    %v4854 = vld [vmem:[%s4311 + $0x340] sm:$0xf]
    %v4855 = vld [vmem:[%s4311 + $0x344] sm:$0xf]
    %v4856 = vld [vmem:[%s4311 + $0x348] sm:$0xf]
    %v4857 = vld [vmem:[%s4311 + $0x34c] sm:$0xf]
    %v4858 = vld [vmem:[%s4311 + $0x350] sm:$0xf]
    %v4859 = vld [vmem:[%s4311 + $0x354] sm:$0xf]
    %v4860 = vld [vmem:[%s4311 + $0x358] sm:$0xf]
    %v4861 = vld [vmem:[%s4311 + $0x35c] sm:$0xf]
    %v4862 = vld [vmem:[%s4311 + $0x360] sm:$0xf]
    %v4863 = vld [vmem:[%s4311 + $0x364] sm:$0xf]
    %v4864 = vld [vmem:[%s4311 + $0x368] sm:$0xf]
    %v4865 = vld [vmem:[%s4311 + $0x36c] sm:$0xf]
    %v4866 = vld [vmem:[%s4311 + $0x370] sm:$0xf]
    %v4867 = vld [vmem:[%s4311 + $0x374] sm:$0xf]
    %v4868 = vld [vmem:[%s4311 + $0x378] sm:$0xf]
    %v4869 = vld [vmem:[%s4311 + $0x37c] sm:$0xf]
    %v4870 = vld [vmem:[%s4311 + $0x380] sm:$0xf]
    %v4871 = vld [vmem:[%s4311 + $0x384] sm:$0xf]
    %v4872 = vld [vmem:[%s4311 + $0x388] sm:$0xf]
    %v4873 = vld [vmem:[%s4311 + $0x38c] sm:$0xf]
    %v4874 = vld [vmem:[%s4311 + $0x390] sm:$0xf]
    %v4875 = vld [vmem:[%s4311 + $0x394] sm:$0xf]
    %v4876 = vld [vmem:[%s4311 + $0x398] sm:$0xf]
    %v4877 = vld [vmem:[%s4311 + $0x39c] sm:$0xf]
    %v4878 = vld [vmem:[%s4311 + $0x3a0] sm:$0xf]
    %v4879 = vld [vmem:[%s4311 + $0x3a4] sm:$0xf]
    %v4880 = vld [vmem:[%s4311 + $0x3a8] sm:$0xf]
    %v4881 = vld [vmem:[%s4311 + $0x3ac] sm:$0xf]
    %v4882 = vld [vmem:[%s4311 + $0x3b0] sm:$0xf]
    %v4883 = vld [vmem:[%s4311 + $0x3b4] sm:$0xf]
    %v4884 = vld [vmem:[%s4311 + $0x3b8] sm:$0xf]
    %v4885 = vld [vmem:[%s4311 + $0x3bc] sm:$0xf]
    %v4886 = vld [vmem:[%s4311 + $0x3c0] sm:$0xf]
    %v4887 = vld [vmem:[%s4311 + $0x3c4] sm:$0xf]
    %v4888 = vld [vmem:[%s4311 + $0x3c8] sm:$0xf]
    %v4889 = vld [vmem:[%s4311 + $0x3cc] sm:$0xf]
    %v4890 = vld [vmem:[%s4311 + $0x3d0] sm:$0xf]
    %v4891 = vld [vmem:[%s4311 + $0x3d4] sm:$0xf]
    %v4892 = vld [vmem:[%s4311 + $0x3d8] sm:$0xf]
    %v4893 = vld [vmem:[%s4311 + $0x3dc] sm:$0xf]
    %v4894 = vld [vmem:[%s4311 + $0x3e0] sm:$0xf]
    %v4895 = vld [vmem:[%s4311 + $0x3e4] sm:$0xf]
    %v4896 = vld [vmem:[%s4311 + $0x3e8] sm:$0xf]
    %v4897 = vld [vmem:[%s4311 + $0x3ec] sm:$0xf]
    %v4898 = vld [vmem:[%s4311 + $0x3f0] sm:$0xf]
    %v4899 = vld [vmem:[%s4311 + $0x3f4] sm:$0xf]
    %v4900 = vld [vmem:[%s4311 + $0x3f8] sm:$0xf]
    %v4901 = vld [vmem:[%s4311 + $0x3fc] sm:$0xf]
    %v5030 = vunpack.c.l.b16 %v4774
    %v5031 = vunpack.c.l.b16 %v4775
    %v5032 = vunpack.c.l.b16 %v4776
    %v5033 = vunpack.c.l.b16 %v4777
    %v5034 = vunpack.c.l.b16 %v4778
    %v5035 = vunpack.c.l.b16 %v4779
    %v5036 = vunpack.c.l.b16 %v4780
    %v5037 = vunpack.c.l.b16 %v4781
    %v5038 = vunpack.c.l.b16 %v4782
    %v5039 = vunpack.c.l.b16 %v4783
    %v5040 = vunpack.c.l.b16 %v4784
    %v5041 = vunpack.c.l.b16 %v4785
    %v5042 = vunpack.c.l.b16 %v4786
    %v5043 = vunpack.c.l.b16 %v4787
    %v5044 = vunpack.c.l.b16 %v4788
    %v5045 = vunpack.c.l.b16 %v4789
    %v5046 = vunpack.c.l.b16 %v4790
    %v5047 = vunpack.c.l.b16 %v4791
    %v5048 = vunpack.c.l.b16 %v4792
    %v5049 = vunpack.c.l.b16 %v4793
    %v5050 = vunpack.c.l.b16 %v4794
    %v5051 = vunpack.c.l.b16 %v4795
    %v5052 = vunpack.c.l.b16 %v4796
    %v5053 = vunpack.c.l.b16 %v4797
    %v5054 = vunpack.c.l.b16 %v4798
    %v5055 = vunpack.c.l.b16 %v4799
    %v5056 = vunpack.c.l.b16 %v4800
    %v5057 = vunpack.c.l.b16 %v4801
    %v5058 = vunpack.c.l.b16 %v4802
    %v5059 = vunpack.c.l.b16 %v4803
    %v5060 = vunpack.c.l.b16 %v4804
    %v5061 = vunpack.c.l.b16 %v4805
    %v5062 = vunpack.c.l.b16 %v4806
    %v5063 = vunpack.c.l.b16 %v4807
    %v5064 = vunpack.c.l.b16 %v4808
    %v5065 = vunpack.c.l.b16 %v4809
    %v5066 = vunpack.c.l.b16 %v4810
    %v5067 = vunpack.c.l.b16 %v4811
    %v5068 = vunpack.c.l.b16 %v4812
    %v5069 = vunpack.c.l.b16 %v4813
    %v5070 = vunpack.c.l.b16 %v4814
    %v5071 = vunpack.c.l.b16 %v4815
    %v5072 = vunpack.c.l.b16 %v4816
    %v5073 = vunpack.c.l.b16 %v4817
    %v5074 = vunpack.c.l.b16 %v4818
    %v5075 = vunpack.c.l.b16 %v4819
    %v5076 = vunpack.c.l.b16 %v4820
    %v5077 = vunpack.c.l.b16 %v4821
    %v5078 = vunpack.c.l.b16 %v4822
    %v5079 = vunpack.c.l.b16 %v4823
    %v5080 = vunpack.c.l.b16 %v4824
    %v5081 = vunpack.c.l.b16 %v4825
    %v5082 = vunpack.c.l.b16 %v4826
    %v5083 = vunpack.c.l.b16 %v4827
    %v5084 = vunpack.c.l.b16 %v4828
    %v5085 = vunpack.c.l.b16 %v4829
    %v5086 = vunpack.c.l.b16 %v4830
    %v5087 = vunpack.c.l.b16 %v4831
    %v5088 = vunpack.c.l.b16 %v4832
    %v5089 = vunpack.c.l.b16 %v4833
    %v5090 = vunpack.c.l.b16 %v4834
    %v5091 = vunpack.c.l.b16 %v4835
    %v5092 = vunpack.c.l.b16 %v4836
    %v5093 = vunpack.c.l.b16 %v4837
    %v5094 = vunpack.c.l.b16 %v4838
    %v5095 = vunpack.c.l.b16 %v4839
    %v5096 = vunpack.c.l.b16 %v4840
    %v5097 = vunpack.c.l.b16 %v4841
    %v5098 = vunpack.c.l.b16 %v4842
    %v5099 = vunpack.c.l.b16 %v4843
    %v5100 = vunpack.c.l.b16 %v4844
    %v5101 = vunpack.c.l.b16 %v4845
    %v5102 = vunpack.c.l.b16 %v4846
    %v5103 = vunpack.c.l.b16 %v4847
    %v5104 = vunpack.c.l.b16 %v4848
    %v5105 = vunpack.c.l.b16 %v4849
    %v5106 = vunpack.c.l.b16 %v4850
    %v5107 = vunpack.c.l.b16 %v4851
    %v5108 = vunpack.c.l.b16 %v4852
    %v5109 = vunpack.c.l.b16 %v4853
    %v5110 = vunpack.c.l.b16 %v4854
    %v5111 = vunpack.c.l.b16 %v4855
    %v5112 = vunpack.c.l.b16 %v4856
    %v5113 = vunpack.c.l.b16 %v4857
    %v5114 = vunpack.c.l.b16 %v4858
    %v5115 = vunpack.c.l.b16 %v4859
    %v5116 = vunpack.c.l.b16 %v4860
    %v5117 = vunpack.c.l.b16 %v4861
    %v5118 = vunpack.c.l.b16 %v4862
    %v5119 = vunpack.c.l.b16 %v4863
    %v5120 = vunpack.c.l.b16 %v4864
    %v5121 = vunpack.c.l.b16 %v4865
    %v5122 = vunpack.c.l.b16 %v4866
    %v5123 = vunpack.c.l.b16 %v4867
    %v5124 = vunpack.c.l.b16 %v4868
    %v5125 = vunpack.c.l.b16 %v4869
    %v5126 = vunpack.c.l.b16 %v4870
    %v5127 = vunpack.c.l.b16 %v4871
    %v5128 = vunpack.c.l.b16 %v4872
    %v5129 = vunpack.c.l.b16 %v4873
    %v5130 = vunpack.c.l.b16 %v4874
    %v5131 = vunpack.c.l.b16 %v4875
    %v5132 = vunpack.c.l.b16 %v4876
    %v5133 = vunpack.c.l.b16 %v4877
    %v5134 = vunpack.c.l.b16 %v4878
    %v5135 = vunpack.c.l.b16 %v4879
    %v5136 = vunpack.c.l.b16 %v4880
    %v5137 = vunpack.c.l.b16 %v4881
    %v5138 = vunpack.c.l.b16 %v4882
    %v5139 = vunpack.c.l.b16 %v4883
    %v5140 = vunpack.c.l.b16 %v4884
    %v5141 = vunpack.c.l.b16 %v4885
    %v5142 = vunpack.c.l.b16 %v4886
    %v5143 = vunpack.c.l.b16 %v4887
    %v5144 = vunpack.c.l.b16 %v4888
    %v5145 = vunpack.c.l.b16 %v4889
    %v5146 = vunpack.c.l.b16 %v4890
    %v5147 = vunpack.c.l.b16 %v4891
    %v5148 = vunpack.c.l.b16 %v4892
    %v5149 = vunpack.c.l.b16 %v4893
    %v5150 = vunpack.c.l.b16 %v4894
    %v5151 = vunpack.c.l.b16 %v4895
    %v5152 = vunpack.c.l.b16 %v4896
    %v5153 = vunpack.c.l.b16 %v4897
    %v5154 = vunpack.c.l.b16 %v4898
    %v5155 = vunpack.c.l.b16 %v4899
    %v5156 = vunpack.c.l.b16 %v4900
    %v5157 = vunpack.c.l.b16 %v4901
    %v5158 = vpack.c.b16 %v5031, %v5030
    %v5159 = vpack.c.b16 %v5033, %v5032
    %v5160 = vpack.c.b16 %v5035, %v5034
    %v5161 = vpack.c.b16 %v5037, %v5036
    %v5162 = vpack.c.b16 %v5039, %v5038
    %v5163 = vpack.c.b16 %v5041, %v5040
    %v5164 = vpack.c.b16 %v5043, %v5042
    %v5165 = vpack.c.b16 %v5045, %v5044
    %v5166 = vpack.c.b16 %v5047, %v5046
    %v5167 = vpack.c.b16 %v5049, %v5048
    %v5168 = vpack.c.b16 %v5051, %v5050
    %v5169 = vpack.c.b16 %v5053, %v5052
    %v5170 = vpack.c.b16 %v5055, %v5054
    %v5171 = vpack.c.b16 %v5057, %v5056
    %v5172 = vpack.c.b16 %v5059, %v5058
    %v5173 = vpack.c.b16 %v5061, %v5060
    %v5174 = vpack.c.b16 %v5063, %v5062
    %v5175 = vpack.c.b16 %v5065, %v5064
    %v5176 = vpack.c.b16 %v5067, %v5066
    %v5177 = vpack.c.b16 %v5069, %v5068
    %v5178 = vpack.c.b16 %v5071, %v5070
    %v5179 = vpack.c.b16 %v5073, %v5072
    %v5180 = vpack.c.b16 %v5075, %v5074
    %v5181 = vpack.c.b16 %v5077, %v5076
    %v5182 = vpack.c.b16 %v5079, %v5078
    %v5183 = vpack.c.b16 %v5081, %v5080
    %v5184 = vpack.c.b16 %v5083, %v5082
    %v5185 = vpack.c.b16 %v5085, %v5084
    %v5186 = vpack.c.b16 %v5087, %v5086
    %v5187 = vpack.c.b16 %v5089, %v5088
    %v5188 = vpack.c.b16 %v5091, %v5090
    %v5189 = vpack.c.b16 %v5093, %v5092
    %v5190 = vpack.c.b16 %v5095, %v5094
    %v5191 = vpack.c.b16 %v5097, %v5096
    %v5192 = vpack.c.b16 %v5099, %v5098
    %v5193 = vpack.c.b16 %v5101, %v5100
    %v5194 = vpack.c.b16 %v5103, %v5102
    %v5195 = vpack.c.b16 %v5105, %v5104
    %v5196 = vpack.c.b16 %v5107, %v5106
    %v5197 = vpack.c.b16 %v5109, %v5108
    %v5198 = vpack.c.b16 %v5111, %v5110
    %v5199 = vpack.c.b16 %v5113, %v5112
    %v5200 = vpack.c.b16 %v5115, %v5114
    %v5201 = vpack.c.b16 %v5117, %v5116
    %v5202 = vpack.c.b16 %v5119, %v5118
    %v5203 = vpack.c.b16 %v5121, %v5120
    %v5204 = vpack.c.b16 %v5123, %v5122
    %v5205 = vpack.c.b16 %v5125, %v5124
    %v5206 = vpack.c.b16 %v5127, %v5126
    %v5207 = vpack.c.b16 %v5129, %v5128
    %v5208 = vpack.c.b16 %v5131, %v5130
    %v5209 = vpack.c.b16 %v5133, %v5132
    %v5210 = vpack.c.b16 %v5135, %v5134
    %v5211 = vpack.c.b16 %v5137, %v5136
    %v5212 = vpack.c.b16 %v5139, %v5138
    %v5213 = vpack.c.b16 %v5141, %v5140
    %v5214 = vpack.c.b16 %v5143, %v5142
    %v5215 = vpack.c.b16 %v5145, %v5144
    %v5216 = vpack.c.b16 %v5147, %v5146
    %v5217 = vpack.c.b16 %v5149, %v5148
    %v5218 = vpack.c.b16 %v5151, %v5150
    %v5219 = vpack.c.b16 %v5153, %v5152
    %v5220 = vpack.c.b16 %v5155, %v5154
    %v5221 = vpack.c.b16 %v5157, %v5156
    %5286 = vmatprep.subr.bf16.mxu0 0
    %5287 = vmatpush1.bf16.msra.mxu0 %v5158
    %5288 = vmatprep.subr.bf16.mxu0 0
    %5289 = vmatpush1.bf16.msra.mxu0 %v5159
    %5290 = vmatprep.subr.bf16.mxu0 0
    %5291 = vmatpush1.bf16.msra.mxu0 %v5160
    %5292 = vmatprep.subr.bf16.mxu0 0
    %5293 = vmatpush1.bf16.msra.mxu0 %v5161
    %5294 = vmatprep.subr.bf16.mxu0 0
    %5295 = vmatpush1.bf16.msra.mxu0 %v5162
    %5296 = vmatprep.subr.bf16.mxu0 0
    %5297 = vmatpush1.bf16.msra.mxu0 %v5163
    %5298 = vmatprep.subr.bf16.mxu0 0
    %5299 = vmatpush1.bf16.msra.mxu0 %v5164
    %5300 = vmatprep.subr.bf16.mxu0 0
    %5301 = vmatpush1.bf16.msra.mxu0 %v5165
    %5302 = vmatprep.subr.bf16.mxu0 0
    %5303 = vmatpush1.bf16.msra.mxu0 %v5166
    %5304 = vmatprep.subr.bf16.mxu0 0
    %5305 = vmatpush1.bf16.msra.mxu0 %v5167
    %5306 = vmatprep.subr.bf16.mxu0 0
    %5307 = vmatpush1.bf16.msra.mxu0 %v5168
    %5308 = vmatprep.subr.bf16.mxu0 0
    %5309 = vmatpush1.bf16.msra.mxu0 %v5169
    %5310 = vmatprep.subr.bf16.mxu0 0
    %5311 = vmatpush1.bf16.msra.mxu0 %v5170
    %5312 = vmatprep.subr.bf16.mxu0 0
    %5313 = vmatpush1.bf16.msra.mxu0 %v5171
    %5314 = vmatprep.subr.bf16.mxu0 0
    %5315 = vmatpush1.bf16.msra.mxu0 %v5172
    %5316 = vmatprep.subr.bf16.mxu0 0
    %5317 = vmatpush1.bf16.msra.mxu0 %v5173
    %5318 = vmatprep.mubr.bf16.mxu0 %v4767
    %5319 = vmatmul.mubr.bf16.gmra.mrb[0].mxu0 %v4766
    %v5320 = vpop.f32.mrb[0].mxu0
    %v5321 = vadd.f32 0.0, %v5320
    %v5322 = vpop.f32.mrb[0].mxu0
    %v5323 = vpop.f32.mrb[0].mxu0
    %v5324 = vadd.f32 0.0, %v5323
    %v5325 = vpop.f32.mrb[0].mxu0
    %5326 = vdwg.mxu0
    %5327 = vmatprep.subr.bf16.mxu0 0
    %5328 = vmatpush1.bf16.msra.mxu0 %v5174
    %5329 = vmatprep.subr.bf16.mxu0 0
    %5330 = vmatpush1.bf16.msra.mxu0 %v5175
    %5331 = vmatprep.subr.bf16.mxu0 0
    %5332 = vmatpush1.bf16.msra.mxu0 %v5176
    %5333 = vmatprep.subr.bf16.mxu0 0
    %5334 = vmatpush1.bf16.msra.mxu0 %v5177
    %5335 = vmatprep.subr.bf16.mxu0 0
    %5336 = vmatpush1.bf16.msra.mxu0 %v5178
    %5337 = vmatprep.subr.bf16.mxu0 0
    %5338 = vmatpush1.bf16.msra.mxu0 %v5179
    %5339 = vmatprep.subr.bf16.mxu0 0
    %5340 = vmatpush1.bf16.msra.mxu0 %v5180
    %5341 = vmatprep.subr.bf16.mxu0 0
    %5342 = vmatpush1.bf16.msra.mxu0 %v5181
    %5343 = vmatprep.subr.bf16.mxu0 0
    %5344 = vmatpush1.bf16.msra.mxu0 %v5182
    %5345 = vmatprep.subr.bf16.mxu0 0
    %5346 = vmatpush1.bf16.msra.mxu0 %v5183
    %5347 = vmatprep.subr.bf16.mxu0 0
    %5348 = vmatpush1.bf16.msra.mxu0 %v5184
    %5349 = vmatprep.subr.bf16.mxu0 0
    %5350 = vmatpush1.bf16.msra.mxu0 %v5185
    %5351 = vmatprep.subr.bf16.mxu0 0
    %5352 = vmatpush1.bf16.msra.mxu0 %v5186
    %5353 = vmatprep.subr.bf16.mxu0 0
    %5354 = vmatpush1.bf16.msra.mxu0 %v5187
    %5355 = vmatprep.subr.bf16.mxu0 0
    %5356 = vmatpush1.bf16.msra.mxu0 %v5188
    %5357 = vmatprep.subr.bf16.mxu0 0
    %5358 = vmatpush1.bf16.msra.mxu0 %v5189
    %5359 = vmatprep.mubr.bf16.mxu0 %v4769
    %5360 = vmatmul.mubr.bf16.gmra.mrb[0].mxu0 %v4768
    %v5361 = vpop.f32.mrb[0].mxu0
    %v5362 = vadd.f32 %v5321, %v5361
    %v5363 = vpop.f32.mrb[0].mxu0
    %v5364 = vpop.f32.mrb[0].mxu0
    %v5365 = vadd.f32 %v5324, %v5364
    %v5366 = vpop.f32.mrb[0].mxu0
    %5367 = vdwg.mxu0
    %5368 = vmatprep.subr.bf16.mxu0 0
    %5369 = vmatpush1.bf16.msra.mxu0 %v5190
    %5370 = vmatprep.subr.bf16.mxu0 0
    %5371 = vmatpush1.bf16.msra.mxu0 %v5191
    %5372 = vmatprep.subr.bf16.mxu0 0
    %5373 = vmatpush1.bf16.msra.mxu0 %v5192
    %5374 = vmatprep.subr.bf16.mxu0 0
    %5375 = vmatpush1.bf16.msra.mxu0 %v5193
    %5376 = vmatprep.subr.bf16.mxu0 0
    %5377 = vmatpush1.bf16.msra.mxu0 %v5194
    %5378 = vmatprep.subr.bf16.mxu0 0
    %5379 = vmatpush1.bf16.msra.mxu0 %v5195
    %5380 = vmatprep.subr.bf16.mxu0 0
    %5381 = vmatpush1.bf16.msra.mxu0 %v5196
    %5382 = vmatprep.subr.bf16.mxu0 0
    %5383 = vmatpush1.bf16.msra.mxu0 %v5197
    %5384 = vmatprep.subr.bf16.mxu0 0
    %5385 = vmatpush1.bf16.msra.mxu0 %v5198
    %5386 = vmatprep.subr.bf16.mxu0 0
    %5387 = vmatpush1.bf16.msra.mxu0 %v5199
    %5388 = vmatprep.subr.bf16.mxu0 0
    %5389 = vmatpush1.bf16.msra.mxu0 %v5200
    %5390 = vmatprep.subr.bf16.mxu0 0
    %5391 = vmatpush1.bf16.msra.mxu0 %v5201
    %5392 = vmatprep.subr.bf16.mxu0 0
    %5393 = vmatpush1.bf16.msra.mxu0 %v5202
    %5394 = vmatprep.subr.bf16.mxu0 0
    %5395 = vmatpush1.bf16.msra.mxu0 %v5203
    %5396 = vmatprep.subr.bf16.mxu0 0
    %5397 = vmatpush1.bf16.msra.mxu0 %v5204
    %5398 = vmatprep.subr.bf16.mxu0 0
    %5399 = vmatpush1.bf16.msra.mxu0 %v5205
    %5400 = vmatprep.mubr.bf16.mxu0 %v4771
    %5401 = vmatmul.mubr.bf16.gmra.mrb[0].mxu0 %v4770
    %v5402 = vpop.f32.mrb[0].mxu0
    %v5403 = vadd.f32 %v5362, %v5402
    %v5404 = vpop.f32.mrb[0].mxu0
    %v5405 = vpop.f32.mrb[0].mxu0
    %v5406 = vadd.f32 %v5365, %v5405
    %v5407 = vpop.f32.mrb[0].mxu0
    %5408 = vdwg.mxu0
    %5409 = vmatprep.subr.bf16.mxu0 0
    %5410 = vmatpush1.bf16.msra.mxu0 %v5206
    %5411 = vmatprep.subr.bf16.mxu0 0
    %5412 = vmatpush1.bf16.msra.mxu0 %v5207
    %5413 = vmatprep.subr.bf16.mxu0 0
    %5414 = vmatpush1.bf16.msra.mxu0 %v5208
    %5415 = vmatprep.subr.bf16.mxu0 0
    %5416 = vmatpush1.bf16.msra.mxu0 %v5209
    %5417 = vmatprep.subr.bf16.mxu0 0
    %5418 = vmatpush1.bf16.msra.mxu0 %v5210
    %5419 = vmatprep.subr.bf16.mxu0 0
    %5420 = vmatpush1.bf16.msra.mxu0 %v5211
    %5421 = vmatprep.subr.bf16.mxu0 0
    %5422 = vmatpush1.bf16.msra.mxu0 %v5212
    %5423 = vmatprep.subr.bf16.mxu0 0
    %5424 = vmatpush1.bf16.msra.mxu0 %v5213
    %5425 = vmatprep.subr.bf16.mxu0 0
    %5426 = vmatpush1.bf16.msra.mxu0 %v5214
    %5427 = vmatprep.subr.bf16.mxu0 0
    %5428 = vmatpush1.bf16.msra.mxu0 %v5215
    %5429 = vmatprep.subr.bf16.mxu0 0
    %5430 = vmatpush1.bf16.msra.mxu0 %v5216
    %5431 = vmatprep.subr.bf16.mxu0 0
    %5432 = vmatpush1.bf16.msra.mxu0 %v5217
    %5433 = vmatprep.subr.bf16.mxu0 0
    %5434 = vmatpush1.bf16.msra.mxu0 %v5218
    %5435 = vmatprep.subr.bf16.mxu0 0
    %5436 = vmatpush1.bf16.msra.mxu0 %v5219
    %5437 = vmatprep.subr.bf16.mxu0 0
    %5438 = vmatpush1.bf16.msra.mxu0 %v5220
    %5439 = vmatprep.subr.bf16.mxu0 0
    %5440 = vmatpush1.bf16.msra.mxu0 %v5221
    %5441 = vmatprep.mubr.bf16.mxu0 %v4773
    %5442 = vmatmul.mubr.bf16.gmra.mrb[0].mxu0 %v4772
    %v5443 = vpop.f32.mrb[0].mxu0
    %v5444 = vadd.f32 %v5403, %v5443
    %v5445 = vpop.f32.mrb[0].mxu0
    %v5446 = vpop.f32.mrb[0].mxu0
    %v5447 = vadd.f32 %v5406, %v5446
    %v5448 = vpop.f32.mrb[0].mxu0
    %5449 = vdwg.mxu0
    %v5578 = vunpack.c.l.b16 %v4312
    %v5579 = vunpack.c.l.b16 %v4313
    %v5580 = vunpack.c.l.b16 %v4314
    %v5581 = vunpack.c.l.b16 %v4315
    %v5582 = vunpack.c.l.b16 %v4316
    %v5583 = vunpack.c.l.b16 %v4317
    %v5584 = vunpack.c.l.b16 %v4318
    %v5585 = vunpack.c.l.b16 %v4319
    %v5586 = vunpack.c.l.b16 %v4320
    %v5587 = vunpack.c.l.b16 %v4321
    %v5588 = vunpack.c.l.b16 %v4322
    %v5589 = vunpack.c.l.b16 %v4323
    %v5590 = vunpack.c.l.b16 %v4324
    %v5591 = vunpack.c.l.b16 %v4325
    %v5592 = vunpack.c.l.b16 %v4326
    %v5593 = vunpack.c.l.b16 %v4327
    %v5594 = vunpack.c.l.b16 %v4328
    %v5595 = vunpack.c.l.b16 %v4329
    %v5596 = vunpack.c.l.b16 %v4330
    %v5597 = vunpack.c.l.b16 %v4331
    %v5598 = vunpack.c.l.b16 %v4332
    %v5599 = vunpack.c.l.b16 %v4333
    %v5600 = vunpack.c.l.b16 %v4334
    %v5601 = vunpack.c.l.b16 %v4335
    %v5602 = vunpack.c.l.b16 %v4336
    %v5603 = vunpack.c.l.b16 %v4337
    %v5604 = vunpack.c.l.b16 %v4338
    %v5605 = vunpack.c.l.b16 %v4339
    %v5606 = vunpack.c.l.b16 %v4340
    %v5607 = vunpack.c.l.b16 %v4341
    %v5608 = vunpack.c.l.b16 %v4342
    %v5609 = vunpack.c.l.b16 %v4343
    %v5610 = vunpack.c.l.b16 %v4344
    %v5611 = vunpack.c.l.b16 %v4345
    %v5612 = vunpack.c.l.b16 %v4346
    %v5613 = vunpack.c.l.b16 %v4347
    %v5614 = vunpack.c.l.b16 %v4348
    %v5615 = vunpack.c.l.b16 %v4349
    %v5616 = vunpack.c.l.b16 %v4350
    %v5617 = vunpack.c.l.b16 %v4351
    %v5618 = vunpack.c.l.b16 %v4352
    %v5619 = vunpack.c.l.b16 %v4353
    %v5620 = vunpack.c.l.b16 %v4354
    %v5621 = vunpack.c.l.b16 %v4355
    %v5622 = vunpack.c.l.b16 %v4356
    %v5623 = vunpack.c.l.b16 %v4357
    %v5624 = vunpack.c.l.b16 %v4358
    %v5625 = vunpack.c.l.b16 %v4359
    %v5626 = vunpack.c.l.b16 %v4360
    %v5627 = vunpack.c.l.b16 %v4361
    %v5628 = vunpack.c.l.b16 %v4362
    %v5629 = vunpack.c.l.b16 %v4363
    %v5630 = vunpack.c.l.b16 %v4364
    %v5631 = vunpack.c.l.b16 %v4365
    %v5632 = vunpack.c.l.b16 %v4366
    %v5633 = vunpack.c.l.b16 %v4367
    %v5634 = vunpack.c.l.b16 %v4368
    %v5635 = vunpack.c.l.b16 %v4369
    %v5636 = vunpack.c.l.b16 %v4370
    %v5637 = vunpack.c.l.b16 %v4371
    %v5638 = vunpack.c.l.b16 %v4372
    %v5639 = vunpack.c.l.b16 %v4373
    %v5640 = vunpack.c.l.b16 %v4374
    %v5641 = vunpack.c.l.b16 %v4375
    %v5642 = vunpack.c.l.b16 %v4376
    %v5643 = vunpack.c.l.b16 %v4377
    %v5644 = vunpack.c.l.b16 %v4378
    %v5645 = vunpack.c.l.b16 %v4379
    %v5646 = vunpack.c.l.b16 %v4380
    %v5647 = vunpack.c.l.b16 %v4381
    %v5648 = vunpack.c.l.b16 %v4382
    %v5649 = vunpack.c.l.b16 %v4383
    %v5650 = vunpack.c.l.b16 %v4384
    %v5651 = vunpack.c.l.b16 %v4385
    %v5652 = vunpack.c.l.b16 %v4386
    %v5653 = vunpack.c.l.b16 %v4387
    %v5654 = vunpack.c.l.b16 %v4388
    %v5655 = vunpack.c.l.b16 %v4389
    %v5656 = vunpack.c.l.b16 %v4390
    %v5657 = vunpack.c.l.b16 %v4391
    %v5658 = vunpack.c.l.b16 %v4392
    %v5659 = vunpack.c.l.b16 %v4393
    %v5660 = vunpack.c.l.b16 %v4394
    %v5661 = vunpack.c.l.b16 %v4395
    %v5662 = vunpack.c.l.b16 %v4396
    %v5663 = vunpack.c.l.b16 %v4397
    %v5664 = vunpack.c.l.b16 %v4398
    %v5665 = vunpack.c.l.b16 %v4399
    %v5666 = vunpack.c.l.b16 %v4400
    %v5667 = vunpack.c.l.b16 %v4401
    %v5668 = vunpack.c.l.b16 %v4402
    %v5669 = vunpack.c.l.b16 %v4403
    %v5670 = vunpack.c.l.b16 %v4404
    %v5671 = vunpack.c.l.b16 %v4405
    %v5672 = vunpack.c.l.b16 %v4406
    %v5673 = vunpack.c.l.b16 %v4407
    %v5674 = vunpack.c.l.b16 %v4408
    %v5675 = vunpack.c.l.b16 %v4409
    %v5676 = vunpack.c.l.b16 %v4410
    %v5677 = vunpack.c.l.b16 %v4411
    %v5678 = vunpack.c.l.b16 %v4412
    %v5679 = vunpack.c.l.b16 %v4413
    %v5680 = vunpack.c.l.b16 %v4414
    %v5681 = vunpack.c.l.b16 %v4415
    %v5682 = vunpack.c.l.b16 %v4416
    %v5683 = vunpack.c.l.b16 %v4417
    %v5684 = vunpack.c.l.b16 %v4418
    %v5685 = vunpack.c.l.b16 %v4419
    %v5686 = vunpack.c.l.b16 %v4420
    %v5687 = vunpack.c.l.b16 %v4421
    %v5688 = vunpack.c.l.b16 %v4422
    %v5689 = vunpack.c.l.b16 %v4423
    %v5690 = vunpack.c.l.b16 %v4424
    %v5691 = vunpack.c.l.b16 %v4425
    %v5692 = vunpack.c.l.b16 %v4426
    %v5693 = vunpack.c.l.b16 %v4427
    %v5694 = vunpack.c.l.b16 %v4428
    %v5695 = vunpack.c.l.b16 %v4429
    %v5696 = vunpack.c.l.b16 %v4430
    %v5697 = vunpack.c.l.b16 %v4431
    %v5698 = vunpack.c.l.b16 %v4432
    %v5699 = vunpack.c.l.b16 %v4433
    %v5700 = vunpack.c.l.b16 %v4434
    %v5701 = vunpack.c.l.b16 %v4435
    %v5702 = vunpack.c.l.b16 %v4436
    %v5703 = vunpack.c.l.b16 %v4437
    %v5704 = vunpack.c.l.b16 %v4438
    %v5705 = vunpack.c.l.b16 %v4439
    %v5706 = vpack.c.b16 %v5579, %v5578
    %v5707 = vpack.c.b16 %v5581, %v5580
    %v5708 = vpack.c.b16 %v5583, %v5582
    %v5709 = vpack.c.b16 %v5585, %v5584
    %v5710 = vpack.c.b16 %v5587, %v5586
    %v5711 = vpack.c.b16 %v5589, %v5588
    %v5712 = vpack.c.b16 %v5591, %v5590
    %v5713 = vpack.c.b16 %v5593, %v5592
    %v5714 = vpack.c.b16 %v5595, %v5594
    %v5715 = vpack.c.b16 %v5597, %v5596
    %v5716 = vpack.c.b16 %v5599, %v5598
    %v5717 = vpack.c.b16 %v5601, %v5600
    %v5718 = vpack.c.b16 %v5603, %v5602
    %v5719 = vpack.c.b16 %v5605, %v5604
    %v5720 = vpack.c.b16 %v5607, %v5606
    %v5721 = vpack.c.b16 %v5609, %v5608
    %v5722 = vpack.c.b16 %v5611, %v5610
    %v5723 = vpack.c.b16 %v5613, %v5612
    %v5724 = vpack.c.b16 %v5615, %v5614
    %v5725 = vpack.c.b16 %v5617, %v5616
    %v5726 = vpack.c.b16 %v5619, %v5618
    %v5727 = vpack.c.b16 %v5621, %v5620
    %v5728 = vpack.c.b16 %v5623, %v5622
    %v5729 = vpack.c.b16 %v5625, %v5624
    %v5730 = vpack.c.b16 %v5627, %v5626
    %v5731 = vpack.c.b16 %v5629, %v5628
    %v5732 = vpack.c.b16 %v5631, %v5630
    %v5733 = vpack.c.b16 %v5633, %v5632
    %v5734 = vpack.c.b16 %v5635, %v5634
    %v5735 = vpack.c.b16 %v5637, %v5636
    %v5736 = vpack.c.b16 %v5639, %v5638
    %v5737 = vpack.c.b16 %v5641, %v5640
    %v5738 = vpack.c.b16 %v5643, %v5642
    %v5739 = vpack.c.b16 %v5645, %v5644
    %v5740 = vpack.c.b16 %v5647, %v5646
    %v5741 = vpack.c.b16 %v5649, %v5648
    %v5742 = vpack.c.b16 %v5651, %v5650
    %v5743 = vpack.c.b16 %v5653, %v5652
    %v5744 = vpack.c.b16 %v5655, %v5654
    %v5745 = vpack.c.b16 %v5657, %v5656
    %v5746 = vpack.c.b16 %v5659, %v5658
    %v5747 = vpack.c.b16 %v5661, %v5660
    %v5748 = vpack.c.b16 %v5663, %v5662
    %v5749 = vpack.c.b16 %v5665, %v5664
    %v5750 = vpack.c.b16 %v5667, %v5666
    %v5751 = vpack.c.b16 %v5669, %v5668
    %v5752 = vpack.c.b16 %v5671, %v5670
    %v5753 = vpack.c.b16 %v5673, %v5672
    %v5754 = vpack.c.b16 %v5675, %v5674
    %v5755 = vpack.c.b16 %v5677, %v5676
    %v5756 = vpack.c.b16 %v5679, %v5678
    %v5757 = vpack.c.b16 %v5681, %v5680
    %v5758 = vpack.c.b16 %v5683, %v5682
    %v5759 = vpack.c.b16 %v5685, %v5684
    %v5760 = vpack.c.b16 %v5687, %v5686
    %v5761 = vpack.c.b16 %v5689, %v5688
    %v5762 = vpack.c.b16 %v5691, %v5690
    %v5763 = vpack.c.b16 %v5693, %v5692
    %v5764 = vpack.c.b16 %v5695, %v5694
    %v5765 = vpack.c.b16 %v5697, %v5696
    %v5766 = vpack.c.b16 %v5699, %v5698
    %v5767 = vpack.c.b16 %v5701, %v5700
    %v5768 = vpack.c.b16 %v5703, %v5702
    %v5769 = vpack.c.b16 %v5705, %v5704
    %5834 = vmatprep.subr.bf16.mxu0 0
    %5835 = vmatpush1.bf16.msra.mxu0 %v5706
    %5836 = vmatprep.subr.bf16.mxu0 0
    %5837 = vmatpush1.bf16.msra.mxu0 %v5707
    %5838 = vmatprep.subr.bf16.mxu0 0
    %5839 = vmatpush1.bf16.msra.mxu0 %v5708
    %5840 = vmatprep.subr.bf16.mxu0 0
    %5841 = vmatpush1.bf16.msra.mxu0 %v5709
    %5842 = vmatprep.subr.bf16.mxu0 0
    %5843 = vmatpush1.bf16.msra.mxu0 %v5710
    %5844 = vmatprep.subr.bf16.mxu0 0
    %5845 = vmatpush1.bf16.msra.mxu0 %v5711
    %5846 = vmatprep.subr.bf16.mxu0 0
    %5847 = vmatpush1.bf16.msra.mxu0 %v5712
    %5848 = vmatprep.subr.bf16.mxu0 0
    %5849 = vmatpush1.bf16.msra.mxu0 %v5713
    %5850 = vmatprep.subr.bf16.mxu0 0
    %5851 = vmatpush1.bf16.msra.mxu0 %v5714
    %5852 = vmatprep.subr.bf16.mxu0 0
    %5853 = vmatpush1.bf16.msra.mxu0 %v5715
    %5854 = vmatprep.subr.bf16.mxu0 0
    %5855 = vmatpush1.bf16.msra.mxu0 %v5716
    %5856 = vmatprep.subr.bf16.mxu0 0
    %5857 = vmatpush1.bf16.msra.mxu0 %v5717
    %5858 = vmatprep.subr.bf16.mxu0 0
    %5859 = vmatpush1.bf16.msra.mxu0 %v5718
    %5860 = vmatprep.subr.bf16.mxu0 0
    %5861 = vmatpush1.bf16.msra.mxu0 %v5719
    %5862 = vmatprep.subr.bf16.mxu0 0
    %5863 = vmatpush1.bf16.msra.mxu0 %v5720
    %5864 = vmatprep.subr.bf16.mxu0 0
    %5865 = vmatpush1.bf16.msra.mxu0 %v5721
    %5866 = vmatprep.mubr.bf16.mxu0 %v4304
    %5867 = vmatmul.mubr.bf16.gmra.mrb[0].mxu0 %v4303
    %v5868 = vpop.f32.mrb[0].mxu0
    %v5869 = vadd.f32 %v5444, %v5868
    %v5870 = vpop.f32.mrb[0].mxu0
    %v5871 = vpop.f32.mrb[0].mxu0
    %v5872 = vadd.f32 %v5447, %v5871
    %v5873 = vpop.f32.mrb[0].mxu0
    %5874 = vdwg.mxu0
    %5875 = vmatprep.subr.bf16.mxu0 0
    %5876 = vmatpush1.bf16.msra.mxu0 %v5722
    %5877 = vmatprep.subr.bf16.mxu0 0
    %5878 = vmatpush1.bf16.msra.mxu0 %v5723
    %5879 = vmatprep.subr.bf16.mxu0 0
    %5880 = vmatpush1.bf16.msra.mxu0 %v5724
    %5881 = vmatprep.subr.bf16.mxu0 0
    %5882 = vmatpush1.bf16.msra.mxu0 %v5725
    %5883 = vmatprep.subr.bf16.mxu0 0
    %5884 = vmatpush1.bf16.msra.mxu0 %v5726
    %5885 = vmatprep.subr.bf16.mxu0 0
    %5886 = vmatpush1.bf16.msra.mxu0 %v5727
    %5887 = vmatprep.subr.bf16.mxu0 0
    %5888 = vmatpush1.bf16.msra.mxu0 %v5728
    %5889 = vmatprep.subr.bf16.mxu0 0
    %5890 = vmatpush1.bf16.msra.mxu0 %v5729
    %5891 = vmatprep.subr.bf16.mxu0 0
    %5892 = vmatpush1.bf16.msra.mxu0 %v5730
    %5893 = vmatprep.subr.bf16.mxu0 0
    %5894 = vmatpush1.bf16.msra.mxu0 %v5731
    %5895 = vmatprep.subr.bf16.mxu0 0
    %5896 = vmatpush1.bf16.msra.mxu0 %v5732
    %5897 = vmatprep.subr.bf16.mxu0 0
    %5898 = vmatpush1.bf16.msra.mxu0 %v5733
    %5899 = vmatprep.subr.bf16.mxu0 0
    %5900 = vmatpush1.bf16.msra.mxu0 %v5734
    %5901 = vmatprep.subr.bf16.mxu0 0
    %5902 = vmatpush1.bf16.msra.mxu0 %v5735
    %5903 = vmatprep.subr.bf16.mxu0 0
    %5904 = vmatpush1.bf16.msra.mxu0 %v5736
    %5905 = vmatprep.subr.bf16.mxu0 0
    %5906 = vmatpush1.bf16.msra.mxu0 %v5737
    %5907 = vmatprep.mubr.bf16.mxu0 %v4306
    %5908 = vmatmul.mubr.bf16.gmra.mrb[0].mxu0 %v4305
    %v5909 = vpop.f32.mrb[0].mxu0
    %v5910 = vadd.f32 %v5869, %v5909
    %v5911 = vpop.f32.mrb[0].mxu0
    %v5912 = vpop.f32.mrb[0].mxu0
    %v5913 = vadd.f32 %v5872, %v5912
    %v5914 = vpop.f32.mrb[0].mxu0
    %5915 = vdwg.mxu0
    %5916 = vmatprep.subr.bf16.mxu0 0
    %5917 = vmatpush1.bf16.msra.mxu0 %v5738
    %5918 = vmatprep.subr.bf16.mxu0 0
    %5919 = vmatpush1.bf16.msra.mxu0 %v5739
    %5920 = vmatprep.subr.bf16.mxu0 0
    %5921 = vmatpush1.bf16.msra.mxu0 %v5740
    %5922 = vmatprep.subr.bf16.mxu0 0
    %5923 = vmatpush1.bf16.msra.mxu0 %v5741
    %5924 = vmatprep.subr.bf16.mxu0 0
    %5925 = vmatpush1.bf16.msra.mxu0 %v5742
    %5926 = vmatprep.subr.bf16.mxu0 0
    %5927 = vmatpush1.bf16.msra.mxu0 %v5743
    %5928 = vmatprep.subr.bf16.mxu0 0
    %5929 = vmatpush1.bf16.msra.mxu0 %v5744
    %5930 = vmatprep.subr.bf16.mxu0 0
    %5931 = vmatpush1.bf16.msra.mxu0 %v5745
    %5932 = vmatprep.subr.bf16.mxu0 0
    %5933 = vmatpush1.bf16.msra.mxu0 %v5746
    %5934 = vmatprep.subr.bf16.mxu0 0
    %5935 = vmatpush1.bf16.msra.mxu0 %v5747
    %5936 = vmatprep.subr.bf16.mxu0 0
    %5937 = vmatpush1.bf16.msra.mxu0 %v5748
    %5938 = vmatprep.subr.bf16.mxu0 0
    %5939 = vmatpush1.bf16.msra.mxu0 %v5749
    %5940 = vmatprep.subr.bf16.mxu0 0
    %5941 = vmatpush1.bf16.msra.mxu0 %v5750
    %5942 = vmatprep.subr.bf16.mxu0 0
    %5943 = vmatpush1.bf16.msra.mxu0 %v5751
    %5944 = vmatprep.subr.bf16.mxu0 0
    %5945 = vmatpush1.bf16.msra.mxu0 %v5752
    %5946 = vmatprep.subr.bf16.mxu0 0
    %5947 = vmatpush1.bf16.msra.mxu0 %v5753
    %5948 = vmatprep.mubr.bf16.mxu0 %v4308
    %5949 = vmatmul.mubr.bf16.gmra.mrb[0].mxu0 %v4307
    %v5950 = vpop.f32.mrb[0].mxu0
    %v5951 = vadd.f32 %v5910, %v5950
    %v5952 = vpop.f32.mrb[0].mxu0
    %v5953 = vpop.f32.mrb[0].mxu0
    %v5954 = vadd.f32 %v5913, %v5953
    %v5955 = vpop.f32.mrb[0].mxu0
    %5956 = vdwg.mxu0
    %5957 = vmatprep.subr.bf16.mxu0 0
    %5958 = vmatpush1.bf16.msra.mxu0 %v5754
    %5959 = vmatprep.subr.bf16.mxu0 0
    %5960 = vmatpush1.bf16.msra.mxu0 %v5755
    %5961 = vmatprep.subr.bf16.mxu0 0
    %5962 = vmatpush1.bf16.msra.mxu0 %v5756
    %5963 = vmatprep.subr.bf16.mxu0 0
    %5964 = vmatpush1.bf16.msra.mxu0 %v5757
    %5965 = vmatprep.subr.bf16.mxu0 0
    %5966 = vmatpush1.bf16.msra.mxu0 %v5758
    %5967 = vmatprep.subr.bf16.mxu0 0
    %5968 = vmatpush1.bf16.msra.mxu0 %v5759
    %5969 = vmatprep.subr.bf16.mxu0 0
    %5970 = vmatpush1.bf16.msra.mxu0 %v5760
    %5971 = vmatprep.subr.bf16.mxu0 0
    %5972 = vmatpush1.bf16.msra.mxu0 %v5761
    %5973 = vmatprep.subr.bf16.mxu0 0
    %5974 = vmatpush1.bf16.msra.mxu0 %v5762
    %5975 = vmatprep.subr.bf16.mxu0 0
    %5976 = vmatpush1.bf16.msra.mxu0 %v5763
    %5977 = vmatprep.subr.bf16.mxu0 0
    %5978 = vmatpush1.bf16.msra.mxu0 %v5764
    %5979 = vmatprep.subr.bf16.mxu0 0
    %5980 = vmatpush1.bf16.msra.mxu0 %v5765
    %5981 = vmatprep.subr.bf16.mxu0 0
    %5982 = vmatpush1.bf16.msra.mxu0 %v5766
    %5983 = vmatprep.subr.bf16.mxu0 0
    %5984 = vmatpush1.bf16.msra.mxu0 %v5767
    %5985 = vmatprep.subr.bf16.mxu0 0
    %5986 = vmatpush1.bf16.msra.mxu0 %v5768
    %5987 = vmatprep.subr.bf16.mxu0 0
    %5988 = vmatpush1.bf16.msra.mxu0 %v5769
    %5989 = vmatprep.mubr.bf16.mxu0 %v4310
    %5990 = vmatmul.mubr.bf16.gmra.mrb[0].mxu0 %v4309
    %v5991 = vpop.f32.mrb[0].mxu0
    %v5992 = vadd.f32 %v5951, %v5991
    %v5993 = vpop.f32.mrb[0].mxu0
    %v5994 = vpop.f32.mrb[0].mxu0
    %v5995 = vadd.f32 %v5954, %v5994
    %v5996 = vpop.f32.mrb[0].mxu0
    %5997 = vdwg.mxu0
    %v5998 = vlaneseq
    %v5999 = vshrl.u32 %v5998, 7
    %v6000 = vsub.s32 0, %v5999
    %v6001 = vrot.slane %v3044, %v6000
    %v6002 = vadd.f32 %v5992, %v6001
    %v6003 = vadd.f32 %v5995, %v6001
    %v6004 = vadd.f32 %v3969, %v6002
    %v6005 = vadd.f32 %v3970, %v6003
    %v6006 = vsel %vm48, %v6004, 0.0
    %6007 = vadd.xlane.f32.xlu0 %v6006
    %v6008 = vpop.xlane.xlu0 %6007
    %v6009 = vsel %vm48, %v6005, 0.0
    %6010 = vadd.xlane.f32.xlu0 %v6009
    %v6011 = vpop.xlane.xlu0 %6010
    %v6012 = vmul.f32 %v6008, %v939
    %v6013 = vmul.f32 %v6011, %v939
    %v6014 = vsub.f32 %v6004, %v6012
    %v6015 = vsub.f32 %v6005, %v6013
    %v6016 = vmul.f32 %v6014, %v6014
    %v6017 = vmul.f32 %v6015, %v6015
    %v6018 = vsel %vm48, %v6016, 0.0
    %6019 = vadd.xlane.f32.xlu0 %v6018
    %v6020 = vpop.xlane.xlu0 %6019
    %v6021 = vsel %vm48, %v6017, 0.0
    %6022 = vadd.xlane.f32.xlu0 %v6021
    %v6023 = vpop.xlane.xlu0 %6022
    %v6024 = vmul.f32 %v6020, %v939
    %v6025 = vmul.f32 %v6023, %v939
    %v6026 = vadd.f32 %v6024, 1e-05
    %v6027 = vadd.f32 %v6025, 1e-05
    %v6028 = vrsqrt.pop %v6026
    %v6029 = vrsqrt.pop %v6027
    %v6030 = vmul.f32 %v6014, %v6028
    %v6031 = vmul.f32 %v6015, %v6029
    %v6032 = vlaneseq
    %v6033 = vshrl.u32 %v6032, 7
    %v6034 = vsub.s32 6, %v6033
    %v6035 = vrot.slane %v3043, %v6034
    %v6036 = vmul.f32 %v6030, %v6035
    %v6037 = vmul.f32 %v6031, %v6035
    %v6038 = vlaneseq
    %v6039 = vshrl.u32 %v6038, 7
    %v6040 = vsub.s32 7, %v6039
    %v6041 = vrot.slane %v3043, %v6040
    %v6042 = vadd.f32 %v6036, %v6041
    %v6043 = vadd.f32 %v6037, %v6041
    %v6044 = vsel %vm48, %v6042, 0.0
    %v6045 = vrot.slane %v6044, 4
    %v6046 = vadd.f32 %v6044, %v6045
    %v6047 = vrot.slane %v6046, 2
    %v6048 = vadd.f32 %v6046, %v6047
    %v6049 = vrot.slane %v6048, 1
    %v6050 = vadd.f32 %v6048, %v6049
    %v6051 = vsel %vm48, %v6043, 0.0
    %v6052 = vrot.slane %v6051, 4
    %v6053 = vadd.f32 %v6051, %v6052
    %v6054 = vrot.slane %v6053, 2
    %v6055 = vadd.f32 %v6053, %v6054
    %v6056 = vrot.slane %v6055, 1
    %v6057 = vadd.f32 %v6055, %v6056
    %v6058 = vrcp.pop 8.0
    %v6059 = vmul.f32 %v6050, %v6058
    %v6060 = vmul.f32 %v6057, %v6058
    %v6061 = vld [vmem:[%s8] sm:$0xff]
    %v6062 = vld [vmem:[%s8 + $0x8] sm:$0xff]
    %v6063 = vld [vmem:[%s8 + $0x10] sm:$0xff]
    %v6064 = vld [vmem:[%s8 + $0x18] sm:$0xff]
    %v6065 = vld [vmem:[%s9] sm:$0x1]
    %v6067 = vlaneseq
    %v6068 = vshrl.u32 %v6067, 7
    %v6069 = vsub.s32 0, %v6068
    %v6070 = vrot.slane %v6065, %v6069
    %vm6074 = vcmask 1041409
    %v6075 = vsel %vm6074, %v6060, %v6059
    %v6076 = vsel %vm48, %v6075, 0
    %6078 = vmatprep.subr.mxu0 0.0
    %6079 = vmatpush1.msra.mxu0 %v6061
    %6080 = vmatprep.subr.mxu0 0.0
    %6081 = vmatpush1.msra.mxu0 %v6062
    %6082 = vmatprep.subr.mxu0 0.0
    %6083 = vmatpush1.msra.mxu0 %v6063
    %6084 = vmatprep.subr.mxu0 0.0
    %6085 = vmatpush1.msra.mxu0 %v6064
    %6086 = vmatprep.subr.mxu0 0.0
    %6087 = vmatpush1.msra.mxu0 0.0
    %6088 = vmatprep.subr.mxu0 0.0
    %6089 = vmatpush1.msra.mxu0 0.0
    %6090 = vmatprep.subr.mxu0 0.0
    %6091 = vmatpush1.msra.mxu0 0.0
    %6092 = vmatprep.subr.mxu0 0.0
    %6093 = vmatpush1.msra.mxu0 0.0
    %6094 = vmatprep.subr.mxu0 0.0
    %6095 = vmatpush1.msra.mxu0 0.0
    %6096 = vmatprep.subr.mxu0 0.0
    %6097 = vmatpush1.msra.mxu0 0.0
    %6098 = vmatprep.subr.mxu0 0.0
    %6099 = vmatpush1.msra.mxu0 0.0
    %6100 = vmatprep.subr.mxu0 0.0
    %6101 = vmatpush1.msra.mxu0 0.0
    %6102 = vmatprep.subr.mxu0 0.0
    %6103 = vmatpush1.msra.mxu0 0.0
    %6104 = vmatprep.subr.mxu0 0.0
    %6105 = vmatpush1.msra.mxu0 0.0
    %6106 = vmatprep.subr.mxu0 0.0
    %6107 = vmatpush1.msra.mxu0 0.0
    %6108 = vmatprep.subr.mxu0 0.0
    %6109 = vmatpush1.msra.mxu0 0.0
    %6110 = vmatprep.subr.mxu0 0.0
    %6111 = vmatpush1.msra.mxu0 0.0
    %6112 = vmatprep.subr.mxu0 0.0
    %6113 = vmatpush1.msra.mxu0 0.0
    %6114 = vmatprep.subr.mxu0 0.0
    %6115 = vmatpush1.msra.mxu0 0.0
    %6116 = vmatprep.subr.mxu0 0.0
    %6117 = vmatpush1.msra.mxu0 0.0
    %6118 = vmatprep.subr.mxu0 0.0
    %6119 = vmatpush1.msra.mxu0 0.0
    %6120 = vmatprep.subr.mxu0 0.0
    %6121 = vmatpush1.msra.mxu0 0.0
    %6122 = vmatprep.subr.mxu0 0.0
    %6123 = vmatpush1.msra.mxu0 0.0
    %6124 = vmatprep.subr.mxu0 0.0
    %6125 = vmatpush1.msra.mxu0 0.0
    %6126 = vmatprep.subr.mxu0 0.0
    %6127 = vmatpush1.msra.mxu0 0.0
    %6128 = vmatprep.subr.mxu0 0.0
    %6129 = vmatpush1.msra.mxu0 0.0
    %6130 = vmatprep.subr.mxu0 0.0
    %6131 = vmatpush1.msra.mxu0 0.0
    %6132 = vmatprep.subr.mxu0 0.0
    %6133 = vmatpush1.msra.mxu0 0.0
    %6134 = vmatprep.subr.mxu0 0.0
    %6135 = vmatpush1.msra.mxu0 0.0
    %6136 = vmatprep.subr.mxu0 0.0
    %6137 = vmatpush1.msra.mxu0 0.0
    %6138 = vmatprep.subr.mxu0 0.0
    %6139 = vmatpush1.msra.mxu0 0.0
    %6140 = vmatprep.subr.mxu0 0.0
    %6141 = vmatpush1.msra.mxu0 0.0
    %6142 = vmatprep.mubr.f32.mxu0 0.0
    %6143 = vmatmul.mubr.f32.gmra.mrb[0].mxu0 %v6076
    %v6144 = vpop.f32.mrb[0].mxu0
    %v6145 = vadd.f32 %v6070, %v6144
    %v6146 = vpop.f32.mrb[0].mxu0
    %6147 = vdwg.mxu0
    %vm6148 = vcmask 25600
    %6149 = vst.msk [vmem:[#allocation2] sm:$0x3] %vm6148, %v6145
    // Predicated region
    $region42: #{tpu_custom_call.1} parent=1 // pred_check
      _
    $region43: #{tpu_custom_call.1} parent=1 // pred_check_branch
      %6151 = sbr.rel (0) target = $region45
    $region44: #{tpu_custom_call.1} parent=1 // pred_region
      %s6153 = ssub.s32 32, 32
      %6154 = vsyncadd [#allocation3], %s6153
      %s6156 = sshll.u32 [#allocation2], 4
      %s6157 = int_to_ptr.vmem [resolvable:$true] %s6156
      %6159 = dma.vmem_to_hbm [thread:$0]  %s6157, 32, %s10, [#allocation3]
    $region45: #{tpu_custom_call.1} parent=1 // pred_fallthru
      _
    // Predicated region
    $region46: #{tpu_custom_call.1} parent=1 // pred_check
      _
    $region47: #{tpu_custom_call.1} parent=1 // pred_check_branch
      %6161 = sbr.rel (0) target = $region49
    $region48: #{tpu_custom_call.1} parent=1 // pred_region
      %6162 = dma.done [#allocation3], 32
    $region49: #{tpu_custom_call.1} parent=1 // pred_fallthru
      _
    %6163 = vsyncpa [#allocation3], 1

</llo_original>
